<compile_context>
chip_gen: v5e
topology: v5e:2x2
jax: 0.10.0
libtpu: 0.0.40
codegen_flags: <defaults>
</compile_context>

<pallas_src>
import functools

import jax
import jax.numpy as jnp
import numpy as np
from jax.experimental import pallas as pl
from jax.experimental.pallas import tpu as pltpu

EPS = 1e-5
LANE = 128
SUBLANE = 8


def _round_up(x, m):
    return (x + m - 1) // m * m


def _pack_dims(C):
    """im2col K-packing constants (depend only on the channel count)."""
    Cp = _round_up(C, LANE)
    if LANE % C == 0:                 # dense packing: LANE//C taps per group
        g, c_pack = LANE // C, C
    else:                             # fallback: one Cp-wide tap per group
        g, c_pack = 1, Cp
    n_groups = -(-9 // g)
    K = n_groups * Cp
    gchunk = max(1, 384 // Cp)        # groups per MXU matmul (K_chunk <= 384)
    return Cp, g, c_pack, n_groups, K, gchunk


def _geometry(C, H, W):
    """Static slab geometry shared by wrapper and kernel."""
    Cp, g, c_pack, n_groups, K, gchunk = _pack_dims(C)
    P = _round_up(W + 2, SUBLANE)     # row pitch (>= W+2, sublane aligned)
    lead = (-(P + 1)) % 16            # lead rows -> interior offset 16-aligned
    interior = lead + P + 1           # slab row of output pixel (0, 0)
    # Max slab row read by any tap is lead + 2*P + 2 + H*P - 1, so we need at
    # least lead + (H+2)*P + 2 rows (fixes the previous out-of-bounds slices).
    S = _round_up(lead + (H + 2) * P + 2, 16)
    return dict(Cp=Cp, g=g, c_pack=c_pack, n_groups=n_groups, K=K,
                gchunk=gchunk, P=P, lead=lead, interior=interior, S=S)


def _fused_resblock_kernel(x_ref, w1_ref, sh1_ref, alpha_ref, w2_ref, sh2_ref,
                           o_ref, ypad_ref, *, H, W, C, geo):
    """Fused Conv3x3+BN1+PReLU -> Conv3x3+BN2 -> +x for one image.

    x_ref     : (S, Cp)  f32  flattened zero-padded input slab (Cp on lanes)
    w1/w2_ref : (K, Cp)  bf16 densely packed im2col weights, BN scale folded
    sh1/2_ref : (1, Cp)  f32  folded shift (conv bias + BN running stats)
    alpha_ref : (1, Cp)  f32  PReLU slope broadcast to lanes
    o_ref     : (H*P, Cp) f32 output rows (junk cols >= W dropped in wrapper)
    ypad_ref  : (S, Cp)  f32  VMEM scratch holding the padded intermediate y
    """
    Cp, P, lead = geo["Cp"], geo["P"], geo["lead"]
    interior, S = geo["interior"], geo["S"]
    g, c_pack = geo["g"], geo["c_pack"]
    n_groups, gchunk = geo["n_groups"], geo["gchunk"]
    HWp = H * P

    def conv3x3(tap, w_ref):
        """3x3 'same' conv as dense-K im2col matmul chunks, f32 accumulation."""
        out = None
        for g0 in range(0, n_groups, gchunk):
            ng = min(gchunk, n_groups - g0)
            pieces = []
            for gi in range(g0, g0 + ng):
                t0 = gi * g
                nt = min(g, 9 - t0)
                for s in range(nt):
                    ky, kx = divmod(t0 + s, 3)
                    v = tap(ky * P + kx)                     # (HWp, Cp) f32
                    pieces.append(v if c_pack == Cp else v[:, :c_pack])
                pad = Cp - nt * c_pack
                if pad:
                    pieces.append(jnp.zeros((HWp, pad), jnp.float32))
            patch = pieces[0] if len(pieces) == 1 else jnp.concatenate(
                pieces, axis=1)                              # (HWp, ng*Cp)
            part = jnp.dot(patch.astype(jnp.bfloat16),       # one cast / chunk
                           w_ref[g0 * Cp:(g0 + ng) * Cp, :],
                           preferred_element_type=jnp.float32)
            out = part if out is None else out + part
        return out                                           # (HWp, Cp) f32

    # ---- conv1 (+ folded BN1) + PReLU --------------------------------------
    y = conv3x3(lambda d: x_ref[lead + d:lead + d + HWp, :], w1_ref)
    y = y + sh1_ref[...]
    y = jnp.where(y > 0, y, y * alpha_ref[...])

    # Zero every column >= W of each output row: these are the left/right halo
    # and pitch-junk columns conv2 relies on being zero.
    col = jax.lax.broadcasted_iota(jnp.int32, (HWp, 1), 0) % P
    y = jnp.where(col < W, y, 0.0)

    # Refresh only the halo ring of the scratch (top pad + lead rows, bottom
    # pad + trailing rows); the interior is fully overwritten every step.
    ypad_ref[0:interior, :] = jnp.zeros((interior, Cp), ypad_ref.dtype)
    ypad_ref[interior + HWp:S, :] = jnp.zeros((S - interior - HWp, Cp),
                                              ypad_ref.dtype)
    ypad_ref[interior:interior + HWp, :] = y

    # ---- conv2 (+ folded BN2) + residual add -------------------------------
    z = conv3x3(lambda d: ypad_ref[lead + d:lead + d + HWp, :], w2_ref)
    o_ref[...] = z + sh2_ref[...] + x_ref[interior:interior + HWp, :]


def residual_block(x_nchw, params):
    """ResidualBlock forward.  x_nchw: (N, C, H, W) f32 -> (N, C, H, W) f32."""
    w1, sh1, alpha, w2, sh2 = params
    N, C, H, W = x_nchw.shape
    geo = _geometry(C, H, W)
    Cp, P, lead, S, K = geo["Cp"], geo["P"], geo["lead"], geo["S"], geo["K"]

    # Layout plumbing (XLA glue): NCHW -> NHWC, zero-pad channels to the lane
    # width, add the 1-pixel spatial halo + pitch padding, flatten rows, and
    # add the lead/trail rows that keep every in-kernel slice in bounds and
    # the interior offset sublane-aligned.
    x = jnp.transpose(x_nchw, (0, 2, 3, 1))
    x = jnp.pad(x, ((0, 0), (1, 1), (1, P - W - 1), (0, Cp - C)))
    x = x.reshape(N, (H + 2) * P, Cp)
    x = jnp.pad(x, ((0, 0), (lead, S - lead - (H + 2) * P), (0, 0)))

    kernel = functools.partial(_fused_resblock_kernel, H=H, W=W, C=C, geo=geo)
    rep = lambda n: (0, 0)            # weights / BN params: same block each step
    out = pl.pallas_call(
        kernel,
        out_shape=jax.ShapeDtypeStruct((N, H * P, Cp), jnp.float32),
        grid_spec=pltpu.PrefetchScalarGridSpec(
            num_scalar_prefetch=0,
            grid=(N,),
            in_specs=[
                pl.BlockSpec((None, S, Cp), lambda n: (n, 0, 0)),   # x slab
                pl.BlockSpec((K, Cp), rep),                         # w1
                pl.BlockSpec((1, Cp), rep),                         # shift1
                pl.BlockSpec((1, Cp), rep),                         # alpha
                pl.BlockSpec((K, Cp), rep),                         # w2
                pl.BlockSpec((1, Cp), rep),                         # shift2
            ],
            out_specs=pl.BlockSpec((None, H * P, Cp), lambda n: (n, 0, 0)),
            scratch_shapes=[pltpu.VMEM((S, Cp), jnp.float32)],
        ),
        compiler_params=pltpu.CompilerParams(
            dimension_semantics=("parallel",),
            # 32 MiB is ample for this shape; raise for monolithic production
            # tiles on v5e/v6e, or switch to the row-tiled grid on v7x.
            vmem_limit_bytes=32 * 1024 * 1024),
    )(x, w1, sh1, alpha, w2, sh2)

    # Drop the junk columns per row and the padded channels; back to NCHW.
    out = out.reshape(N, H, P, Cp)[:, :, :W, :C]
    return jnp.transpose(out, (0, 3, 1, 2))


def make_params(key, C):
    """Deterministic synthetic params: conv HWIO weights + eval-mode BN."""
    Cp, g, c_pack, n_groups, K, _ = _pack_dims(C)
    ks = jax.random.split(key, 12)

    def conv_bn(kw, kb, kg, kbe, km, kv):
        w = 0.2 * jax.random.normal(kw, (3, 3, C, C), jnp.float32)   # HWIO
        cb = 0.1 * jax.random.normal(kb, (C,), jnp.float32)
        gm = 1.0 + 0.1 * jax.random.normal(kg, (C,), jnp.float32)
        be = 0.1 * jax.random.normal(kbe, (C,), jnp.float32)
        m = 0.1 * jax.random.normal(km, (C,), jnp.float32)
        v = 0.5 + jax.nn.softplus(jax.random.normal(kv, (C,), jnp.float32))
        scale = gm / jnp.sqrt(v + EPS)
        # Snap w so the BN-folded weight w*scale is exactly bf16-representable:
        # the kernel's bf16 weights then equal the f32 reference's effective
        # weights, isolating activation rounding as the only error source.
        w = (w * scale).astype(jnp.bfloat16).astype(jnp.float32) / scale
        return w, cb, gm, be, m, v, scale

    w1, cb1, g1, be1, m1, v1, s1 = conv_bn(*ks[0:6])
    w2, cb2, g2, be2, m2, v2, s2 = conv_bn(*ks[6:12])
    alpha = jnp.array([0.25], jnp.float32)                  # nn.PReLU() default

    def pack(w, cb, be, m, scale):
        shift = (cb - m) * scale + be                       # conv bias + BN
        wf = np.asarray(w * scale[None, None, None, :], np.float32)  # (3,3,C,C)
        w_mat = np.zeros((K, Cp), np.float32)               # dense im2col rows
        for t in range(9):
            ky, kx = divmod(t, 3)
            gi, s = divmod(t, g)
            r0 = gi * Cp + s * c_pack
            w_mat[r0:r0 + C, :C] = wf[ky, kx]
        sh = jnp.pad(shift, (0, Cp - C)).reshape(1, Cp).astype(jnp.float32)
        return jnp.asarray(w_mat, jnp.bfloat16), sh

    w1m, sh1 = pack(w1, cb1, be1, m1, s1)
    w2m, sh2 = pack(w2, cb2, be2, m2, s2)
    alpha_l = jnp.full((1, Cp), alpha[0], jnp.float32)

    kernel_params = (w1m, sh1, alpha_l, w2m, sh2)
    raw = dict(w1=w1, cb1=cb1, g1=g1, be1=be1, m1=m1, v1=v1, alpha=alpha,
               w2=w2, cb2=cb2, g2=g2, be2=be2, m2=m2, v2=v2)
    return kernel_params, raw


def reference_forward(x_nchw, raw):
    """Pure-JAX f32 reference (matches PyTorch eval-mode forward)."""
    x = jnp.transpose(x_nchw, (0, 2, 3, 1))                 # NHWC
    dn = ('NHWC', 'HWIO', 'NHWC')
    y = jax.lax.conv_general_dilated(x, raw['w1'], (1, 1), 'SAME',
                                     dimension_numbers=dn) + raw['cb1']
    y = (y - raw['m1']) / jnp.sqrt(raw['v1'] + EPS) * raw['g1'] + raw['be1']
    y = jnp.where(y > 0, y, raw['alpha'][0] * y)
    z = jax.lax.conv_general_dilated(y, raw['w2'], (1, 1), 'SAME',
                                     dimension_numbers=dn) + raw['cb2']
    z = (z - raw['m2']) / jnp.sqrt(raw['v2'] + EPS) * raw['g2'] + raw['be2']
    return jnp.transpose(z + x, (0, 3, 1, 2))


if __name__ == "__main__":
    key = jax.random.PRNGKey(0)
    kp, kx = jax.random.split(key)
    N, C, H, W = 2, 4, 16, 16                               # features = 4
    params, raw = make_params(kp, C)
    # bf16-representable test input so the kernel's bf16 matmul inputs equal
    # the f32 reference's inputs exactly (isolates MXU-boundary rounding).
    x = jax.random.normal(kx, (N, C, H, W), jnp.float32)
    x = x.astype(jnp.bfloat16).astype(jnp.float32)

    out = jax.block_until_ready(jax.jit(residual_block)(x, params))

    ref = reference_forward(x, raw)
    # Tolerance covers the bf16 rounding of the intermediate activation at the
    # conv2 matmul boundary; accumulation + all elementwise math are f32.
    np.testing.assert_allclose(np.asarray(out), np.asarray(ref),
                               rtol=2e-2, atol=2e-2)
    print("KERNEL_OK")
</pallas_src>

<mosaic_0001>
module attributes {stable_mosaic.version = 11 : i64} {
  func.func @_fused_resblock_kernel(%arg0: i32, %arg1: memref<1x448x128xf32, #tpu.memory_space<vmem>>, %arg2: memref<128x128xbf16, #tpu.memory_space<vmem>>, %arg3: memref<1x128xf32, #tpu.memory_space<vmem>>, %arg4: memref<1x128xf32, #tpu.memory_space<vmem>>, %arg5: memref<128x128xbf16, #tpu.memory_space<vmem>>, %arg6: memref<1x128xf32, #tpu.memory_space<vmem>>, %arg7: memref<1x384x128xf32, #tpu.memory_space<vmem>>, %arg8: memref<448x128xf32, #tpu.memory_space<vmem>>) attributes {dimension_semantics = [#tpu.dimension_semantics<parallel>], iteration_bounds = array<i64: 2>, scalar_prefetch = 0 : i64, scratch_operands = 1 : i64, tpu.core_type = #tpu.core_type<tc>, window_params = [{transform_indices = @transform_0, window_bounds = array<i64: 1, 448, 128>}, {pipeline_mode = #tpu.pipeline_mode<synchronous>, transform_indices = @transform_1, window_bounds = array<i64: 128, 128>}, {pipeline_mode = #tpu.pipeline_mode<synchronous>, transform_indices = @transform_2, window_bounds = array<i64: 1, 128>}, {pipeline_mode = #tpu.pipeline_mode<synchronous>, transform_indices = @transform_3, window_bounds = array<i64: 1, 128>}, {pipeline_mode = #tpu.pipeline_mode<synchronous>, transform_indices = @transform_4, window_bounds = array<i64: 128, 128>}, {pipeline_mode = #tpu.pipeline_mode<synchronous>, transform_indices = @transform_5, window_bounds = array<i64: 1, 128>}, {transform_indices = @transform_6, window_bounds = array<i64: 1, 384, 128>}]} {
    %c0 = arith.constant 0 : index
    %c7 = arith.constant 7 : index
    %c0_0 = arith.constant 0 : index
    %0 = vector.load %arg1[%c0, %c7, %c0_0] : memref<1x448x128xf32, #tpu.memory_space<vmem>>, vector<1x384x128xf32>
    %1 = vector.shape_cast %0 : vector<1x384x128xf32> to vector<384x128xf32>
    %2 = vector.extract_strided_slice %1 {offsets = [0, 0], sizes = [384, 4], strides = [1, 1]} : vector<384x128xf32> to vector<384x4xf32>
    %c0_1 = arith.constant 0 : index
    %c8 = arith.constant 8 : index
    %c0_2 = arith.constant 0 : index
    %3 = vector.load %arg1[%c0_1, %c8, %c0_2] : memref<1x448x128xf32, #tpu.memory_space<vmem>>, vector<1x384x128xf32>
    %4 = vector.shape_cast %3 : vector<1x384x128xf32> to vector<384x128xf32>
    %5 = vector.extract_strided_slice %4 {offsets = [0, 0], sizes = [384, 4], strides = [1, 1]} : vector<384x128xf32> to vector<384x4xf32>
    %c0_3 = arith.constant 0 : index
    %c9 = arith.constant 9 : index
    %c0_4 = arith.constant 0 : index
    %6 = vector.load %arg1[%c0_3, %c9, %c0_4] : memref<1x448x128xf32, #tpu.memory_space<vmem>>, vector<1x384x128xf32>
    %7 = vector.shape_cast %6 : vector<1x384x128xf32> to vector<384x128xf32>
    %8 = vector.extract_strided_slice %7 {offsets = [0, 0], sizes = [384, 4], strides = [1, 1]} : vector<384x128xf32> to vector<384x4xf32>
    %c0_5 = arith.constant 0 : index
    %c31 = arith.constant 31 : index
    %c0_6 = arith.constant 0 : index
    %9 = vector.load %arg1[%c0_5, %c31, %c0_6] : memref<1x448x128xf32, #tpu.memory_space<vmem>>, vector<1x384x128xf32>
    %10 = vector.shape_cast %9 : vector<1x384x128xf32> to vector<384x128xf32>
    %11 = vector.extract_strided_slice %10 {offsets = [0, 0], sizes = [384, 4], strides = [1, 1]} : vector<384x128xf32> to vector<384x4xf32>
    %c0_7 = arith.constant 0 : index
    %c32 = arith.constant 32 : index
    %c0_8 = arith.constant 0 : index
    %12 = vector.load %arg1[%c0_7, %c32, %c0_8] : memref<1x448x128xf32, #tpu.memory_space<vmem>>, vector<1x384x128xf32>
    %13 = vector.shape_cast %12 : vector<1x384x128xf32> to vector<384x128xf32>
    %14 = vector.extract_strided_slice %13 {offsets = [0, 0], sizes = [384, 4], strides = [1, 1]} : vector<384x128xf32> to vector<384x4xf32>
    %c0_9 = arith.constant 0 : index
    %c33 = arith.constant 33 : index
    %c0_10 = arith.constant 0 : index
    %15 = vector.load %arg1[%c0_9, %c33, %c0_10] : memref<1x448x128xf32, #tpu.memory_space<vmem>>, vector<1x384x128xf32>
    %16 = vector.shape_cast %15 : vector<1x384x128xf32> to vector<384x128xf32>
    %17 = vector.extract_strided_slice %16 {offsets = [0, 0], sizes = [384, 4], strides = [1, 1]} : vector<384x128xf32> to vector<384x4xf32>
    %c0_11 = arith.constant 0 : index
    %c55 = arith.constant 55 : index
    %c0_12 = arith.constant 0 : index
    %18 = vector.load %arg1[%c0_11, %c55, %c0_12] : memref<1x448x128xf32, #tpu.memory_space<vmem>>, vector<1x384x128xf32>
    %19 = vector.shape_cast %18 : vector<1x384x128xf32> to vector<384x128xf32>
    %20 = vector.extract_strided_slice %19 {offsets = [0, 0], sizes = [384, 4], strides = [1, 1]} : vector<384x128xf32> to vector<384x4xf32>
    %c0_13 = arith.constant 0 : index
    %c56 = arith.constant 56 : index
    %c0_14 = arith.constant 0 : index
    %21 = vector.load %arg1[%c0_13, %c56, %c0_14] : memref<1x448x128xf32, #tpu.memory_space<vmem>>, vector<1x384x128xf32>
    %22 = vector.shape_cast %21 : vector<1x384x128xf32> to vector<384x128xf32>
    %23 = vector.extract_strided_slice %22 {offsets = [0, 0], sizes = [384, 4], strides = [1, 1]} : vector<384x128xf32> to vector<384x4xf32>
    %c0_15 = arith.constant 0 : index
    %c57 = arith.constant 57 : index
    %c0_16 = arith.constant 0 : index
    %24 = vector.load %arg1[%c0_15, %c57, %c0_16] : memref<1x448x128xf32, #tpu.memory_space<vmem>>, vector<1x384x128xf32>
    %25 = vector.shape_cast %24 : vector<1x384x128xf32> to vector<384x128xf32>
    %26 = vector.extract_strided_slice %25 {offsets = [0, 0], sizes = [384, 4], strides = [1, 1]} : vector<384x128xf32> to vector<384x4xf32>
    %cst = arith.constant 0.000000e+00 : f32
    %27 = vector.broadcast %cst : f32 to vector<384x92xf32>
    %28 = tpu.concatenate %2, %5, %8, %11, %14, %17, %20, %23, %26, %27 in 1 : vector<384x4xf32>, vector<384x4xf32>, vector<384x4xf32>, vector<384x4xf32>, vector<384x4xf32>, vector<384x4xf32>, vector<384x4xf32>, vector<384x4xf32>, vector<384x4xf32>, vector<384x92xf32> -> vector<384x128xf32>
    %29 = arith.truncf %28 : vector<384x128xf32> to vector<384x128xbf16>
    %c0_17 = arith.constant 0 : index
    %c0_18 = arith.constant 0 : index
    %30 = vector.load %arg2[%c0_17, %c0_18] : memref<128x128xbf16, #tpu.memory_space<vmem>>, vector<128x128xbf16>
    %cst_19 = arith.constant dense<0.000000e+00> : vector<384x128xf32>
    %31 = tpu.matmul %29, %30, %cst_19 {dimension_numbers = #tpu.dot_dimension_numbers<[1], [0], [0], [1], [0, 0, 1, 1], [], []>} : vector<384x128xbf16>, vector<128x128xbf16>, vector<384x128xf32> -> vector<384x128xf32>
    %c0_20 = arith.constant 0 : index
    %c0_21 = arith.constant 0 : index
    %32 = vector.load %arg3[%c0_20, %c0_21] : memref<1x128xf32, #tpu.memory_space<vmem>>, vector<1x128xf32>
    %33 = vector.broadcast %32 : vector<1x128xf32> to vector<384x128xf32>
    %34 = arith.addf %31, %33 : vector<384x128xf32>
    %cst_22 = arith.constant 0.000000e+00 : f32
    %35 = vector.broadcast %cst_22 : f32 to vector<384x128xf32>
    %36 = arith.cmpf ogt, %34, %35 : vector<384x128xf32>
    %c0_23 = arith.constant 0 : index
    %c0_24 = arith.constant 0 : index
    %37 = vector.load %arg4[%c0_23, %c0_24] : memref<1x128xf32, #tpu.memory_space<vmem>>, vector<1x128xf32>
    %38 = vector.broadcast %37 : vector<1x128xf32> to vector<384x128xf32>
    %39 = arith.mulf %34, %38 : vector<384x128xf32>
    %40 = arith.select %36, %34, %39 : vector<384x128xi1>, vector<384x128xf32>
    %41 = tpu.iota {dimensions = array<i32: 0>} : vector<384x1xi32>
    %c24_i32 = arith.constant 24 : i32
    %c0_i32 = arith.constant 0 : i32
    %42 = arith.cmpi eq, %c24_i32, %c0_i32 : i32
    %c1_i32 = arith.constant 1 : i32
    %43 = arith.select %42, %c1_i32, %c24_i32 : i32
    %44 = vector.broadcast %43 : i32 to vector<384x1xi32>
    %45 = arith.remsi %41, %44 : vector<384x1xi32>
    %c0_i32_25 = arith.constant 0 : i32
    %46 = vector.broadcast %c0_i32_25 : i32 to vector<384x1xi32>
    %47 = arith.cmpi ne, %45, %46 : vector<384x1xi32>
    %c0_i32_26 = arith.constant 0 : i32
    %48 = vector.broadcast %c0_i32_26 : i32 to vector<384x1xi32>
    %49 = arith.cmpi slt, %45, %48 : vector<384x1xi32>
    %c0_i32_27 = arith.constant 0 : i32
    %50 = arith.cmpi slt, %43, %c0_i32_27 : i32
    %51 = vector.broadcast %50 : i1 to vector<384x1xi1>
    %52 = vector.broadcast %51 : vector<384x1xi1> to vector<384x1xi1>
    %53 = arith.xori %49, %52 : vector<384x1xi1>
    %54 = arith.andi %53, %47 : vector<384x1xi1>
    %55 = vector.broadcast %43 : i32 to vector<384x1xi32>
    %56 = arith.addi %45, %55 : vector<384x1xi32>
    %57 = arith.select %54, %56, %45 : vector<384x1xi1>, vector<384x1xi32>
    %c16_i32 = arith.constant 16 : i32
    %58 = vector.broadcast %c16_i32 : i32 to vector<384x1xi32>
    %59 = arith.cmpi slt, %57, %58 : vector<384x1xi32>
    %cst_28 = arith.constant 0.000000e+00 : f32
    %60 = vector.shape_cast %59 : vector<384x1xi1> to vector<384x1xi1>
    %61 = vector.broadcast %60 : vector<384x1xi1> to vector<384x128xi1>
    %62 = vector.broadcast %cst_28 : f32 to vector<384x128xf32>
    %63 = arith.select %61, %40, %62 : vector<384x128xi1>, vector<384x128xf32>
    %cst_29 = arith.constant 0.000000e+00 : f32
    %64 = vector.broadcast %cst_29 : f32 to vector<32x128xf32>
    %c0_30 = arith.constant 0 : index
    %c0_31 = arith.constant 0 : index
    %65 = vector.load %arg8[%c0_30, %c0_31] : memref<448x128xf32, #tpu.memory_space<vmem>>, vector<32x128xf32>
    tpu.vector_store %arg8[%c0_30, %c0_31], %64 {strides = array<i32>} : memref<448x128xf32, #tpu.memory_space<vmem>>, vector<32x128xf32>,
    %cst_32 = arith.constant 0.000000e+00 : f32
    %66 = vector.broadcast %cst_32 : f32 to vector<32x128xf32>
    %c416 = arith.constant 416 : index
    %c0_33 = arith.constant 0 : index
    %67 = vector.load %arg8[%c416, %c0_33] : memref<448x128xf32, #tpu.memory_space<vmem>>, vector<32x128xf32>
    tpu.vector_store %arg8[%c416, %c0_33], %66 {strides = array<i32>} : memref<448x128xf32, #tpu.memory_space<vmem>>, vector<32x128xf32>,
    %c32_34 = arith.constant 32 : index
    %c0_35 = arith.constant 0 : index
    %68 = vector.load %arg8[%c32_34, %c0_35] : memref<448x128xf32, #tpu.memory_space<vmem>>, vector<384x128xf32>
    tpu.vector_store %arg8[%c32_34, %c0_35], %63 {strides = array<i32>} : memref<448x128xf32, #tpu.memory_space<vmem>>, vector<384x128xf32>,
    %c7_36 = arith.constant 7 : index
    %c0_37 = arith.constant 0 : index
    %69 = vector.load %arg8[%c7_36, %c0_37] : memref<448x128xf32, #tpu.memory_space<vmem>>, vector<384x128xf32>
    %70 = vector.extract_strided_slice %69 {offsets = [0, 0], sizes = [384, 4], strides = [1, 1]} : vector<384x128xf32> to vector<384x4xf32>
    %c8_38 = arith.constant 8 : index
    %c0_39 = arith.constant 0 : index
    %71 = vector.load %arg8[%c8_38, %c0_39] : memref<448x128xf32, #tpu.memory_space<vmem>>, vector<384x128xf32>
    %72 = vector.extract_strided_slice %71 {offsets = [0, 0], sizes = [384, 4], strides = [1, 1]} : vector<384x128xf32> to vector<384x4xf32>
    %c9_40 = arith.constant 9 : index
    %c0_41 = arith.constant 0 : index
    %73 = vector.load %arg8[%c9_40, %c0_41] : memref<448x128xf32, #tpu.memory_space<vmem>>, vector<384x128xf32>
    %74 = vector.extract_strided_slice %73 {offsets = [0, 0], sizes = [384, 4], strides = [1, 1]} : vector<384x128xf32> to vector<384x4xf32>
    %c31_42 = arith.constant 31 : index
    %c0_43 = arith.constant 0 : index
    %75 = vector.load %arg8[%c31_42, %c0_43] : memref<448x128xf32, #tpu.memory_space<vmem>>, vector<384x128xf32>
    %76 = vector.extract_strided_slice %75 {offsets = [0, 0], sizes = [384, 4], strides = [1, 1]} : vector<384x128xf32> to vector<384x4xf32>
    %c32_44 = arith.constant 32 : index
    %c0_45 = arith.constant 0 : index
    %77 = vector.load %arg8[%c32_44, %c0_45] : memref<448x128xf32, #tpu.memory_space<vmem>>, vector<384x128xf32>
    %78 = vector.extract_strided_slice %77 {offsets = [0, 0], sizes = [384, 4], strides = [1, 1]} : vector<384x128xf32> to vector<384x4xf32>
    %c33_46 = arith.constant 33 : index
    %c0_47 = arith.constant 0 : index
    %79 = vector.load %arg8[%c33_46, %c0_47] : memref<448x128xf32, #tpu.memory_space<vmem>>, vector<384x128xf32>
    %80 = vector.extract_strided_slice %79 {offsets = [0, 0], sizes = [384, 4], strides = [1, 1]} : vector<384x128xf32> to vector<384x4xf32>
    %c55_48 = arith.constant 55 : index
    %c0_49 = arith.constant 0 : index
    %81 = vector.load %arg8[%c55_48, %c0_49] : memref<448x128xf32, #tpu.memory_space<vmem>>, vector<384x128xf32>
    %82 = vector.extract_strided_slice %81 {offsets = [0, 0], sizes = [384, 4], strides = [1, 1]} : vector<384x128xf32> to vector<384x4xf32>
    %c56_50 = arith.constant 56 : index
    %c0_51 = arith.constant 0 : index
    %83 = vector.load %arg8[%c56_50, %c0_51] : memref<448x128xf32, #tpu.memory_space<vmem>>, vector<384x128xf32>
    %84 = vector.extract_strided_slice %83 {offsets = [0, 0], sizes = [384, 4], strides = [1, 1]} : vector<384x128xf32> to vector<384x4xf32>
    %c57_52 = arith.constant 57 : index
    %c0_53 = arith.constant 0 : index
    %85 = vector.load %arg8[%c57_52, %c0_53] : memref<448x128xf32, #tpu.memory_space<vmem>>, vector<384x128xf32>
    %86 = vector.extract_strided_slice %85 {offsets = [0, 0], sizes = [384, 4], strides = [1, 1]} : vector<384x128xf32> to vector<384x4xf32>
    %cst_54 = arith.constant 0.000000e+00 : f32
    %87 = vector.broadcast %cst_54 : f32 to vector<384x92xf32>
    %88 = tpu.concatenate %70, %72, %74, %76, %78, %80, %82, %84, %86, %87 in 1 : vector<384x4xf32>, vector<384x4xf32>, vector<384x4xf32>, vector<384x4xf32>, vector<384x4xf32>, vector<384x4xf32>, vector<384x4xf32>, vector<384x4xf32>, vector<384x4xf32>, vector<384x92xf32> -> vector<384x128xf32>
    %89 = arith.truncf %88 : vector<384x128xf32> to vector<384x128xbf16>
    %c0_55 = arith.constant 0 : index
    %c0_56 = arith.constant 0 : index
    %90 = vector.load %arg5[%c0_55, %c0_56] : memref<128x128xbf16, #tpu.memory_space<vmem>>, vector<128x128xbf16>
    %cst_57 = arith.constant dense<0.000000e+00> : vector<384x128xf32>
    %91 = tpu.matmul %89, %90, %cst_57 {dimension_numbers = #tpu.dot_dimension_numbers<[1], [0], [0], [1], [0, 0, 1, 1], [], []>} : vector<384x128xbf16>, vector<128x128xbf16>, vector<384x128xf32> -> vector<384x128xf32>
    %c0_58 = arith.constant 0 : index
    %c0_59 = arith.constant 0 : index
    %92 = vector.load %arg6[%c0_58, %c0_59] : memref<1x128xf32, #tpu.memory_space<vmem>>, vector<1x128xf32>
    %93 = vector.broadcast %92 : vector<1x128xf32> to vector<384x128xf32>
    %94 = arith.addf %91, %93 : vector<384x128xf32>
    %c0_60 = arith.constant 0 : index
    %c32_61 = arith.constant 32 : index
    %c0_62 = arith.constant 0 : index
    %95 = vector.load %arg1[%c0_60, %c32_61, %c0_62] : memref<1x448x128xf32, #tpu.memory_space<vmem>>, vector<1x384x128xf32>
    %96 = vector.shape_cast %95 : vector<1x384x128xf32> to vector<384x128xf32>
    %97 = arith.addf %94, %96 : vector<384x128xf32>
    %c0_63 = arith.constant 0 : index
    %c0_64 = arith.constant 0 : index
    %c0_65 = arith.constant 0 : index
    %98 = vector.load %arg7[%c0_63, %c0_64, %c0_65] : memref<1x384x128xf32, #tpu.memory_space<vmem>>, vector<1x384x128xf32>
    %99 = vector.shape_cast %98 : vector<1x384x128xf32> to vector<384x128xf32>
    %100 = vector.shape_cast %97 : vector<384x128xf32> to vector<1x384x128xf32>
    tpu.vector_store %arg7[%c0_63, %c0_64, %c0_65], %100 {strides = array<i32>} : memref<1x384x128xf32, #tpu.memory_space<vmem>>, vector<1x384x128xf32>,
    return
  }
  func.func @transform_0(%arg0: i32) -> (i32, i32, i32) {
    %c0_i32 = arith.constant 0 : i32
    %c0_i32_0 = arith.constant 0 : i32
    %c0_i32_1 = arith.constant 0 : i32
    return %arg0, %c0_i32, %c0_i32_0 : i32, i32, i32
  }
  func.func @transform_1(%arg0: i32) -> (i32, i32) {
    %c0_i32 = arith.constant 0 : i32
    %c0_i32_0 = arith.constant 0 : i32
    %c0_i32_1 = arith.constant 0 : i32
    return %c0_i32, %c0_i32_0 : i32, i32
  }
  func.func @transform_2(%arg0: i32) -> (i32, i32) {
    %c0_i32 = arith.constant 0 : i32
    %c0_i32_0 = arith.constant 0 : i32
    %c0_i32_1 = arith.constant 0 : i32
    return %c0_i32, %c0_i32_0 : i32, i32
  }
  func.func @transform_3(%arg0: i32) -> (i32, i32) {
    %c0_i32 = arith.constant 0 : i32
    %c0_i32_0 = arith.constant 0 : i32
    %c0_i32_1 = arith.constant 0 : i32
    return %c0_i32, %c0_i32_0 : i32, i32
  }
  func.func @transform_4(%arg0: i32) -> (i32, i32) {
    %c0_i32 = arith.constant 0 : i32
    %c0_i32_0 = arith.constant 0 : i32
    %c0_i32_1 = arith.constant 0 : i32
    return %c0_i32, %c0_i32_0 : i32, i32
  }
  func.func @transform_5(%arg0: i32) -> (i32, i32) {
    %c0_i32 = arith.constant 0 : i32
    %c0_i32_0 = arith.constant 0 : i32
    %c0_i32_1 = arith.constant 0 : i32
    return %c0_i32, %c0_i32_0 : i32, i32
  }
  func.func @transform_6(%arg0: i32) -> (i32, i32, i32) {
    %c0_i32 = arith.constant 0 : i32
    %c0_i32_0 = arith.constant 0 : i32
    %c0_i32_1 = arith.constant 0 : i32
    return %arg0, %c0_i32, %c0_i32_0 : i32, i32, i32
  }
}

</mosaic_0001>

<llo_original>
// kernel: residual_block.1
$region0: #{residual_block.1}
  #allocation0 [shape = 'u32[]', space=smem, size = 0x4, offset = 0x4, fixed_abs, tag = 'smem constant byte address 0x4 - core index']
  #allocation1 [shape = 'u32[72,128]{1,0:T(1,128)}', space=vmem, size = 0x9000, scoped, tag = 'internal scratch']
  #allocation2 [shape = 'f32[448,128]{1,0:T(8,128)}', space=vmem, size = 0x38000, scoped, tag = 'scratch operand']
  %s0 = inlined_call_operand.vmem [shape: f32[2,448,128], index: 0, kind: input, shape index: {}]
  %s1 = inlined_call_operand.vmem [shape: bf16[128,128], index: 1, kind: input, shape index: {}]
  %s2 = inlined_call_operand.vmem [shape: f32[1,128], index: 2, kind: input, shape index: {}]
  %s3 = inlined_call_operand.vmem [shape: f32[1,128], index: 3, kind: input, shape index: {}]
  %s4 = inlined_call_operand.vmem [shape: bf16[128,128], index: 4, kind: input, shape index: {}]
  %s5 = inlined_call_operand.vmem [shape: f32[1,128], index: 5, kind: input, shape index: {}]
  %s6 = inlined_call_operand.vmem [shape: f32[2,384,128], index: 6, kind: output, shape index: {}]
  %s7 = sld [smem:[#allocation0]]
  $region57: #{residual_block.1} parent=0
    _
  %s9 = ssub.s32 1, %s7
  %s10 = scalar_select 0, %s9, %s7
  loop: start=0, step=1, limit=4
  $region2: #{residual_block.1} parent=0 // loop_pre_header
    _
  $region3: #{residual_block.1} parent=0 // loop_header
    %s12 = sphi 0, %s16
    %p13 = scmp.ge.s32.totalorder %s12, 4
    %s22 = sphi 0, %s24
    %s25 = sphi 0, %s22
    %s26 = sphi 0, %s25
    %s42 = sphi 0, %s26
    %s46 = sphi 0, %s46
    %s48 = sphi 0, %s46
    %s49 = sphi 0, %s48
    %s63 = sphi 0, %s49
    %s67 = sphi 0, %s67
    %s69 = sphi 0, %s67
    %s70 = sphi 0, %s69
    %s84 = sphi 0, %s70
    %s88 = sphi 0, %s88
    %s90 = sphi 0, %s88
    %s91 = sphi 0, %s90
    %s105 = sphi 0, %s91
    %s109 = sphi 0, %s109
    %s111 = sphi 0, %s109
    %s112 = sphi 0, %s111
    %s126 = sphi 0, %s112
    %s130 = sphi 0, %s130
    %s132 = sphi 0, %s130
    %s133 = sphi 0, %s132
    %s147 = sphi 0, %s133
    %s153 = sphi 0, %s155
    %s156 = sphi 0, %s153
    %s157 = sphi 0, %s156
    %s173 = sphi 0, %s157
  $region4: #{residual_block.1} parent=0 // loop_header_branch
    %15 = sbr.rel (%p13) target = $region8
  $region5: #{residual_block.1} parent=0 // loop_body
    %s17 = ssub.s32 %s12, 1
    %s18 = ssub.s32 %s12, 2
    %s19 = sadd.s32 %s12, 1
    %s20 = ssub.s32 %s12, %s19
    %p21 = scmp.eq.s32.totalorder %s20, 0
    %s23 = sadd.s32 %s22, 1
    %s24 = scalar_select %p21, %s22, %s23
    %p27 = pneg %p21
    %p28 = scmp.eq.s32.totalorder %s12, 1
    %p29 = por %p27, %p28
    %p30 = scmp.ne.s32.totalorder %s22, %s25
    %p31 = scmp.eq.s32.totalorder %s12, 0
    %p32 = por %p30, %p31
    %p33 = scmp.ne.s32.totalorder %s22, %s25
    %p34 = scmp.eq.s32.totalorder %s17, 1
    %p35 = por %p33, %p34
    %p36 = scmp.ne.s32.totalorder %s25, %s26
    %p37 = scmp.eq.s32.totalorder %s17, 0
    %p38 = por %p36, %p37
    %p39 = scmp.ne.s32.totalorder %s25, %s26
    %p40 = scmp.eq.s32.totalorder %s18, 1
    %p41 = por %p39, %p40
    %p43 = scmp.ne.s32.totalorder %s26, %s42
    %p44 = scmp.eq.s32.totalorder %s18, 0
    %p45 = por %p43, %p44
    %s47 = sadd.s32 %s46, 1
    %p50 = scmp.eq.s32.totalorder %s12, 1
    %p51 = scmp.ne.s32.totalorder %s46, %s48
    %p52 = scmp.eq.s32.totalorder %s12, 0
    %p53 = por %p51, %p52
    %p54 = scmp.ne.s32.totalorder %s46, %s48
    %p55 = scmp.eq.s32.totalorder %s17, 1
    %p56 = por %p54, %p55
    %p57 = scmp.ne.s32.totalorder %s48, %s49
    %p58 = scmp.eq.s32.totalorder %s17, 0
    %p59 = por %p57, %p58
    %p60 = scmp.ne.s32.totalorder %s48, %s49
    %p61 = scmp.eq.s32.totalorder %s18, 1
    %p62 = por %p60, %p61
    %p64 = scmp.ne.s32.totalorder %s49, %s63
    %p65 = scmp.eq.s32.totalorder %s18, 0
    %p66 = por %p64, %p65
    %s68 = sadd.s32 %s67, 1
    %p71 = scmp.eq.s32.totalorder %s12, 1
    %p72 = scmp.ne.s32.totalorder %s67, %s69
    %p73 = scmp.eq.s32.totalorder %s12, 0
    %p74 = por %p72, %p73
    %p75 = scmp.ne.s32.totalorder %s67, %s69
    %p76 = scmp.eq.s32.totalorder %s17, 1
    %p77 = por %p75, %p76
    %p78 = scmp.ne.s32.totalorder %s69, %s70
    %p79 = scmp.eq.s32.totalorder %s17, 0
    %p80 = por %p78, %p79
    %p81 = scmp.ne.s32.totalorder %s69, %s70
    %p82 = scmp.eq.s32.totalorder %s18, 1
    %p83 = por %p81, %p82
    %p85 = scmp.ne.s32.totalorder %s70, %s84
    %p86 = scmp.eq.s32.totalorder %s18, 0
    %p87 = por %p85, %p86
    %s89 = sadd.s32 %s88, 1
    %p92 = scmp.eq.s32.totalorder %s12, 1
    %p93 = scmp.ne.s32.totalorder %s88, %s90
    %p94 = scmp.eq.s32.totalorder %s12, 0
    %p95 = por %p93, %p94
    %p96 = scmp.ne.s32.totalorder %s88, %s90
    %p97 = scmp.eq.s32.totalorder %s17, 1
    %p98 = por %p96, %p97
    %p99 = scmp.ne.s32.totalorder %s90, %s91
    %p100 = scmp.eq.s32.totalorder %s17, 0
    %p101 = por %p99, %p100
    %p102 = scmp.ne.s32.totalorder %s90, %s91
    %p103 = scmp.eq.s32.totalorder %s18, 1
    %p104 = por %p102, %p103
    %p106 = scmp.ne.s32.totalorder %s91, %s105
    %p107 = scmp.eq.s32.totalorder %s18, 0
    %p108 = por %p106, %p107
    %s110 = sadd.s32 %s109, 1
    %p113 = scmp.eq.s32.totalorder %s12, 1
    %p114 = scmp.ne.s32.totalorder %s109, %s111
    %p115 = scmp.eq.s32.totalorder %s12, 0
    %p116 = por %p114, %p115
    %p117 = scmp.ne.s32.totalorder %s109, %s111
    %p118 = scmp.eq.s32.totalorder %s17, 1
    %p119 = por %p117, %p118
    %p120 = scmp.ne.s32.totalorder %s111, %s112
    %p121 = scmp.eq.s32.totalorder %s17, 0
    %p122 = por %p120, %p121
    %p123 = scmp.ne.s32.totalorder %s111, %s112
    %p124 = scmp.eq.s32.totalorder %s18, 1
    %p125 = por %p123, %p124
    %p127 = scmp.ne.s32.totalorder %s112, %s126
    %p128 = scmp.eq.s32.totalorder %s18, 0
    %p129 = por %p127, %p128
    %s131 = sadd.s32 %s130, 1
    %p134 = scmp.eq.s32.totalorder %s12, 1
    %p135 = scmp.ne.s32.totalorder %s130, %s132
    %p136 = scmp.eq.s32.totalorder %s12, 0
    %p137 = por %p135, %p136
    %p138 = scmp.ne.s32.totalorder %s130, %s132
    %p139 = scmp.eq.s32.totalorder %s17, 1
    %p140 = por %p138, %p139
    %p141 = scmp.ne.s32.totalorder %s132, %s133
    %p142 = scmp.eq.s32.totalorder %s17, 0
    %p143 = por %p141, %p142
    %p144 = scmp.ne.s32.totalorder %s132, %s133
    %p145 = scmp.eq.s32.totalorder %s18, 1
    %p146 = por %p144, %p145
    %p148 = scmp.ne.s32.totalorder %s133, %s147
    %p149 = scmp.eq.s32.totalorder %s18, 0
    %p150 = por %p148, %p149
    %s151 = ssub.s32 %s12, %s19
    %p152 = scmp.eq.s32.totalorder %s151, 0
    %s154 = sadd.s32 %s153, 1
    %s155 = scalar_select %p152, %s153, %s154
    %p158 = pneg %p152
    %p159 = scmp.eq.s32.totalorder %s12, 1
    %p160 = por %p158, %p159
    %p161 = scmp.ne.s32.totalorder %s153, %s156
    %p162 = scmp.eq.s32.totalorder %s12, 0
    %p163 = por %p161, %p162
    %p164 = scmp.ne.s32.totalorder %s153, %s156
    %p165 = scmp.eq.s32.totalorder %s17, 1
    %p166 = por %p164, %p165
    %p167 = scmp.ne.s32.totalorder %s156, %s157
    %p168 = scmp.eq.s32.totalorder %s17, 0
    %p169 = por %p167, %p168
    %p170 = scmp.ne.s32.totalorder %s156, %s157
    %p171 = scmp.eq.s32.totalorder %s18, 1
    %p172 = por %p170, %p171
    %p174 = scmp.ne.s32.totalorder %s157, %s173
    %p175 = scmp.eq.s32.totalorder %s18, 0
    %p176 = por %p174, %p175
    %p177 = scmp.le.s32.totalorder 1, %s12
    %p178 = scmp.lt.s32.totalorder %s12, 3
    %p179 = pnand %p177, %p178
    %p180 = pneg %p179
    // Predicated region
    $region9: #{residual_block.1} parent=5 // pred_check
      _
    $region10: #{residual_block.1} parent=5 // pred_check_branch
      %182 = sbr.rel (%p179) target = $region12
    $region11: #{residual_block.1} parent=5 // pred_region
      %s183 = ssub.s32 %s12, 1
      // Predicated region
      $region13: #{residual_block.1} parent=11 // pred_check
        %p184 = pneg %p59
      $region14: #{residual_block.1} parent=11 // pred_check_branch
        %186 = sbr.rel (%p184) target = $region16
      $region15: #{residual_block.1} parent=11 // pred_region
        _
      $region16: #{residual_block.1} parent=11 // pred_fallthru
        _
      // Predicated region
      $region17: #{residual_block.1} parent=11 // pred_check
        %p187 = pneg %p80
      $region18: #{residual_block.1} parent=11 // pred_check_branch
        %189 = sbr.rel (%p187) target = $region20
      $region19: #{residual_block.1} parent=11 // pred_region
        _
      $region20: #{residual_block.1} parent=11 // pred_fallthru
        _
      // Predicated region
      $region21: #{residual_block.1} parent=11 // pred_check
        %p190 = pneg %p101
      $region22: #{residual_block.1} parent=11 // pred_check_branch
        %192 = sbr.rel (%p190) target = $region24
      $region23: #{residual_block.1} parent=11 // pred_region
        _
      $region24: #{residual_block.1} parent=11 // pred_fallthru
        _
      // Predicated region
      $region25: #{residual_block.1} parent=11 // pred_check
        %p193 = pneg %p122
      $region26: #{residual_block.1} parent=11 // pred_check_branch
        %195 = sbr.rel (%p193) target = $region28
      $region27: #{residual_block.1} parent=11 // pred_region
        _
      $region28: #{residual_block.1} parent=11 // pred_fallthru
        _
      // Predicated region
      $region29: #{residual_block.1} parent=11 // pred_check
        %p196 = pneg %p143
      $region30: #{residual_block.1} parent=11 // pred_check_branch
        %198 = sbr.rel (%p196) target = $region32
      $region31: #{residual_block.1} parent=11 // pred_region
        _
      $region32: #{residual_block.1} parent=11 // pred_fallthru
        _
    $region12: #{residual_block.1} parent=5 // pred_fallthru
      _
    %p199 = scmp.lt.s32.totalorder %s12, 2
    // Predicated region
    $region33: #{residual_block.1} parent=5 // pred_check
      %p200 = pneg %p199
    $region34: #{residual_block.1} parent=5 // pred_check_branch
      %202 = sbr.rel (%p200) target = $region36
    $region35: #{residual_block.1} parent=5 // pred_region
      // Predicated region
      $region37: #{residual_block.1} parent=35 // pred_check
        %p203 = pneg %p32
      $region38: #{residual_block.1} parent=35 // pred_check_branch
        %205 = sbr.rel (%p203) target = $region40
      $region39: #{residual_block.1} parent=35 // pred_region
        %p206 = scmp.lt.s32.totalorder %s12, 1
        %s207 = scalar_select %p206, %s12, 1
        %s208 = smul.addr %s207, 56
        %s209 = smul.addr %s208, 8
        %s210 = scalar_lea.vmem %s0, %s209
      $region40: #{residual_block.1} parent=35 // pred_fallthru
        _
    $region36: #{residual_block.1} parent=5 // pred_fallthru
      _
    %p211 = scmp.le.s32.totalorder 1, %s12
    %p212 = scmp.lt.s32.totalorder %s12, 3
    %p213 = pnand %p211, %p212
    %p214 = pneg %p213
    // Predicated region
    $region41: #{residual_block.1} parent=5 // pred_check
      _
    $region42: #{residual_block.1} parent=5 // pred_check_branch
      %216 = sbr.rel (%p213) target = $region44
    $region43: #{residual_block.1} parent=5 // pred_region
      %s217 = ssub.s32 %s12, 1
      %p218 = scmp.lt.s32.totalorder %s17, 1
      %s219 = scalar_select %p218, %s17, 1
      %s220 = smul.addr %s219, 56
      %s221 = smul.addr %s220, 8
      %s222 = scalar_lea.vmem %s0, %s221
      %p223 = pneg %p38
      %p224 = pneg %p35
      %p225 = pneg %p59
      %p226 = pneg %p56
      %p227 = pneg %p80
      %p228 = pneg %p77
      %p229 = pneg %p101
      %p230 = pneg %p98
      %p231 = pneg %p122
      %p232 = pneg %p119
      %p233 = pneg %p143
      %p234 = pneg %p140
      %p235 = pneg %p169
      %p236 = pneg %p166
      %p237 = scmp.lt.s32.totalorder %s17, 1
      %s238 = scalar_select %p237, %s17, 1
      %s239 = smul.addr %s238, 48
      %s240 = smul.addr %s239, 8
      %s241 = scalar_lea.vmem %s6, %s240
      %p242 = scmp.lt.s32.totalorder %s17, 1
      %s243 = scalar_select %p242, %s17, 1
      %s244 = smul.addr %s243, 56
      %s245 = smul.addr %s244, 8
      %s246 = scalar_lea.vmem %s0, %s245
      %p247 = scmp.lt.s32.totalorder %s17, 1
      %s248 = scalar_select %p247, %s17, 1
      %s249 = smul.addr %s248, 48
      %s250 = smul.addr %s249, 8
      %s251 = scalar_lea.vmem %s6, %s250
      %v252 = vld [vmem:[%s246 + $0x7] sm:$0xff]
      %v253 = vld [vmem:[%s246 + $0xf] sm:$0xff]
      %v254 = vld [vmem:[%s246 + $0x17] sm:$0xff]
      %v255 = vld [vmem:[%s246 + $0x1f] sm:$0xff]
      %v256 = vld [vmem:[%s246 + $0x27] sm:$0xff]
      %v257 = vld [vmem:[%s246 + $0x2f] sm:$0xff]
      %v258 = vld [vmem:[%s246 + $0x37] sm:$0xff]
      %v259 = vld [vmem:[%s246 + $0x3f] sm:$0xff]
      %v260 = vld [vmem:[%s246 + $0x47] sm:$0xff]
      %v261 = vld [vmem:[%s246 + $0x4f] sm:$0xff]
      %v262 = vld [vmem:[%s246 + $0x57] sm:$0xff]
      %v263 = vld [vmem:[%s246 + $0x5f] sm:$0xff]
      %v264 = vld [vmem:[%s246 + $0x67] sm:$0xff]
      %v265 = vld [vmem:[%s246 + $0x6f] sm:$0xff]
      %v266 = vld [vmem:[%s246 + $0x77] sm:$0xff]
      %v267 = vld [vmem:[%s246 + $0x7f] sm:$0xff]
      %v268 = vld [vmem:[%s246 + $0x87] sm:$0xff]
      %v269 = vld [vmem:[%s246 + $0x8f] sm:$0xff]
      %v270 = vld [vmem:[%s246 + $0x97] sm:$0xff]
      %v271 = vld [vmem:[%s246 + $0x9f] sm:$0xff]
      %v272 = vld [vmem:[%s246 + $0xa7] sm:$0xff]
      %v273 = vld [vmem:[%s246 + $0xaf] sm:$0xff]
      %v274 = vld [vmem:[%s246 + $0xb7] sm:$0xff]
      %v275 = vld [vmem:[%s246 + $0xbf] sm:$0xff]
      %v276 = vld [vmem:[%s246 + $0xc7] sm:$0xff]
      %v277 = vld [vmem:[%s246 + $0xcf] sm:$0xff]
      %v278 = vld [vmem:[%s246 + $0xd7] sm:$0xff]
      %v279 = vld [vmem:[%s246 + $0xdf] sm:$0xff]
      %v280 = vld [vmem:[%s246 + $0xe7] sm:$0xff]
      %v281 = vld [vmem:[%s246 + $0xef] sm:$0xff]
      %v282 = vld [vmem:[%s246 + $0xf7] sm:$0xff]
      %v283 = vld [vmem:[%s246 + $0xff] sm:$0xff]
      %v284 = vld [vmem:[%s246 + $0x107] sm:$0xff]
      %v285 = vld [vmem:[%s246 + $0x10f] sm:$0xff]
      %v286 = vld [vmem:[%s246 + $0x117] sm:$0xff]
      %v287 = vld [vmem:[%s246 + $0x11f] sm:$0xff]
      %v288 = vld [vmem:[%s246 + $0x127] sm:$0xff]
      %v289 = vld [vmem:[%s246 + $0x12f] sm:$0xff]
      %v290 = vld [vmem:[%s246 + $0x137] sm:$0xff]
      %v291 = vld [vmem:[%s246 + $0x13f] sm:$0xff]
      %v292 = vld [vmem:[%s246 + $0x147] sm:$0xff]
      %v293 = vld [vmem:[%s246 + $0x14f] sm:$0xff]
      %v294 = vld [vmem:[%s246 + $0x157] sm:$0xff]
      %v295 = vld [vmem:[%s246 + $0x15f] sm:$0xff]
      %v296 = vld [vmem:[%s246 + $0x167] sm:$0xff]
      %v297 = vld [vmem:[%s246 + $0x16f] sm:$0xff]
      %v298 = vld [vmem:[%s246 + $0x177] sm:$0xff]
      %v299 = vld [vmem:[%s246 + $0x17f] sm:$0xff]
      %v300 = vld [vmem:[%s246 + $0x8] sm:$0xff]
      %v301 = vld [vmem:[%s246 + $0x10] sm:$0xff]
      %v302 = vld [vmem:[%s246 + $0x18] sm:$0xff]
      %v303 = vld [vmem:[%s246 + $0x20] sm:$0xff]
      %v304 = vld [vmem:[%s246 + $0x28] sm:$0xff]
      %v305 = vld [vmem:[%s246 + $0x30] sm:$0xff]
      %v306 = vld [vmem:[%s246 + $0x38] sm:$0xff]
      %v307 = vld [vmem:[%s246 + $0x40] sm:$0xff]
      %v308 = vld [vmem:[%s246 + $0x48] sm:$0xff]
      %v309 = vld [vmem:[%s246 + $0x50] sm:$0xff]
      %v310 = vld [vmem:[%s246 + $0x58] sm:$0xff]
      %v311 = vld [vmem:[%s246 + $0x60] sm:$0xff]
      %v312 = vld [vmem:[%s246 + $0x68] sm:$0xff]
      %v313 = vld [vmem:[%s246 + $0x70] sm:$0xff]
      %v314 = vld [vmem:[%s246 + $0x78] sm:$0xff]
      %v315 = vld [vmem:[%s246 + $0x80] sm:$0xff]
      %v316 = vld [vmem:[%s246 + $0x88] sm:$0xff]
      %v317 = vld [vmem:[%s246 + $0x90] sm:$0xff]
      %v318 = vld [vmem:[%s246 + $0x98] sm:$0xff]
      %v319 = vld [vmem:[%s246 + $0xa0] sm:$0xff]
      %v320 = vld [vmem:[%s246 + $0xa8] sm:$0xff]
      %v321 = vld [vmem:[%s246 + $0xb0] sm:$0xff]
      %v322 = vld [vmem:[%s246 + $0xb8] sm:$0xff]
      %v323 = vld [vmem:[%s246 + $0xc0] sm:$0xff]
      %v324 = vld [vmem:[%s246 + $0xc8] sm:$0xff]
      %v325 = vld [vmem:[%s246 + $0xd0] sm:$0xff]
      %v326 = vld [vmem:[%s246 + $0xd8] sm:$0xff]
      %v327 = vld [vmem:[%s246 + $0xe0] sm:$0xff]
      %v328 = vld [vmem:[%s246 + $0xe8] sm:$0xff]
      %v329 = vld [vmem:[%s246 + $0xf0] sm:$0xff]
      %v330 = vld [vmem:[%s246 + $0xf8] sm:$0xff]
      %v331 = vld [vmem:[%s246 + $0x100] sm:$0xff]
      %v332 = vld [vmem:[%s246 + $0x108] sm:$0xff]
      %v333 = vld [vmem:[%s246 + $0x110] sm:$0xff]
      %v334 = vld [vmem:[%s246 + $0x118] sm:$0xff]
      %v335 = vld [vmem:[%s246 + $0x120] sm:$0xff]
      %v336 = vld [vmem:[%s246 + $0x128] sm:$0xff]
      %v337 = vld [vmem:[%s246 + $0x130] sm:$0xff]
      %v338 = vld [vmem:[%s246 + $0x138] sm:$0xff]
      %v339 = vld [vmem:[%s246 + $0x140] sm:$0xff]
      %v340 = vld [vmem:[%s246 + $0x148] sm:$0xff]
      %v341 = vld [vmem:[%s246 + $0x150] sm:$0xff]
      %v342 = vld [vmem:[%s246 + $0x158] sm:$0xff]
      %v343 = vld [vmem:[%s246 + $0x160] sm:$0xff]
      %v344 = vld [vmem:[%s246 + $0x168] sm:$0xff]
      %v345 = vld [vmem:[%s246 + $0x170] sm:$0xff]
      %v346 = vld [vmem:[%s246 + $0x178] sm:$0xff]
      %v347 = vld [vmem:[%s246 + $0x180] sm:$0xff]
      %v348 = vld [vmem:[%s246 + $0x9] sm:$0xff]
      %v349 = vld [vmem:[%s246 + $0x11] sm:$0xff]
      %v350 = vld [vmem:[%s246 + $0x19] sm:$0xff]
      %v351 = vld [vmem:[%s246 + $0x21] sm:$0xff]
      %v352 = vld [vmem:[%s246 + $0x29] sm:$0xff]
      %v353 = vld [vmem:[%s246 + $0x31] sm:$0xff]
      %v354 = vld [vmem:[%s246 + $0x39] sm:$0xff]
      %v355 = vld [vmem:[%s246 + $0x41] sm:$0xff]
      %v356 = vld [vmem:[%s246 + $0x49] sm:$0xff]
      %v357 = vld [vmem:[%s246 + $0x51] sm:$0xff]
      %v358 = vld [vmem:[%s246 + $0x59] sm:$0xff]
      %v359 = vld [vmem:[%s246 + $0x61] sm:$0xff]
      %v360 = vld [vmem:[%s246 + $0x69] sm:$0xff]
      %v361 = vld [vmem:[%s246 + $0x71] sm:$0xff]
      %v362 = vld [vmem:[%s246 + $0x79] sm:$0xff]
      %v363 = vld [vmem:[%s246 + $0x81] sm:$0xff]
      %v364 = vld [vmem:[%s246 + $0x89] sm:$0xff]
      %v365 = vld [vmem:[%s246 + $0x91] sm:$0xff]
      %v366 = vld [vmem:[%s246 + $0x99] sm:$0xff]
      %v367 = vld [vmem:[%s246 + $0xa1] sm:$0xff]
      %v368 = vld [vmem:[%s246 + $0xa9] sm:$0xff]
      %v369 = vld [vmem:[%s246 + $0xb1] sm:$0xff]
      %v370 = vld [vmem:[%s246 + $0xb9] sm:$0xff]
      %v371 = vld [vmem:[%s246 + $0xc1] sm:$0xff]
      %v372 = vld [vmem:[%s246 + $0xc9] sm:$0xff]
      %v373 = vld [vmem:[%s246 + $0xd1] sm:$0xff]
      %v374 = vld [vmem:[%s246 + $0xd9] sm:$0xff]
      %v375 = vld [vmem:[%s246 + $0xe1] sm:$0xff]
      %v376 = vld [vmem:[%s246 + $0xe9] sm:$0xff]
      %v377 = vld [vmem:[%s246 + $0xf1] sm:$0xff]
      %v378 = vld [vmem:[%s246 + $0xf9] sm:$0xff]
      %v379 = vld [vmem:[%s246 + $0x101] sm:$0xff]
      %v380 = vld [vmem:[%s246 + $0x109] sm:$0xff]
      %v381 = vld [vmem:[%s246 + $0x111] sm:$0xff]
      %v382 = vld [vmem:[%s246 + $0x119] sm:$0xff]
      %v383 = vld [vmem:[%s246 + $0x121] sm:$0xff]
      %v384 = vld [vmem:[%s246 + $0x129] sm:$0xff]
      %v385 = vld [vmem:[%s246 + $0x131] sm:$0xff]
      %v386 = vld [vmem:[%s246 + $0x139] sm:$0xff]
      %v387 = vld [vmem:[%s246 + $0x141] sm:$0xff]
      %v388 = vld [vmem:[%s246 + $0x149] sm:$0xff]
      %v389 = vld [vmem:[%s246 + $0x151] sm:$0xff]
      %v390 = vld [vmem:[%s246 + $0x159] sm:$0xff]
      %v391 = vld [vmem:[%s246 + $0x161] sm:$0xff]
      %v392 = vld [vmem:[%s246 + $0x169] sm:$0xff]
      %v393 = vld [vmem:[%s246 + $0x171] sm:$0xff]
      %v394 = vld [vmem:[%s246 + $0x179] sm:$0xff]
      %v395 = vld [vmem:[%s246 + $0x181] sm:$0xff]
      %v396 = vld [vmem:[%s246 + $0x187] sm:$0xff]
      %v397 = vld [vmem:[%s246 + $0x18f] sm:$0xff]
      %v398 = vld [vmem:[%s246 + $0x197] sm:$0xff]
      %v399 = vld [vmem:[%s246 + $0x188] sm:$0xff]
      %v400 = vld [vmem:[%s246 + $0x190] sm:$0xff]
      %v401 = vld [vmem:[%s246 + $0x198] sm:$0xff]
      %v402 = vld [vmem:[%s246 + $0x189] sm:$0xff]
      %v403 = vld [vmem:[%s246 + $0x191] sm:$0xff]
      %v404 = vld [vmem:[%s246 + $0x199] sm:$0xff]
      %v405 = vld [vmem:[%s246 + $0x19f] sm:$0xff]
      %v406 = vld [vmem:[%s246 + $0x1a7] sm:$0xff]
      %v407 = vld [vmem:[%s246 + $0x1af] sm:$0xff]
      %v408 = vld [vmem:[%s246 + $0x1a0] sm:$0xff]
      %v409 = vld [vmem:[%s246 + $0x1a8] sm:$0xff]
      %v410 = vld [vmem:[%s246 + $0x1b0] sm:$0xff]
      %v411 = vld [vmem:[%s246 + $0x1a1] sm:$0xff]
      %v412 = vld [vmem:[%s246 + $0x1a9] sm:$0xff]
      %v413 = vld [vmem:[%s246 + $0x1b1] sm:$0xff]
      %462 = vrot.lane.b32.xlu0 %v300, 4
      %v463 = vpop.permute.xlu0 %462
      %464 = vrot.lane.b32.xlu0 %v301, 4
      %v465 = vpop.permute.xlu0 %464
      %466 = vrot.lane.b32.xlu0 %v302, 4
      %v467 = vpop.permute.xlu0 %466
      %468 = vrot.lane.b32.xlu0 %v303, 4
      %v469 = vpop.permute.xlu0 %468
      %470 = vrot.lane.b32.xlu0 %v304, 4
      %v471 = vpop.permute.xlu0 %470
      %472 = vrot.lane.b32.xlu0 %v305, 4
      %v473 = vpop.permute.xlu0 %472
      %474 = vrot.lane.b32.xlu0 %v306, 4
      %v475 = vpop.permute.xlu0 %474
      %476 = vrot.lane.b32.xlu0 %v307, 4
      %v477 = vpop.permute.xlu0 %476
      %478 = vrot.lane.b32.xlu0 %v308, 4
      %v479 = vpop.permute.xlu0 %478
      %480 = vrot.lane.b32.xlu0 %v309, 4
      %v481 = vpop.permute.xlu0 %480
      %482 = vrot.lane.b32.xlu0 %v310, 4
      %v483 = vpop.permute.xlu0 %482
      %484 = vrot.lane.b32.xlu0 %v311, 4
      %v485 = vpop.permute.xlu0 %484
      %486 = vrot.lane.b32.xlu0 %v312, 4
      %v487 = vpop.permute.xlu0 %486
      %488 = vrot.lane.b32.xlu0 %v313, 4
      %v489 = vpop.permute.xlu0 %488
      %490 = vrot.lane.b32.xlu0 %v314, 4
      %v491 = vpop.permute.xlu0 %490
      %492 = vrot.lane.b32.xlu0 %v315, 4
      %v493 = vpop.permute.xlu0 %492
      %494 = vrot.lane.b32.xlu0 %v316, 4
      %v495 = vpop.permute.xlu0 %494
      %496 = vrot.lane.b32.xlu0 %v317, 4
      %v497 = vpop.permute.xlu0 %496
      %498 = vrot.lane.b32.xlu0 %v318, 4
      %v499 = vpop.permute.xlu0 %498
      %500 = vrot.lane.b32.xlu0 %v319, 4
      %v501 = vpop.permute.xlu0 %500
      %502 = vrot.lane.b32.xlu0 %v320, 4
      %v503 = vpop.permute.xlu0 %502
      %504 = vrot.lane.b32.xlu0 %v321, 4
      %v505 = vpop.permute.xlu0 %504
      %506 = vrot.lane.b32.xlu0 %v322, 4
      %v507 = vpop.permute.xlu0 %506
      %508 = vrot.lane.b32.xlu0 %v323, 4
      %v509 = vpop.permute.xlu0 %508
      %510 = vrot.lane.b32.xlu0 %v324, 4
      %v511 = vpop.permute.xlu0 %510
      %512 = vrot.lane.b32.xlu0 %v325, 4
      %v513 = vpop.permute.xlu0 %512
      %514 = vrot.lane.b32.xlu0 %v326, 4
      %v515 = vpop.permute.xlu0 %514
      %516 = vrot.lane.b32.xlu0 %v327, 4
      %v517 = vpop.permute.xlu0 %516
      %518 = vrot.lane.b32.xlu0 %v328, 4
      %v519 = vpop.permute.xlu0 %518
      %520 = vrot.lane.b32.xlu0 %v329, 4
      %v521 = vpop.permute.xlu0 %520
      %522 = vrot.lane.b32.xlu0 %v330, 4
      %v523 = vpop.permute.xlu0 %522
      %524 = vrot.lane.b32.xlu0 %v331, 4
      %v525 = vpop.permute.xlu0 %524
      %526 = vrot.lane.b32.xlu0 %v332, 4
      %v527 = vpop.permute.xlu0 %526
      %528 = vrot.lane.b32.xlu0 %v333, 4
      %v529 = vpop.permute.xlu0 %528
      %530 = vrot.lane.b32.xlu0 %v334, 4
      %v531 = vpop.permute.xlu0 %530
      %532 = vrot.lane.b32.xlu0 %v335, 4
      %v533 = vpop.permute.xlu0 %532
      %534 = vrot.lane.b32.xlu0 %v336, 4
      %v535 = vpop.permute.xlu0 %534
      %536 = vrot.lane.b32.xlu0 %v337, 4
      %v537 = vpop.permute.xlu0 %536
      %538 = vrot.lane.b32.xlu0 %v338, 4
      %v539 = vpop.permute.xlu0 %538
      %540 = vrot.lane.b32.xlu0 %v339, 4
      %v541 = vpop.permute.xlu0 %540
      %542 = vrot.lane.b32.xlu0 %v340, 4
      %v543 = vpop.permute.xlu0 %542
      %544 = vrot.lane.b32.xlu0 %v341, 4
      %v545 = vpop.permute.xlu0 %544
      %546 = vrot.lane.b32.xlu0 %v342, 4
      %v547 = vpop.permute.xlu0 %546
      %548 = vrot.lane.b32.xlu0 %v343, 4
      %v549 = vpop.permute.xlu0 %548
      %550 = vrot.lane.b32.xlu0 %v344, 4
      %v551 = vpop.permute.xlu0 %550
      %552 = vrot.lane.b32.xlu0 %v345, 4
      %v553 = vpop.permute.xlu0 %552
      %554 = vrot.lane.b32.xlu0 %v346, 4
      %v555 = vpop.permute.xlu0 %554
      %556 = vrot.lane.b32.xlu0 %v347, 4
      %v557 = vpop.permute.xlu0 %556
      %654 = vrot.lane.b32.xlu0 %v348, 8
      %v655 = vpop.permute.xlu0 %654
      %656 = vrot.lane.b32.xlu0 %v349, 8
      %v657 = vpop.permute.xlu0 %656
      %658 = vrot.lane.b32.xlu0 %v350, 8
      %v659 = vpop.permute.xlu0 %658
      %660 = vrot.lane.b32.xlu0 %v351, 8
      %v661 = vpop.permute.xlu0 %660
      %662 = vrot.lane.b32.xlu0 %v352, 8
      %v663 = vpop.permute.xlu0 %662
      %664 = vrot.lane.b32.xlu0 %v353, 8
      %v665 = vpop.permute.xlu0 %664
      %666 = vrot.lane.b32.xlu0 %v354, 8
      %v667 = vpop.permute.xlu0 %666
      %668 = vrot.lane.b32.xlu0 %v355, 8
      %v669 = vpop.permute.xlu0 %668
      %670 = vrot.lane.b32.xlu0 %v356, 8
      %v671 = vpop.permute.xlu0 %670
      %672 = vrot.lane.b32.xlu0 %v357, 8
      %v673 = vpop.permute.xlu0 %672
      %674 = vrot.lane.b32.xlu0 %v358, 8
      %v675 = vpop.permute.xlu0 %674
      %676 = vrot.lane.b32.xlu0 %v359, 8
      %v677 = vpop.permute.xlu0 %676
      %678 = vrot.lane.b32.xlu0 %v360, 8
      %v679 = vpop.permute.xlu0 %678
      %680 = vrot.lane.b32.xlu0 %v361, 8
      %v681 = vpop.permute.xlu0 %680
      %682 = vrot.lane.b32.xlu0 %v362, 8
      %v683 = vpop.permute.xlu0 %682
      %684 = vrot.lane.b32.xlu0 %v363, 8
      %v685 = vpop.permute.xlu0 %684
      %686 = vrot.lane.b32.xlu0 %v364, 8
      %v687 = vpop.permute.xlu0 %686
      %688 = vrot.lane.b32.xlu0 %v365, 8
      %v689 = vpop.permute.xlu0 %688
      %690 = vrot.lane.b32.xlu0 %v366, 8
      %v691 = vpop.permute.xlu0 %690
      %692 = vrot.lane.b32.xlu0 %v367, 8
      %v693 = vpop.permute.xlu0 %692
      %694 = vrot.lane.b32.xlu0 %v368, 8
      %v695 = vpop.permute.xlu0 %694
      %696 = vrot.lane.b32.xlu0 %v369, 8
      %v697 = vpop.permute.xlu0 %696
      %698 = vrot.lane.b32.xlu0 %v370, 8
      %v699 = vpop.permute.xlu0 %698
      %700 = vrot.lane.b32.xlu0 %v371, 8
      %v701 = vpop.permute.xlu0 %700
      %702 = vrot.lane.b32.xlu0 %v372, 8
      %v703 = vpop.permute.xlu0 %702
      %704 = vrot.lane.b32.xlu0 %v373, 8
      %v705 = vpop.permute.xlu0 %704
      %706 = vrot.lane.b32.xlu0 %v374, 8
      %v707 = vpop.permute.xlu0 %706
      %708 = vrot.lane.b32.xlu0 %v375, 8
      %v709 = vpop.permute.xlu0 %708
      %710 = vrot.lane.b32.xlu0 %v376, 8
      %v711 = vpop.permute.xlu0 %710
      %712 = vrot.lane.b32.xlu0 %v377, 8
      %v713 = vpop.permute.xlu0 %712
      %714 = vrot.lane.b32.xlu0 %v378, 8
      %v715 = vpop.permute.xlu0 %714
      %716 = vrot.lane.b32.xlu0 %v379, 8
      %v717 = vpop.permute.xlu0 %716
      %718 = vrot.lane.b32.xlu0 %v380, 8
      %v719 = vpop.permute.xlu0 %718
      %720 = vrot.lane.b32.xlu0 %v381, 8
      %v721 = vpop.permute.xlu0 %720
      %722 = vrot.lane.b32.xlu0 %v382, 8
      %v723 = vpop.permute.xlu0 %722
      %724 = vrot.lane.b32.xlu0 %v383, 8
      %v725 = vpop.permute.xlu0 %724
      %726 = vrot.lane.b32.xlu0 %v384, 8
      %v727 = vpop.permute.xlu0 %726
      %728 = vrot.lane.b32.xlu0 %v385, 8
      %v729 = vpop.permute.xlu0 %728
      %730 = vrot.lane.b32.xlu0 %v386, 8
      %v731 = vpop.permute.xlu0 %730
      %732 = vrot.lane.b32.xlu0 %v387, 8
      %v733 = vpop.permute.xlu0 %732
      %734 = vrot.lane.b32.xlu0 %v388, 8
      %v735 = vpop.permute.xlu0 %734
      %736 = vrot.lane.b32.xlu0 %v389, 8
      %v737 = vpop.permute.xlu0 %736
      %738 = vrot.lane.b32.xlu0 %v390, 8
      %v739 = vpop.permute.xlu0 %738
      %740 = vrot.lane.b32.xlu0 %v391, 8
      %v741 = vpop.permute.xlu0 %740
      %742 = vrot.lane.b32.xlu0 %v392, 8
      %v743 = vpop.permute.xlu0 %742
      %744 = vrot.lane.b32.xlu0 %v393, 8
      %v745 = vpop.permute.xlu0 %744
      %746 = vrot.lane.b32.xlu0 %v394, 8
      %v747 = vpop.permute.xlu0 %746
      %748 = vrot.lane.b32.xlu0 %v395, 8
      %v749 = vpop.permute.xlu0 %748
      %846 = vrot.lane.b32.xlu0 %v255, 12
      %v847 = vpop.permute.xlu0 %846
      %848 = vrot.lane.b32.xlu0 %v256, 12
      %v849 = vpop.permute.xlu0 %848
      %850 = vrot.lane.b32.xlu0 %v257, 12
      %v851 = vpop.permute.xlu0 %850
      %852 = vrot.lane.b32.xlu0 %v258, 12
      %v853 = vpop.permute.xlu0 %852
      %854 = vrot.lane.b32.xlu0 %v259, 12
      %v855 = vpop.permute.xlu0 %854
      %856 = vrot.lane.b32.xlu0 %v260, 12
      %v857 = vpop.permute.xlu0 %856
      %858 = vrot.lane.b32.xlu0 %v261, 12
      %v859 = vpop.permute.xlu0 %858
      %860 = vrot.lane.b32.xlu0 %v262, 12
      %v861 = vpop.permute.xlu0 %860
      %862 = vrot.lane.b32.xlu0 %v263, 12
      %v863 = vpop.permute.xlu0 %862
      %864 = vrot.lane.b32.xlu0 %v264, 12
      %v865 = vpop.permute.xlu0 %864
      %866 = vrot.lane.b32.xlu0 %v265, 12
      %v867 = vpop.permute.xlu0 %866
      %868 = vrot.lane.b32.xlu0 %v266, 12
      %v869 = vpop.permute.xlu0 %868
      %870 = vrot.lane.b32.xlu0 %v267, 12
      %v871 = vpop.permute.xlu0 %870
      %872 = vrot.lane.b32.xlu0 %v268, 12
      %v873 = vpop.permute.xlu0 %872
      %874 = vrot.lane.b32.xlu0 %v269, 12
      %v875 = vpop.permute.xlu0 %874
      %876 = vrot.lane.b32.xlu0 %v270, 12
      %v877 = vpop.permute.xlu0 %876
      %878 = vrot.lane.b32.xlu0 %v271, 12
      %v879 = vpop.permute.xlu0 %878
      %880 = vrot.lane.b32.xlu0 %v272, 12
      %v881 = vpop.permute.xlu0 %880
      %882 = vrot.lane.b32.xlu0 %v273, 12
      %v883 = vpop.permute.xlu0 %882
      %884 = vrot.lane.b32.xlu0 %v274, 12
      %v885 = vpop.permute.xlu0 %884
      %886 = vrot.lane.b32.xlu0 %v275, 12
      %v887 = vpop.permute.xlu0 %886
      %888 = vrot.lane.b32.xlu0 %v276, 12
      %v889 = vpop.permute.xlu0 %888
      %890 = vrot.lane.b32.xlu0 %v277, 12
      %v891 = vpop.permute.xlu0 %890
      %892 = vrot.lane.b32.xlu0 %v278, 12
      %v893 = vpop.permute.xlu0 %892
      %894 = vrot.lane.b32.xlu0 %v279, 12
      %v895 = vpop.permute.xlu0 %894
      %896 = vrot.lane.b32.xlu0 %v280, 12
      %v897 = vpop.permute.xlu0 %896
      %898 = vrot.lane.b32.xlu0 %v281, 12
      %v899 = vpop.permute.xlu0 %898
      %900 = vrot.lane.b32.xlu0 %v282, 12
      %v901 = vpop.permute.xlu0 %900
      %902 = vrot.lane.b32.xlu0 %v283, 12
      %v903 = vpop.permute.xlu0 %902
      %904 = vrot.lane.b32.xlu0 %v284, 12
      %v905 = vpop.permute.xlu0 %904
      %906 = vrot.lane.b32.xlu0 %v285, 12
      %v907 = vpop.permute.xlu0 %906
      %908 = vrot.lane.b32.xlu0 %v286, 12
      %v909 = vpop.permute.xlu0 %908
      %910 = vrot.lane.b32.xlu0 %v287, 12
      %v911 = vpop.permute.xlu0 %910
      %912 = vrot.lane.b32.xlu0 %v288, 12
      %v913 = vpop.permute.xlu0 %912
      %914 = vrot.lane.b32.xlu0 %v289, 12
      %v915 = vpop.permute.xlu0 %914
      %916 = vrot.lane.b32.xlu0 %v290, 12
      %v917 = vpop.permute.xlu0 %916
      %918 = vrot.lane.b32.xlu0 %v291, 12
      %v919 = vpop.permute.xlu0 %918
      %920 = vrot.lane.b32.xlu0 %v292, 12
      %v921 = vpop.permute.xlu0 %920
      %922 = vrot.lane.b32.xlu0 %v293, 12
      %v923 = vpop.permute.xlu0 %922
      %924 = vrot.lane.b32.xlu0 %v294, 12
      %v925 = vpop.permute.xlu0 %924
      %926 = vrot.lane.b32.xlu0 %v295, 12
      %v927 = vpop.permute.xlu0 %926
      %928 = vrot.lane.b32.xlu0 %v296, 12
      %v929 = vpop.permute.xlu0 %928
      %930 = vrot.lane.b32.xlu0 %v297, 12
      %v931 = vpop.permute.xlu0 %930
      %932 = vrot.lane.b32.xlu0 %v298, 12
      %v933 = vpop.permute.xlu0 %932
      %934 = vrot.lane.b32.xlu0 %v299, 12
      %v935 = vpop.permute.xlu0 %934
      %936 = vrot.lane.b32.xlu0 %v396, 12
      %v937 = vpop.permute.xlu0 %936
      %938 = vrot.lane.b32.xlu0 %v397, 12
      %v939 = vpop.permute.xlu0 %938
      %940 = vrot.lane.b32.xlu0 %v398, 12
      %v941 = vpop.permute.xlu0 %940
      %993 = vrot.lane.b32.xlu0 %v303, 16
      %v994 = vpop.permute.xlu0 %993
      %995 = vrot.lane.b32.xlu0 %v304, 16
      %v996 = vpop.permute.xlu0 %995
      %997 = vrot.lane.b32.xlu0 %v305, 16
      %v998 = vpop.permute.xlu0 %997
      %999 = vrot.lane.b32.xlu0 %v306, 16
      %v1000 = vpop.permute.xlu0 %999
      %1001 = vrot.lane.b32.xlu0 %v307, 16
      %v1002 = vpop.permute.xlu0 %1001
      %1003 = vrot.lane.b32.xlu0 %v308, 16
      %v1004 = vpop.permute.xlu0 %1003
      %1005 = vrot.lane.b32.xlu0 %v309, 16
      %v1006 = vpop.permute.xlu0 %1005
      %1007 = vrot.lane.b32.xlu0 %v310, 16
      %v1008 = vpop.permute.xlu0 %1007
      %1009 = vrot.lane.b32.xlu0 %v311, 16
      %v1010 = vpop.permute.xlu0 %1009
      %1011 = vrot.lane.b32.xlu0 %v312, 16
      %v1012 = vpop.permute.xlu0 %1011
      %1013 = vrot.lane.b32.xlu0 %v313, 16
      %v1014 = vpop.permute.xlu0 %1013
      %1015 = vrot.lane.b32.xlu0 %v314, 16
      %v1016 = vpop.permute.xlu0 %1015
      %1017 = vrot.lane.b32.xlu0 %v315, 16
      %v1018 = vpop.permute.xlu0 %1017
      %1019 = vrot.lane.b32.xlu0 %v316, 16
      %v1020 = vpop.permute.xlu0 %1019
      %1021 = vrot.lane.b32.xlu0 %v317, 16
      %v1022 = vpop.permute.xlu0 %1021
      %1023 = vrot.lane.b32.xlu0 %v318, 16
      %v1024 = vpop.permute.xlu0 %1023
      %1025 = vrot.lane.b32.xlu0 %v319, 16
      %v1026 = vpop.permute.xlu0 %1025
      %1027 = vrot.lane.b32.xlu0 %v320, 16
      %v1028 = vpop.permute.xlu0 %1027
      %1029 = vrot.lane.b32.xlu0 %v321, 16
      %v1030 = vpop.permute.xlu0 %1029
      %1031 = vrot.lane.b32.xlu0 %v322, 16
      %v1032 = vpop.permute.xlu0 %1031
      %1033 = vrot.lane.b32.xlu0 %v323, 16
      %v1034 = vpop.permute.xlu0 %1033
      %1035 = vrot.lane.b32.xlu0 %v324, 16
      %v1036 = vpop.permute.xlu0 %1035
      %1037 = vrot.lane.b32.xlu0 %v325, 16
      %v1038 = vpop.permute.xlu0 %1037
      %1039 = vrot.lane.b32.xlu0 %v326, 16
      %v1040 = vpop.permute.xlu0 %1039
      %1041 = vrot.lane.b32.xlu0 %v327, 16
      %v1042 = vpop.permute.xlu0 %1041
      %1043 = vrot.lane.b32.xlu0 %v328, 16
      %v1044 = vpop.permute.xlu0 %1043
      %1045 = vrot.lane.b32.xlu0 %v329, 16
      %v1046 = vpop.permute.xlu0 %1045
      %1047 = vrot.lane.b32.xlu0 %v330, 16
      %v1048 = vpop.permute.xlu0 %1047
      %1049 = vrot.lane.b32.xlu0 %v331, 16
      %v1050 = vpop.permute.xlu0 %1049
      %1051 = vrot.lane.b32.xlu0 %v332, 16
      %v1052 = vpop.permute.xlu0 %1051
      %1053 = vrot.lane.b32.xlu0 %v333, 16
      %v1054 = vpop.permute.xlu0 %1053
      %1055 = vrot.lane.b32.xlu0 %v334, 16
      %v1056 = vpop.permute.xlu0 %1055
      %1057 = vrot.lane.b32.xlu0 %v335, 16
      %v1058 = vpop.permute.xlu0 %1057
      %1059 = vrot.lane.b32.xlu0 %v336, 16
      %v1060 = vpop.permute.xlu0 %1059
      %1061 = vrot.lane.b32.xlu0 %v337, 16
      %v1062 = vpop.permute.xlu0 %1061
      %1063 = vrot.lane.b32.xlu0 %v338, 16
      %v1064 = vpop.permute.xlu0 %1063
      %1065 = vrot.lane.b32.xlu0 %v339, 16
      %v1066 = vpop.permute.xlu0 %1065
      %1067 = vrot.lane.b32.xlu0 %v340, 16
      %v1068 = vpop.permute.xlu0 %1067
      %1069 = vrot.lane.b32.xlu0 %v341, 16
      %v1070 = vpop.permute.xlu0 %1069
      %1071 = vrot.lane.b32.xlu0 %v342, 16
      %v1072 = vpop.permute.xlu0 %1071
      %1073 = vrot.lane.b32.xlu0 %v343, 16
      %v1074 = vpop.permute.xlu0 %1073
      %1075 = vrot.lane.b32.xlu0 %v344, 16
      %v1076 = vpop.permute.xlu0 %1075
      %1077 = vrot.lane.b32.xlu0 %v345, 16
      %v1078 = vpop.permute.xlu0 %1077
      %1079 = vrot.lane.b32.xlu0 %v346, 16
      %v1080 = vpop.permute.xlu0 %1079
      %1081 = vrot.lane.b32.xlu0 %v347, 16
      %v1082 = vpop.permute.xlu0 %1081
      %1083 = vrot.lane.b32.xlu0 %v399, 16
      %v1084 = vpop.permute.xlu0 %1083
      %1085 = vrot.lane.b32.xlu0 %v400, 16
      %v1086 = vpop.permute.xlu0 %1085
      %1087 = vrot.lane.b32.xlu0 %v401, 16
      %v1088 = vpop.permute.xlu0 %1087
      %1140 = vrot.lane.b32.xlu0 %v351, 20
      %v1141 = vpop.permute.xlu0 %1140
      %1142 = vrot.lane.b32.xlu0 %v352, 20
      %v1143 = vpop.permute.xlu0 %1142
      %1144 = vrot.lane.b32.xlu0 %v353, 20
      %v1145 = vpop.permute.xlu0 %1144
      %1146 = vrot.lane.b32.xlu0 %v354, 20
      %v1147 = vpop.permute.xlu0 %1146
      %1148 = vrot.lane.b32.xlu0 %v355, 20
      %v1149 = vpop.permute.xlu0 %1148
      %1150 = vrot.lane.b32.xlu0 %v356, 20
      %v1151 = vpop.permute.xlu0 %1150
      %1152 = vrot.lane.b32.xlu0 %v357, 20
      %v1153 = vpop.permute.xlu0 %1152
      %1154 = vrot.lane.b32.xlu0 %v358, 20
      %v1155 = vpop.permute.xlu0 %1154
      %1156 = vrot.lane.b32.xlu0 %v359, 20
      %v1157 = vpop.permute.xlu0 %1156
      %1158 = vrot.lane.b32.xlu0 %v360, 20
      %v1159 = vpop.permute.xlu0 %1158
      %1160 = vrot.lane.b32.xlu0 %v361, 20
      %v1161 = vpop.permute.xlu0 %1160
      %1162 = vrot.lane.b32.xlu0 %v362, 20
      %v1163 = vpop.permute.xlu0 %1162
      %1164 = vrot.lane.b32.xlu0 %v363, 20
      %v1165 = vpop.permute.xlu0 %1164
      %1166 = vrot.lane.b32.xlu0 %v364, 20
      %v1167 = vpop.permute.xlu0 %1166
      %1168 = vrot.lane.b32.xlu0 %v365, 20
      %v1169 = vpop.permute.xlu0 %1168
      %1170 = vrot.lane.b32.xlu0 %v366, 20
      %v1171 = vpop.permute.xlu0 %1170
      %1172 = vrot.lane.b32.xlu0 %v367, 20
      %v1173 = vpop.permute.xlu0 %1172
      %1174 = vrot.lane.b32.xlu0 %v368, 20
      %v1175 = vpop.permute.xlu0 %1174
      %1176 = vrot.lane.b32.xlu0 %v369, 20
      %v1177 = vpop.permute.xlu0 %1176
      %1178 = vrot.lane.b32.xlu0 %v370, 20
      %v1179 = vpop.permute.xlu0 %1178
      %1180 = vrot.lane.b32.xlu0 %v371, 20
      %v1181 = vpop.permute.xlu0 %1180
      %1182 = vrot.lane.b32.xlu0 %v372, 20
      %v1183 = vpop.permute.xlu0 %1182
      %1184 = vrot.lane.b32.xlu0 %v373, 20
      %v1185 = vpop.permute.xlu0 %1184
      %1186 = vrot.lane.b32.xlu0 %v374, 20
      %v1187 = vpop.permute.xlu0 %1186
      %1188 = vrot.lane.b32.xlu0 %v375, 20
      %v1189 = vpop.permute.xlu0 %1188
      %1190 = vrot.lane.b32.xlu0 %v376, 20
      %v1191 = vpop.permute.xlu0 %1190
      %1192 = vrot.lane.b32.xlu0 %v377, 20
      %v1193 = vpop.permute.xlu0 %1192
      %1194 = vrot.lane.b32.xlu0 %v378, 20
      %v1195 = vpop.permute.xlu0 %1194
      %1196 = vrot.lane.b32.xlu0 %v379, 20
      %v1197 = vpop.permute.xlu0 %1196
      %1198 = vrot.lane.b32.xlu0 %v380, 20
      %v1199 = vpop.permute.xlu0 %1198
      %1200 = vrot.lane.b32.xlu0 %v381, 20
      %v1201 = vpop.permute.xlu0 %1200
      %1202 = vrot.lane.b32.xlu0 %v382, 20
      %v1203 = vpop.permute.xlu0 %1202
      %1204 = vrot.lane.b32.xlu0 %v383, 20
      %v1205 = vpop.permute.xlu0 %1204
      %1206 = vrot.lane.b32.xlu0 %v384, 20
      %v1207 = vpop.permute.xlu0 %1206
      %1208 = vrot.lane.b32.xlu0 %v385, 20
      %v1209 = vpop.permute.xlu0 %1208
      %1210 = vrot.lane.b32.xlu0 %v386, 20
      %v1211 = vpop.permute.xlu0 %1210
      %1212 = vrot.lane.b32.xlu0 %v387, 20
      %v1213 = vpop.permute.xlu0 %1212
      %1214 = vrot.lane.b32.xlu0 %v388, 20
      %v1215 = vpop.permute.xlu0 %1214
      %1216 = vrot.lane.b32.xlu0 %v389, 20
      %v1217 = vpop.permute.xlu0 %1216
      %1218 = vrot.lane.b32.xlu0 %v390, 20
      %v1219 = vpop.permute.xlu0 %1218
      %1220 = vrot.lane.b32.xlu0 %v391, 20
      %v1221 = vpop.permute.xlu0 %1220
      %1222 = vrot.lane.b32.xlu0 %v392, 20
      %v1223 = vpop.permute.xlu0 %1222
      %1224 = vrot.lane.b32.xlu0 %v393, 20
      %v1225 = vpop.permute.xlu0 %1224
      %1226 = vrot.lane.b32.xlu0 %v394, 20
      %v1227 = vpop.permute.xlu0 %1226
      %1228 = vrot.lane.b32.xlu0 %v395, 20
      %v1229 = vpop.permute.xlu0 %1228
      %1230 = vrot.lane.b32.xlu0 %v402, 20
      %v1231 = vpop.permute.xlu0 %1230
      %1232 = vrot.lane.b32.xlu0 %v403, 20
      %v1233 = vpop.permute.xlu0 %1232
      %1234 = vrot.lane.b32.xlu0 %v404, 20
      %v1235 = vpop.permute.xlu0 %1234
      %1287 = vrot.lane.b32.xlu0 %v258, 24
      %v1288 = vpop.permute.xlu0 %1287
      %1289 = vrot.lane.b32.xlu0 %v259, 24
      %v1290 = vpop.permute.xlu0 %1289
      %1291 = vrot.lane.b32.xlu0 %v260, 24
      %v1292 = vpop.permute.xlu0 %1291
      %1293 = vrot.lane.b32.xlu0 %v261, 24
      %v1294 = vpop.permute.xlu0 %1293
      %1295 = vrot.lane.b32.xlu0 %v262, 24
      %v1296 = vpop.permute.xlu0 %1295
      %1297 = vrot.lane.b32.xlu0 %v263, 24
      %v1298 = vpop.permute.xlu0 %1297
      %1299 = vrot.lane.b32.xlu0 %v264, 24
      %v1300 = vpop.permute.xlu0 %1299
      %1301 = vrot.lane.b32.xlu0 %v265, 24
      %v1302 = vpop.permute.xlu0 %1301
      %1303 = vrot.lane.b32.xlu0 %v266, 24
      %v1304 = vpop.permute.xlu0 %1303
      %1305 = vrot.lane.b32.xlu0 %v267, 24
      %v1306 = vpop.permute.xlu0 %1305
      %1307 = vrot.lane.b32.xlu0 %v268, 24
      %v1308 = vpop.permute.xlu0 %1307
      %1309 = vrot.lane.b32.xlu0 %v269, 24
      %v1310 = vpop.permute.xlu0 %1309
      %1311 = vrot.lane.b32.xlu0 %v270, 24
      %v1312 = vpop.permute.xlu0 %1311
      %1313 = vrot.lane.b32.xlu0 %v271, 24
      %v1314 = vpop.permute.xlu0 %1313
      %1315 = vrot.lane.b32.xlu0 %v272, 24
      %v1316 = vpop.permute.xlu0 %1315
      %1317 = vrot.lane.b32.xlu0 %v273, 24
      %v1318 = vpop.permute.xlu0 %1317
      %1319 = vrot.lane.b32.xlu0 %v274, 24
      %v1320 = vpop.permute.xlu0 %1319
      %1321 = vrot.lane.b32.xlu0 %v275, 24
      %v1322 = vpop.permute.xlu0 %1321
      %1323 = vrot.lane.b32.xlu0 %v276, 24
      %v1324 = vpop.permute.xlu0 %1323
      %1325 = vrot.lane.b32.xlu0 %v277, 24
      %v1326 = vpop.permute.xlu0 %1325
      %1327 = vrot.lane.b32.xlu0 %v278, 24
      %v1328 = vpop.permute.xlu0 %1327
      %1329 = vrot.lane.b32.xlu0 %v279, 24
      %v1330 = vpop.permute.xlu0 %1329
      %1331 = vrot.lane.b32.xlu0 %v280, 24
      %v1332 = vpop.permute.xlu0 %1331
      %1333 = vrot.lane.b32.xlu0 %v281, 24
      %v1334 = vpop.permute.xlu0 %1333
      %1335 = vrot.lane.b32.xlu0 %v282, 24
      %v1336 = vpop.permute.xlu0 %1335
      %1337 = vrot.lane.b32.xlu0 %v283, 24
      %v1338 = vpop.permute.xlu0 %1337
      %1339 = vrot.lane.b32.xlu0 %v284, 24
      %v1340 = vpop.permute.xlu0 %1339
      %1341 = vrot.lane.b32.xlu0 %v285, 24
      %v1342 = vpop.permute.xlu0 %1341
      %1343 = vrot.lane.b32.xlu0 %v286, 24
      %v1344 = vpop.permute.xlu0 %1343
      %1345 = vrot.lane.b32.xlu0 %v287, 24
      %v1346 = vpop.permute.xlu0 %1345
      %1347 = vrot.lane.b32.xlu0 %v288, 24
      %v1348 = vpop.permute.xlu0 %1347
      %1349 = vrot.lane.b32.xlu0 %v289, 24
      %v1350 = vpop.permute.xlu0 %1349
      %1351 = vrot.lane.b32.xlu0 %v290, 24
      %v1352 = vpop.permute.xlu0 %1351
      %1353 = vrot.lane.b32.xlu0 %v291, 24
      %v1354 = vpop.permute.xlu0 %1353
      %1355 = vrot.lane.b32.xlu0 %v292, 24
      %v1356 = vpop.permute.xlu0 %1355
      %1357 = vrot.lane.b32.xlu0 %v293, 24
      %v1358 = vpop.permute.xlu0 %1357
      %1359 = vrot.lane.b32.xlu0 %v294, 24
      %v1360 = vpop.permute.xlu0 %1359
      %1361 = vrot.lane.b32.xlu0 %v295, 24
      %v1362 = vpop.permute.xlu0 %1361
      %1363 = vrot.lane.b32.xlu0 %v296, 24
      %v1364 = vpop.permute.xlu0 %1363
      %1365 = vrot.lane.b32.xlu0 %v297, 24
      %v1366 = vpop.permute.xlu0 %1365
      %1367 = vrot.lane.b32.xlu0 %v298, 24
      %v1368 = vpop.permute.xlu0 %1367
      %1369 = vrot.lane.b32.xlu0 %v299, 24
      %v1370 = vpop.permute.xlu0 %1369
      %1371 = vrot.lane.b32.xlu0 %v396, 24
      %v1372 = vpop.permute.xlu0 %1371
      %1373 = vrot.lane.b32.xlu0 %v397, 24
      %v1374 = vpop.permute.xlu0 %1373
      %1375 = vrot.lane.b32.xlu0 %v398, 24
      %v1376 = vpop.permute.xlu0 %1375
      %1377 = vrot.lane.b32.xlu0 %v405, 24
      %v1378 = vpop.permute.xlu0 %1377
      %1379 = vrot.lane.b32.xlu0 %v406, 24
      %v1380 = vpop.permute.xlu0 %1379
      %1381 = vrot.lane.b32.xlu0 %v407, 24
      %v1382 = vpop.permute.xlu0 %1381
      %1434 = vrot.lane.b32.xlu0 %v306, 28
      %v1435 = vpop.permute.xlu0 %1434
      %1436 = vrot.lane.b32.xlu0 %v307, 28
      %v1437 = vpop.permute.xlu0 %1436
      %1438 = vrot.lane.b32.xlu0 %v308, 28
      %v1439 = vpop.permute.xlu0 %1438
      %1440 = vrot.lane.b32.xlu0 %v309, 28
      %v1441 = vpop.permute.xlu0 %1440
      %1442 = vrot.lane.b32.xlu0 %v310, 28
      %v1443 = vpop.permute.xlu0 %1442
      %1444 = vrot.lane.b32.xlu0 %v311, 28
      %v1445 = vpop.permute.xlu0 %1444
      %1446 = vrot.lane.b32.xlu0 %v312, 28
      %v1447 = vpop.permute.xlu0 %1446
      %1448 = vrot.lane.b32.xlu0 %v313, 28
      %v1449 = vpop.permute.xlu0 %1448
      %1450 = vrot.lane.b32.xlu0 %v314, 28
      %v1451 = vpop.permute.xlu0 %1450
      %1452 = vrot.lane.b32.xlu0 %v315, 28
      %v1453 = vpop.permute.xlu0 %1452
      %1454 = vrot.lane.b32.xlu0 %v316, 28
      %v1455 = vpop.permute.xlu0 %1454
      %1456 = vrot.lane.b32.xlu0 %v317, 28
      %v1457 = vpop.permute.xlu0 %1456
      %1458 = vrot.lane.b32.xlu0 %v318, 28
      %v1459 = vpop.permute.xlu0 %1458
      %1460 = vrot.lane.b32.xlu0 %v319, 28
      %v1461 = vpop.permute.xlu0 %1460
      %1462 = vrot.lane.b32.xlu0 %v320, 28
      %v1463 = vpop.permute.xlu0 %1462
      %1464 = vrot.lane.b32.xlu0 %v321, 28
      %v1465 = vpop.permute.xlu0 %1464
      %1466 = vrot.lane.b32.xlu0 %v322, 28
      %v1467 = vpop.permute.xlu0 %1466
      %1468 = vrot.lane.b32.xlu0 %v323, 28
      %v1469 = vpop.permute.xlu0 %1468
      %1470 = vrot.lane.b32.xlu0 %v324, 28
      %v1471 = vpop.permute.xlu0 %1470
      %1472 = vrot.lane.b32.xlu0 %v325, 28
      %v1473 = vpop.permute.xlu0 %1472
      %1474 = vrot.lane.b32.xlu0 %v326, 28
      %v1475 = vpop.permute.xlu0 %1474
      %1476 = vrot.lane.b32.xlu0 %v327, 28
      %v1477 = vpop.permute.xlu0 %1476
      %1478 = vrot.lane.b32.xlu0 %v328, 28
      %v1479 = vpop.permute.xlu0 %1478
      %1480 = vrot.lane.b32.xlu0 %v329, 28
      %v1481 = vpop.permute.xlu0 %1480
      %1482 = vrot.lane.b32.xlu0 %v330, 28
      %v1483 = vpop.permute.xlu0 %1482
      %1484 = vrot.lane.b32.xlu0 %v331, 28
      %v1485 = vpop.permute.xlu0 %1484
      %1486 = vrot.lane.b32.xlu0 %v332, 28
      %v1487 = vpop.permute.xlu0 %1486
      %1488 = vrot.lane.b32.xlu0 %v333, 28
      %v1489 = vpop.permute.xlu0 %1488
      %1490 = vrot.lane.b32.xlu0 %v334, 28
      %v1491 = vpop.permute.xlu0 %1490
      %1492 = vrot.lane.b32.xlu0 %v335, 28
      %v1493 = vpop.permute.xlu0 %1492
      %1494 = vrot.lane.b32.xlu0 %v336, 28
      %v1495 = vpop.permute.xlu0 %1494
      %1496 = vrot.lane.b32.xlu0 %v337, 28
      %v1497 = vpop.permute.xlu0 %1496
      %1498 = vrot.lane.b32.xlu0 %v338, 28
      %v1499 = vpop.permute.xlu0 %1498
      %1500 = vrot.lane.b32.xlu0 %v339, 28
      %v1501 = vpop.permute.xlu0 %1500
      %1502 = vrot.lane.b32.xlu0 %v340, 28
      %v1503 = vpop.permute.xlu0 %1502
      %1504 = vrot.lane.b32.xlu0 %v341, 28
      %v1505 = vpop.permute.xlu0 %1504
      %1506 = vrot.lane.b32.xlu0 %v342, 28
      %v1507 = vpop.permute.xlu0 %1506
      %1508 = vrot.lane.b32.xlu0 %v343, 28
      %v1509 = vpop.permute.xlu0 %1508
      %1510 = vrot.lane.b32.xlu0 %v344, 28
      %v1511 = vpop.permute.xlu0 %1510
      %1512 = vrot.lane.b32.xlu0 %v345, 28
      %v1513 = vpop.permute.xlu0 %1512
      %1514 = vrot.lane.b32.xlu0 %v346, 28
      %v1515 = vpop.permute.xlu0 %1514
      %1516 = vrot.lane.b32.xlu0 %v347, 28
      %v1517 = vpop.permute.xlu0 %1516
      %1518 = vrot.lane.b32.xlu0 %v399, 28
      %v1519 = vpop.permute.xlu0 %1518
      %1520 = vrot.lane.b32.xlu0 %v400, 28
      %v1521 = vpop.permute.xlu0 %1520
      %1522 = vrot.lane.b32.xlu0 %v401, 28
      %v1523 = vpop.permute.xlu0 %1522
      %1524 = vrot.lane.b32.xlu0 %v408, 28
      %v1525 = vpop.permute.xlu0 %1524
      %1526 = vrot.lane.b32.xlu0 %v409, 28
      %v1527 = vpop.permute.xlu0 %1526
      %1528 = vrot.lane.b32.xlu0 %v410, 28
      %v1529 = vpop.permute.xlu0 %1528
      %1581 = vrot.lane.b32.xlu0 %v354, 32
      %v1582 = vpop.permute.xlu0 %1581
      %1583 = vrot.lane.b32.xlu0 %v355, 32
      %v1584 = vpop.permute.xlu0 %1583
      %1585 = vrot.lane.b32.xlu0 %v356, 32
      %v1586 = vpop.permute.xlu0 %1585
      %1587 = vrot.lane.b32.xlu0 %v357, 32
      %v1588 = vpop.permute.xlu0 %1587
      %1589 = vrot.lane.b32.xlu0 %v358, 32
      %v1590 = vpop.permute.xlu0 %1589
      %1591 = vrot.lane.b32.xlu0 %v359, 32
      %v1592 = vpop.permute.xlu0 %1591
      %1593 = vrot.lane.b32.xlu0 %v360, 32
      %v1594 = vpop.permute.xlu0 %1593
      %1595 = vrot.lane.b32.xlu0 %v361, 32
      %v1596 = vpop.permute.xlu0 %1595
      %1597 = vrot.lane.b32.xlu0 %v362, 32
      %v1598 = vpop.permute.xlu0 %1597
      %1599 = vrot.lane.b32.xlu0 %v363, 32
      %v1600 = vpop.permute.xlu0 %1599
      %1601 = vrot.lane.b32.xlu0 %v364, 32
      %v1602 = vpop.permute.xlu0 %1601
      %1603 = vrot.lane.b32.xlu0 %v365, 32
      %v1604 = vpop.permute.xlu0 %1603
      %1605 = vrot.lane.b32.xlu0 %v366, 32
      %v1606 = vpop.permute.xlu0 %1605
      %1607 = vrot.lane.b32.xlu0 %v367, 32
      %v1608 = vpop.permute.xlu0 %1607
      %1609 = vrot.lane.b32.xlu0 %v368, 32
      %v1610 = vpop.permute.xlu0 %1609
      %1611 = vrot.lane.b32.xlu0 %v369, 32
      %v1612 = vpop.permute.xlu0 %1611
      %1613 = vrot.lane.b32.xlu0 %v370, 32
      %v1614 = vpop.permute.xlu0 %1613
      %1615 = vrot.lane.b32.xlu0 %v371, 32
      %v1616 = vpop.permute.xlu0 %1615
      %1617 = vrot.lane.b32.xlu0 %v372, 32
      %v1618 = vpop.permute.xlu0 %1617
      %1619 = vrot.lane.b32.xlu0 %v373, 32
      %v1620 = vpop.permute.xlu0 %1619
      %1621 = vrot.lane.b32.xlu0 %v374, 32
      %v1622 = vpop.permute.xlu0 %1621
      %1623 = vrot.lane.b32.xlu0 %v375, 32
      %v1624 = vpop.permute.xlu0 %1623
      %1625 = vrot.lane.b32.xlu0 %v376, 32
      %v1626 = vpop.permute.xlu0 %1625
      %1627 = vrot.lane.b32.xlu0 %v377, 32
      %v1628 = vpop.permute.xlu0 %1627
      %1629 = vrot.lane.b32.xlu0 %v378, 32
      %v1630 = vpop.permute.xlu0 %1629
      %1631 = vrot.lane.b32.xlu0 %v379, 32
      %v1632 = vpop.permute.xlu0 %1631
      %1633 = vrot.lane.b32.xlu0 %v380, 32
      %v1634 = vpop.permute.xlu0 %1633
      %1635 = vrot.lane.b32.xlu0 %v381, 32
      %v1636 = vpop.permute.xlu0 %1635
      %1637 = vrot.lane.b32.xlu0 %v382, 32
      %v1638 = vpop.permute.xlu0 %1637
      %1639 = vrot.lane.b32.xlu0 %v383, 32
      %v1640 = vpop.permute.xlu0 %1639
      %1641 = vrot.lane.b32.xlu0 %v384, 32
      %v1642 = vpop.permute.xlu0 %1641
      %1643 = vrot.lane.b32.xlu0 %v385, 32
      %v1644 = vpop.permute.xlu0 %1643
      %1645 = vrot.lane.b32.xlu0 %v386, 32
      %v1646 = vpop.permute.xlu0 %1645
      %1647 = vrot.lane.b32.xlu0 %v387, 32
      %v1648 = vpop.permute.xlu0 %1647
      %1649 = vrot.lane.b32.xlu0 %v388, 32
      %v1650 = vpop.permute.xlu0 %1649
      %1651 = vrot.lane.b32.xlu0 %v389, 32
      %v1652 = vpop.permute.xlu0 %1651
      %1653 = vrot.lane.b32.xlu0 %v390, 32
      %v1654 = vpop.permute.xlu0 %1653
      %1655 = vrot.lane.b32.xlu0 %v391, 32
      %v1656 = vpop.permute.xlu0 %1655
      %1657 = vrot.lane.b32.xlu0 %v392, 32
      %v1658 = vpop.permute.xlu0 %1657
      %1659 = vrot.lane.b32.xlu0 %v393, 32
      %v1660 = vpop.permute.xlu0 %1659
      %1661 = vrot.lane.b32.xlu0 %v394, 32
      %v1662 = vpop.permute.xlu0 %1661
      %1663 = vrot.lane.b32.xlu0 %v395, 32
      %v1664 = vpop.permute.xlu0 %1663
      %1665 = vrot.lane.b32.xlu0 %v402, 32
      %v1666 = vpop.permute.xlu0 %1665
      %1667 = vrot.lane.b32.xlu0 %v403, 32
      %v1668 = vpop.permute.xlu0 %1667
      %1669 = vrot.lane.b32.xlu0 %v404, 32
      %v1670 = vpop.permute.xlu0 %1669
      %1671 = vrot.lane.b32.xlu0 %v411, 32
      %v1672 = vpop.permute.xlu0 %1671
      %1673 = vrot.lane.b32.xlu0 %v412, 32
      %v1674 = vpop.permute.xlu0 %1673
      %1675 = vrot.lane.b32.xlu0 %v413, 32
      %v1676 = vpop.permute.xlu0 %1675
      %vm1725 = vcmask 31744
      %v1726 = vsel %vm1725, %v252, %v463
      %v1727 = vsel %vm1725, %v253, %v465
      %v1728 = vsel %vm1725, %v254, %v467
      %v1729 = vsel %vm1725, %v255, %v469
      %v1730 = vsel %vm1725, %v256, %v471
      %v1731 = vsel %vm1725, %v257, %v473
      %v1732 = vsel %vm1725, %v258, %v475
      %v1733 = vsel %vm1725, %v259, %v477
      %v1734 = vsel %vm1725, %v260, %v479
      %v1735 = vsel %vm1725, %v261, %v481
      %v1736 = vsel %vm1725, %v262, %v483
      %v1737 = vsel %vm1725, %v263, %v485
      %v1738 = vsel %vm1725, %v264, %v487
      %v1739 = vsel %vm1725, %v265, %v489
      %v1740 = vsel %vm1725, %v266, %v491
      %v1741 = vsel %vm1725, %v267, %v493
      %v1742 = vsel %vm1725, %v268, %v495
      %v1743 = vsel %vm1725, %v269, %v497
      %v1744 = vsel %vm1725, %v270, %v499
      %v1745 = vsel %vm1725, %v271, %v501
      %v1746 = vsel %vm1725, %v272, %v503
      %v1747 = vsel %vm1725, %v273, %v505
      %v1748 = vsel %vm1725, %v274, %v507
      %v1749 = vsel %vm1725, %v275, %v509
      %v1750 = vsel %vm1725, %v276, %v511
      %v1751 = vsel %vm1725, %v277, %v513
      %v1752 = vsel %vm1725, %v278, %v515
      %v1753 = vsel %vm1725, %v279, %v517
      %v1754 = vsel %vm1725, %v280, %v519
      %v1755 = vsel %vm1725, %v281, %v521
      %v1756 = vsel %vm1725, %v282, %v523
      %v1757 = vsel %vm1725, %v283, %v525
      %v1758 = vsel %vm1725, %v284, %v527
      %v1759 = vsel %vm1725, %v285, %v529
      %v1760 = vsel %vm1725, %v286, %v531
      %v1761 = vsel %vm1725, %v287, %v533
      %v1762 = vsel %vm1725, %v288, %v535
      %v1763 = vsel %vm1725, %v289, %v537
      %v1764 = vsel %vm1725, %v290, %v539
      %v1765 = vsel %vm1725, %v291, %v541
      %v1766 = vsel %vm1725, %v292, %v543
      %v1767 = vsel %vm1725, %v293, %v545
      %v1768 = vsel %vm1725, %v294, %v547
      %v1769 = vsel %vm1725, %v295, %v549
      %v1770 = vsel %vm1725, %v296, %v551
      %v1771 = vsel %vm1725, %v297, %v553
      %v1772 = vsel %vm1725, %v298, %v555
      %v1773 = vsel %vm1725, %v299, %v557
      %vm1774 = vcmask 64512
      %v1775 = vsel %vm1774, %v1726, %v655
      %v1776 = vsel %vm1774, %v1727, %v657
      %v1777 = vsel %vm1774, %v1728, %v659
      %v1778 = vsel %vm1774, %v1729, %v661
      %v1779 = vsel %vm1774, %v1730, %v663
      %v1780 = vsel %vm1774, %v1731, %v665
      %v1781 = vsel %vm1774, %v1732, %v667
      %v1782 = vsel %vm1774, %v1733, %v669
      %v1783 = vsel %vm1774, %v1734, %v671
      %v1784 = vsel %vm1774, %v1735, %v673
      %v1785 = vsel %vm1774, %v1736, %v675
      %v1786 = vsel %vm1774, %v1737, %v677
      %v1787 = vsel %vm1774, %v1738, %v679
      %v1788 = vsel %vm1774, %v1739, %v681
      %v1789 = vsel %vm1774, %v1740, %v683
      %v1790 = vsel %vm1774, %v1741, %v685
      %v1791 = vsel %vm1774, %v1742, %v687
      %v1792 = vsel %vm1774, %v1743, %v689
      %v1793 = vsel %vm1774, %v1744, %v691
      %v1794 = vsel %vm1774, %v1745, %v693
      %v1795 = vsel %vm1774, %v1746, %v695
      %v1796 = vsel %vm1774, %v1747, %v697
      %v1797 = vsel %vm1774, %v1748, %v699
      %v1798 = vsel %vm1774, %v1749, %v701
      %v1799 = vsel %vm1774, %v1750, %v703
      %v1800 = vsel %vm1774, %v1751, %v705
      %v1801 = vsel %vm1774, %v1752, %v707
      %v1802 = vsel %vm1774, %v1753, %v709
      %v1803 = vsel %vm1774, %v1754, %v711
      %v1804 = vsel %vm1774, %v1755, %v713
      %v1805 = vsel %vm1774, %v1756, %v715
      %v1806 = vsel %vm1774, %v1757, %v717
      %v1807 = vsel %vm1774, %v1758, %v719
      %v1808 = vsel %vm1774, %v1759, %v721
      %v1809 = vsel %vm1774, %v1760, %v723
      %v1810 = vsel %vm1774, %v1761, %v725
      %v1811 = vsel %vm1774, %v1762, %v727
      %v1812 = vsel %vm1774, %v1763, %v729
      %v1813 = vsel %vm1774, %v1764, %v731
      %v1814 = vsel %vm1774, %v1765, %v733
      %v1815 = vsel %vm1774, %v1766, %v735
      %v1816 = vsel %vm1774, %v1767, %v737
      %v1817 = vsel %vm1774, %v1768, %v739
      %v1818 = vsel %vm1774, %v1769, %v741
      %v1819 = vsel %vm1774, %v1770, %v743
      %v1820 = vsel %vm1774, %v1771, %v745
      %v1821 = vsel %vm1774, %v1772, %v747
      %v1822 = vsel %vm1774, %v1773, %v749
      %vm1823 = vcmask 97280
      %v1824 = vsel %vm1823, %v1775, %v847
      %v1825 = vsel %vm1823, %v1776, %v849
      %v1826 = vsel %vm1823, %v1777, %v851
      %v1827 = vsel %vm1823, %v1778, %v853
      %v1828 = vsel %vm1823, %v1779, %v855
      %v1829 = vsel %vm1823, %v1780, %v857
      %v1830 = vsel %vm1823, %v1781, %v859
      %v1831 = vsel %vm1823, %v1782, %v861
      %v1832 = vsel %vm1823, %v1783, %v863
      %v1833 = vsel %vm1823, %v1784, %v865
      %v1834 = vsel %vm1823, %v1785, %v867
      %v1835 = vsel %vm1823, %v1786, %v869
      %v1836 = vsel %vm1823, %v1787, %v871
      %v1837 = vsel %vm1823, %v1788, %v873
      %v1838 = vsel %vm1823, %v1789, %v875
      %v1839 = vsel %vm1823, %v1790, %v877
      %v1840 = vsel %vm1823, %v1791, %v879
      %v1841 = vsel %vm1823, %v1792, %v881
      %v1842 = vsel %vm1823, %v1793, %v883
      %v1843 = vsel %vm1823, %v1794, %v885
      %v1844 = vsel %vm1823, %v1795, %v887
      %v1845 = vsel %vm1823, %v1796, %v889
      %v1846 = vsel %vm1823, %v1797, %v891
      %v1847 = vsel %vm1823, %v1798, %v893
      %v1848 = vsel %vm1823, %v1799, %v895
      %v1849 = vsel %vm1823, %v1800, %v897
      %v1850 = vsel %vm1823, %v1801, %v899
      %v1851 = vsel %vm1823, %v1802, %v901
      %v1852 = vsel %vm1823, %v1803, %v903
      %v1853 = vsel %vm1823, %v1804, %v905
      %v1854 = vsel %vm1823, %v1805, %v907
      %v1855 = vsel %vm1823, %v1806, %v909
      %v1856 = vsel %vm1823, %v1807, %v911
      %v1857 = vsel %vm1823, %v1808, %v913
      %v1858 = vsel %vm1823, %v1809, %v915
      %v1859 = vsel %vm1823, %v1810, %v917
      %v1860 = vsel %vm1823, %v1811, %v919
      %v1861 = vsel %vm1823, %v1812, %v921
      %v1862 = vsel %vm1823, %v1813, %v923
      %v1863 = vsel %vm1823, %v1814, %v925
      %v1864 = vsel %vm1823, %v1815, %v927
      %v1865 = vsel %vm1823, %v1816, %v929
      %v1866 = vsel %vm1823, %v1817, %v931
      %v1867 = vsel %vm1823, %v1818, %v933
      %v1868 = vsel %vm1823, %v1819, %v935
      %v1869 = vsel %vm1823, %v1820, %v937
      %v1870 = vsel %vm1823, %v1821, %v939
      %v1871 = vsel %vm1823, %v1822, %v941
      %vm1872 = vcmask 130048
      %v1873 = vsel %vm1872, %v1824, %v994
      %v1874 = vsel %vm1872, %v1825, %v996
      %v1875 = vsel %vm1872, %v1826, %v998
      %v1876 = vsel %vm1872, %v1827, %v1000
      %v1877 = vsel %vm1872, %v1828, %v1002
      %v1878 = vsel %vm1872, %v1829, %v1004
      %v1879 = vsel %vm1872, %v1830, %v1006
      %v1880 = vsel %vm1872, %v1831, %v1008
      %v1881 = vsel %vm1872, %v1832, %v1010
      %v1882 = vsel %vm1872, %v1833, %v1012
      %v1883 = vsel %vm1872, %v1834, %v1014
      %v1884 = vsel %vm1872, %v1835, %v1016
      %v1885 = vsel %vm1872, %v1836, %v1018
      %v1886 = vsel %vm1872, %v1837, %v1020
      %v1887 = vsel %vm1872, %v1838, %v1022
      %v1888 = vsel %vm1872, %v1839, %v1024
      %v1889 = vsel %vm1872, %v1840, %v1026
      %v1890 = vsel %vm1872, %v1841, %v1028
      %v1891 = vsel %vm1872, %v1842, %v1030
      %v1892 = vsel %vm1872, %v1843, %v1032
      %v1893 = vsel %vm1872, %v1844, %v1034
      %v1894 = vsel %vm1872, %v1845, %v1036
      %v1895 = vsel %vm1872, %v1846, %v1038
      %v1896 = vsel %vm1872, %v1847, %v1040
      %v1897 = vsel %vm1872, %v1848, %v1042
      %v1898 = vsel %vm1872, %v1849, %v1044
      %v1899 = vsel %vm1872, %v1850, %v1046
      %v1900 = vsel %vm1872, %v1851, %v1048
      %v1901 = vsel %vm1872, %v1852, %v1050
      %v1902 = vsel %vm1872, %v1853, %v1052
      %v1903 = vsel %vm1872, %v1854, %v1054
      %v1904 = vsel %vm1872, %v1855, %v1056
      %v1905 = vsel %vm1872, %v1856, %v1058
      %v1906 = vsel %vm1872, %v1857, %v1060
      %v1907 = vsel %vm1872, %v1858, %v1062
      %v1908 = vsel %vm1872, %v1859, %v1064
      %v1909 = vsel %vm1872, %v1860, %v1066
      %v1910 = vsel %vm1872, %v1861, %v1068
      %v1911 = vsel %vm1872, %v1862, %v1070
      %v1912 = vsel %vm1872, %v1863, %v1072
      %v1913 = vsel %vm1872, %v1864, %v1074
      %v1914 = vsel %vm1872, %v1865, %v1076
      %v1915 = vsel %vm1872, %v1866, %v1078
      %v1916 = vsel %vm1872, %v1867, %v1080
      %v1917 = vsel %vm1872, %v1868, %v1082
      %v1918 = vsel %vm1872, %v1869, %v1084
      %v1919 = vsel %vm1872, %v1870, %v1086
      %v1920 = vsel %vm1872, %v1871, %v1088
      %vm1921 = vcmask 162816
      %v1922 = vsel %vm1921, %v1873, %v1141
      %v1923 = vsel %vm1921, %v1874, %v1143
      %v1924 = vsel %vm1921, %v1875, %v1145
      %v1925 = vsel %vm1921, %v1876, %v1147
      %v1926 = vsel %vm1921, %v1877, %v1149
      %v1927 = vsel %vm1921, %v1878, %v1151
      %v1928 = vsel %vm1921, %v1879, %v1153
      %v1929 = vsel %vm1921, %v1880, %v1155
      %v1930 = vsel %vm1921, %v1881, %v1157
      %v1931 = vsel %vm1921, %v1882, %v1159
      %v1932 = vsel %vm1921, %v1883, %v1161
      %v1933 = vsel %vm1921, %v1884, %v1163
      %v1934 = vsel %vm1921, %v1885, %v1165
      %v1935 = vsel %vm1921, %v1886, %v1167
      %v1936 = vsel %vm1921, %v1887, %v1169
      %v1937 = vsel %vm1921, %v1888, %v1171
      %v1938 = vsel %vm1921, %v1889, %v1173
      %v1939 = vsel %vm1921, %v1890, %v1175
      %v1940 = vsel %vm1921, %v1891, %v1177
      %v1941 = vsel %vm1921, %v1892, %v1179
      %v1942 = vsel %vm1921, %v1893, %v1181
      %v1943 = vsel %vm1921, %v1894, %v1183
      %v1944 = vsel %vm1921, %v1895, %v1185
      %v1945 = vsel %vm1921, %v1896, %v1187
      %v1946 = vsel %vm1921, %v1897, %v1189
      %v1947 = vsel %vm1921, %v1898, %v1191
      %v1948 = vsel %vm1921, %v1899, %v1193
      %v1949 = vsel %vm1921, %v1900, %v1195
      %v1950 = vsel %vm1921, %v1901, %v1197
      %v1951 = vsel %vm1921, %v1902, %v1199
      %v1952 = vsel %vm1921, %v1903, %v1201
      %v1953 = vsel %vm1921, %v1904, %v1203
      %v1954 = vsel %vm1921, %v1905, %v1205
      %v1955 = vsel %vm1921, %v1906, %v1207
      %v1956 = vsel %vm1921, %v1907, %v1209
      %v1957 = vsel %vm1921, %v1908, %v1211
      %v1958 = vsel %vm1921, %v1909, %v1213
      %v1959 = vsel %vm1921, %v1910, %v1215
      %v1960 = vsel %vm1921, %v1911, %v1217
      %v1961 = vsel %vm1921, %v1912, %v1219
      %v1962 = vsel %vm1921, %v1913, %v1221
      %v1963 = vsel %vm1921, %v1914, %v1223
      %v1964 = vsel %vm1921, %v1915, %v1225
      %v1965 = vsel %vm1921, %v1916, %v1227
      %v1966 = vsel %vm1921, %v1917, %v1229
      %v1967 = vsel %vm1921, %v1918, %v1231
      %v1968 = vsel %vm1921, %v1919, %v1233
      %v1969 = vsel %vm1921, %v1920, %v1235
      %vm1970 = vcmask 195584
      %v1971 = vsel %vm1970, %v1922, %v1288
      %v1972 = vsel %vm1970, %v1923, %v1290
      %v1973 = vsel %vm1970, %v1924, %v1292
      %v1974 = vsel %vm1970, %v1925, %v1294
      %v1975 = vsel %vm1970, %v1926, %v1296
      %v1976 = vsel %vm1970, %v1927, %v1298
      %v1977 = vsel %vm1970, %v1928, %v1300
      %v1978 = vsel %vm1970, %v1929, %v1302
      %v1979 = vsel %vm1970, %v1930, %v1304
      %v1980 = vsel %vm1970, %v1931, %v1306
      %v1981 = vsel %vm1970, %v1932, %v1308
      %v1982 = vsel %vm1970, %v1933, %v1310
      %v1983 = vsel %vm1970, %v1934, %v1312
      %v1984 = vsel %vm1970, %v1935, %v1314
      %v1985 = vsel %vm1970, %v1936, %v1316
      %v1986 = vsel %vm1970, %v1937, %v1318
      %v1987 = vsel %vm1970, %v1938, %v1320
      %v1988 = vsel %vm1970, %v1939, %v1322
      %v1989 = vsel %vm1970, %v1940, %v1324
      %v1990 = vsel %vm1970, %v1941, %v1326
      %v1991 = vsel %vm1970, %v1942, %v1328
      %v1992 = vsel %vm1970, %v1943, %v1330
      %v1993 = vsel %vm1970, %v1944, %v1332
      %v1994 = vsel %vm1970, %v1945, %v1334
      %v1995 = vsel %vm1970, %v1946, %v1336
      %v1996 = vsel %vm1970, %v1947, %v1338
      %v1997 = vsel %vm1970, %v1948, %v1340
      %v1998 = vsel %vm1970, %v1949, %v1342
      %v1999 = vsel %vm1970, %v1950, %v1344
      %v2000 = vsel %vm1970, %v1951, %v1346
      %v2001 = vsel %vm1970, %v1952, %v1348
      %v2002 = vsel %vm1970, %v1953, %v1350
      %v2003 = vsel %vm1970, %v1954, %v1352
      %v2004 = vsel %vm1970, %v1955, %v1354
      %v2005 = vsel %vm1970, %v1956, %v1356
      %v2006 = vsel %vm1970, %v1957, %v1358
      %v2007 = vsel %vm1970, %v1958, %v1360
      %v2008 = vsel %vm1970, %v1959, %v1362
      %v2009 = vsel %vm1970, %v1960, %v1364
      %v2010 = vsel %vm1970, %v1961, %v1366
      %v2011 = vsel %vm1970, %v1962, %v1368
      %v2012 = vsel %vm1970, %v1963, %v1370
      %v2013 = vsel %vm1970, %v1964, %v1372
      %v2014 = vsel %vm1970, %v1965, %v1374
      %v2015 = vsel %vm1970, %v1966, %v1376
      %v2016 = vsel %vm1970, %v1967, %v1378
      %v2017 = vsel %vm1970, %v1968, %v1380
      %v2018 = vsel %vm1970, %v1969, %v1382
      %vm2019 = vcmask 228352
      %v2020 = vsel %vm2019, %v1971, %v1435
      %v2021 = vsel %vm2019, %v1972, %v1437
      %v2022 = vsel %vm2019, %v1973, %v1439
      %v2023 = vsel %vm2019, %v1974, %v1441
      %v2024 = vsel %vm2019, %v1975, %v1443
      %v2025 = vsel %vm2019, %v1976, %v1445
      %v2026 = vsel %vm2019, %v1977, %v1447
      %v2027 = vsel %vm2019, %v1978, %v1449
      %v2028 = vsel %vm2019, %v1979, %v1451
      %v2029 = vsel %vm2019, %v1980, %v1453
      %v2030 = vsel %vm2019, %v1981, %v1455
      %v2031 = vsel %vm2019, %v1982, %v1457
      %v2032 = vsel %vm2019, %v1983, %v1459
      %v2033 = vsel %vm2019, %v1984, %v1461
      %v2034 = vsel %vm2019, %v1985, %v1463
      %v2035 = vsel %vm2019, %v1986, %v1465
      %v2036 = vsel %vm2019, %v1987, %v1467
      %v2037 = vsel %vm2019, %v1988, %v1469
      %v2038 = vsel %vm2019, %v1989, %v1471
      %v2039 = vsel %vm2019, %v1990, %v1473
      %v2040 = vsel %vm2019, %v1991, %v1475
      %v2041 = vsel %vm2019, %v1992, %v1477
      %v2042 = vsel %vm2019, %v1993, %v1479
      %v2043 = vsel %vm2019, %v1994, %v1481
      %v2044 = vsel %vm2019, %v1995, %v1483
      %v2045 = vsel %vm2019, %v1996, %v1485
      %v2046 = vsel %vm2019, %v1997, %v1487
      %v2047 = vsel %vm2019, %v1998, %v1489
      %v2048 = vsel %vm2019, %v1999, %v1491
      %v2049 = vsel %vm2019, %v2000, %v1493
      %v2050 = vsel %vm2019, %v2001, %v1495
      %v2051 = vsel %vm2019, %v2002, %v1497
      %v2052 = vsel %vm2019, %v2003, %v1499
      %v2053 = vsel %vm2019, %v2004, %v1501
      %v2054 = vsel %vm2019, %v2005, %v1503
      %v2055 = vsel %vm2019, %v2006, %v1505
      %v2056 = vsel %vm2019, %v2007, %v1507
      %v2057 = vsel %vm2019, %v2008, %v1509
      %v2058 = vsel %vm2019, %v2009, %v1511
      %v2059 = vsel %vm2019, %v2010, %v1513
      %v2060 = vsel %vm2019, %v2011, %v1515
      %v2061 = vsel %vm2019, %v2012, %v1517
      %v2062 = vsel %vm2019, %v2013, %v1519
      %v2063 = vsel %vm2019, %v2014, %v1521
      %v2064 = vsel %vm2019, %v2015, %v1523
      %v2065 = vsel %vm2019, %v2016, %v1525
      %v2066 = vsel %vm2019, %v2017, %v1527
      %v2067 = vsel %vm2019, %v2018, %v1529
      %vm2068 = vcmask 261120
      %v2069 = vsel %vm2068, %v2020, %v1582
      %v2070 = vsel %vm2068, %v2021, %v1584
      %v2071 = vsel %vm2068, %v2022, %v1586
      %v2072 = vsel %vm2068, %v2023, %v1588
      %v2073 = vsel %vm2068, %v2024, %v1590
      %v2074 = vsel %vm2068, %v2025, %v1592
      %v2075 = vsel %vm2068, %v2026, %v1594
      %v2076 = vsel %vm2068, %v2027, %v1596
      %v2077 = vsel %vm2068, %v2028, %v1598
      %v2078 = vsel %vm2068, %v2029, %v1600
      %v2079 = vsel %vm2068, %v2030, %v1602
      %v2080 = vsel %vm2068, %v2031, %v1604
      %v2081 = vsel %vm2068, %v2032, %v1606
      %v2082 = vsel %vm2068, %v2033, %v1608
      %v2083 = vsel %vm2068, %v2034, %v1610
      %v2084 = vsel %vm2068, %v2035, %v1612
      %v2085 = vsel %vm2068, %v2036, %v1614
      %v2086 = vsel %vm2068, %v2037, %v1616
      %v2087 = vsel %vm2068, %v2038, %v1618
      %v2088 = vsel %vm2068, %v2039, %v1620
      %v2089 = vsel %vm2068, %v2040, %v1622
      %v2090 = vsel %vm2068, %v2041, %v1624
      %v2091 = vsel %vm2068, %v2042, %v1626
      %v2092 = vsel %vm2068, %v2043, %v1628
      %v2093 = vsel %vm2068, %v2044, %v1630
      %v2094 = vsel %vm2068, %v2045, %v1632
      %v2095 = vsel %vm2068, %v2046, %v1634
      %v2096 = vsel %vm2068, %v2047, %v1636
      %v2097 = vsel %vm2068, %v2048, %v1638
      %v2098 = vsel %vm2068, %v2049, %v1640
      %v2099 = vsel %vm2068, %v2050, %v1642
      %v2100 = vsel %vm2068, %v2051, %v1644
      %v2101 = vsel %vm2068, %v2052, %v1646
      %v2102 = vsel %vm2068, %v2053, %v1648
      %v2103 = vsel %vm2068, %v2054, %v1650
      %v2104 = vsel %vm2068, %v2055, %v1652
      %v2105 = vsel %vm2068, %v2056, %v1654
      %v2106 = vsel %vm2068, %v2057, %v1656
      %v2107 = vsel %vm2068, %v2058, %v1658
      %v2108 = vsel %vm2068, %v2059, %v1660
      %v2109 = vsel %vm2068, %v2060, %v1662
      %v2110 = vsel %vm2068, %v2061, %v1664
      %v2111 = vsel %vm2068, %v2062, %v1666
      %v2112 = vsel %vm2068, %v2063, %v1668
      %v2113 = vsel %vm2068, %v2064, %v1670
      %v2114 = vsel %vm2068, %v2065, %v1672
      %v2115 = vsel %vm2068, %v2066, %v1674
      %v2116 = vsel %vm2068, %v2067, %v1676
      %vm2117 = vcmask 293888
      %v2118 = vsel %vm2117, %v2069, 0.0
      %v2119 = vsel %vm2117, %v2070, 0.0
      %v2120 = vsel %vm2117, %v2071, 0.0
      %v2121 = vsel %vm2117, %v2072, 0.0
      %v2122 = vsel %vm2117, %v2073, 0.0
      %v2123 = vsel %vm2117, %v2074, 0.0
      %v2124 = vsel %vm2117, %v2075, 0.0
      %v2125 = vsel %vm2117, %v2076, 0.0
      %v2126 = vsel %vm2117, %v2077, 0.0
      %v2127 = vsel %vm2117, %v2078, 0.0
      %v2128 = vsel %vm2117, %v2079, 0.0
      %v2129 = vsel %vm2117, %v2080, 0.0
      %v2130 = vsel %vm2117, %v2081, 0.0
      %v2131 = vsel %vm2117, %v2082, 0.0
      %v2132 = vsel %vm2117, %v2083, 0.0
      %v2133 = vsel %vm2117, %v2084, 0.0
      %v2134 = vsel %vm2117, %v2085, 0.0
      %v2135 = vsel %vm2117, %v2086, 0.0
      %v2136 = vsel %vm2117, %v2087, 0.0
      %v2137 = vsel %vm2117, %v2088, 0.0
      %v2138 = vsel %vm2117, %v2089, 0.0
      %v2139 = vsel %vm2117, %v2090, 0.0
      %v2140 = vsel %vm2117, %v2091, 0.0
      %v2141 = vsel %vm2117, %v2092, 0.0
      %v2142 = vsel %vm2117, %v2093, 0.0
      %v2143 = vsel %vm2117, %v2094, 0.0
      %v2144 = vsel %vm2117, %v2095, 0.0
      %v2145 = vsel %vm2117, %v2096, 0.0
      %v2146 = vsel %vm2117, %v2097, 0.0
      %v2147 = vsel %vm2117, %v2098, 0.0
      %v2148 = vsel %vm2117, %v2099, 0.0
      %v2149 = vsel %vm2117, %v2100, 0.0
      %v2150 = vsel %vm2117, %v2101, 0.0
      %v2151 = vsel %vm2117, %v2102, 0.0
      %v2152 = vsel %vm2117, %v2103, 0.0
      %v2153 = vsel %vm2117, %v2104, 0.0
      %v2154 = vsel %vm2117, %v2105, 0.0
      %v2155 = vsel %vm2117, %v2106, 0.0
      %v2156 = vsel %vm2117, %v2107, 0.0
      %v2157 = vsel %vm2117, %v2108, 0.0
      %v2158 = vsel %vm2117, %v2109, 0.0
      %v2159 = vsel %vm2117, %v2110, 0.0
      %v2160 = vsel %vm2117, %v2111, 0.0
      %v2161 = vsel %vm2117, %v2112, 0.0
      %v2162 = vsel %vm2117, %v2113, 0.0
      %v2163 = vsel %vm2117, %v2114, 0.0
      %v2164 = vsel %vm2117, %v2115, 0.0
      %v2165 = vsel %vm2117, %v2116, 0.0
      %v2166 = vpack.c.bf16 %v2119, %v2118
      %v2167 = vpack.c.bf16 %v2121, %v2120
      %v2168 = vpack.c.bf16 %v2123, %v2122
      %v2169 = vpack.c.bf16 %v2125, %v2124
      %v2170 = vpack.c.bf16 %v2127, %v2126
      %v2171 = vpack.c.bf16 %v2129, %v2128
      %v2172 = vpack.c.bf16 %v2131, %v2130
      %v2173 = vpack.c.bf16 %v2133, %v2132
      %v2174 = vpack.c.bf16 %v2135, %v2134
      %v2175 = vpack.c.bf16 %v2137, %v2136
      %v2176 = vpack.c.bf16 %v2139, %v2138
      %v2177 = vpack.c.bf16 %v2141, %v2140
      %v2178 = vpack.c.bf16 %v2143, %v2142
      %v2179 = vpack.c.bf16 %v2145, %v2144
      %v2180 = vpack.c.bf16 %v2147, %v2146
      %v2181 = vpack.c.bf16 %v2149, %v2148
      %v2182 = vpack.c.bf16 %v2151, %v2150
      %v2183 = vpack.c.bf16 %v2153, %v2152
      %v2184 = vpack.c.bf16 %v2155, %v2154
      %v2185 = vpack.c.bf16 %v2157, %v2156
      %v2186 = vpack.c.bf16 %v2159, %v2158
      %v2187 = vpack.c.bf16 %v2161, %v2160
      %v2188 = vpack.c.bf16 %v2163, %v2162
      %v2189 = vpack.c.bf16 %v2165, %v2164
      %v2190 = vld [vmem:[%s1] sm:$0xf]
      %v2191 = vld [vmem:[%s1 + $0x4] sm:$0xf]
      %v2192 = vld [vmem:[%s1 + $0x8] sm:$0xf]
      %v2193 = vld [vmem:[%s1 + $0xc] sm:$0xf]
      %v2194 = vld [vmem:[%s1 + $0x10] sm:$0xf]
      %v2195 = vld [vmem:[%s1 + $0x14] sm:$0xf]
      %v2196 = vld [vmem:[%s1 + $0x18] sm:$0xf]
      %v2197 = vld [vmem:[%s1 + $0x1c] sm:$0xf]
      %v2198 = vld [vmem:[%s1 + $0x20] sm:$0xf]
      %v2199 = vld [vmem:[%s1 + $0x24] sm:$0xf]
      %v2200 = vld [vmem:[%s1 + $0x28] sm:$0xf]
      %v2201 = vld [vmem:[%s1 + $0x2c] sm:$0xf]
      %v2202 = vld [vmem:[%s1 + $0x30] sm:$0xf]
      %v2203 = vld [vmem:[%s1 + $0x34] sm:$0xf]
      %v2204 = vld [vmem:[%s1 + $0x38] sm:$0xf]
      %v2205 = vld [vmem:[%s1 + $0x3c] sm:$0xf]
      %v2206 = vld [vmem:[%s2] sm:$0x1]
      %v2208 = vperm.slane %v2206, 0
      %v2226 = vunpack.c.l.b16 %v2190
      %v2227 = vunpack.c.l.b16 %v2191
      %v2228 = vunpack.c.l.b16 %v2192
      %v2229 = vunpack.c.l.b16 %v2193
      %v2230 = vunpack.c.l.b16 %v2194
      %v2231 = vunpack.c.l.b16 %v2195
      %v2232 = vunpack.c.l.b16 %v2196
      %v2233 = vunpack.c.l.b16 %v2197
      %v2234 = vunpack.c.l.b16 %v2198
      %v2235 = vunpack.c.l.b16 %v2199
      %v2236 = vunpack.c.l.b16 %v2200
      %v2237 = vunpack.c.l.b16 %v2201
      %v2238 = vunpack.c.l.b16 %v2202
      %v2239 = vunpack.c.l.b16 %v2203
      %v2240 = vunpack.c.l.b16 %v2204
      %v2241 = vunpack.c.l.b16 %v2205
      %v2242 = vpack.c.b16 %v2227, %v2226
      %v2243 = vpack.c.b16 %v2229, %v2228
      %v2244 = vpack.c.b16 %v2231, %v2230
      %v2245 = vpack.c.b16 %v2233, %v2232
      %v2246 = vpack.c.b16 %v2235, %v2234
      %v2247 = vpack.c.b16 %v2237, %v2236
      %v2248 = vpack.c.b16 %v2239, %v2238
      %v2249 = vpack.c.b16 %v2241, %v2240
      %2258 = vmatpush.bf16.msra.mxu0 %v2249
      %2259 = vmatpush.bf16.msra.mxu0 %v2248
      %2260 = vmatpush.bf16.msra.mxu0 %v2247
      %2261 = vmatpush.bf16.msra.mxu0 %v2246
      %2262 = vmatpush.bf16.msra.mxu0 %v2245
      %2263 = vmatpush.bf16.msra.mxu0 %v2244
      %2264 = vmatpush.bf16.msra.mxu0 %v2243
      %2265 = vmatpush.bf16.msra.mxu0 %v2242
      %2266 = vmatmul.bf16.gmra.mxu0 %v2166
      %v2267 = vpop.f32.mrf.mxu0
      %v2268 = vadd.f32 %v2208, %v2267
      %v2269 = vpop.f32.mrf.mxu0
      %v2270 = vadd.f32 %v2208, %v2269
      %2271 = vmatmul.bf16.gmra.mxu0 %v2167
      %v2272 = vpop.f32.mrf.mxu0
      %v2273 = vadd.f32 %v2208, %v2272
      %v2274 = vpop.f32.mrf.mxu0
      %v2275 = vadd.f32 %v2208, %v2274
      %2276 = vmatmul.bf16.gmra.mxu0 %v2168
      %v2277 = vpop.f32.mrf.mxu0
      %v2278 = vadd.f32 %v2208, %v2277
      %v2279 = vpop.f32.mrf.mxu0
      %v2280 = vadd.f32 %v2208, %v2279
      %2281 = vmatmul.bf16.gmra.mxu0 %v2169
      %v2282 = vpop.f32.mrf.mxu0
      %v2283 = vadd.f32 %v2208, %v2282
      %v2284 = vpop.f32.mrf.mxu0
      %v2285 = vadd.f32 %v2208, %v2284
      %2286 = vmatmul.bf16.gmra.mxu0 %v2170
      %v2287 = vpop.f32.mrf.mxu0
      %v2288 = vadd.f32 %v2208, %v2287
      %v2289 = vpop.f32.mrf.mxu0
      %v2290 = vadd.f32 %v2208, %v2289
      %2291 = vmatmul.bf16.gmra.mxu0 %v2171
      %v2292 = vpop.f32.mrf.mxu0
      %v2293 = vadd.f32 %v2208, %v2292
      %v2294 = vpop.f32.mrf.mxu0
      %v2295 = vadd.f32 %v2208, %v2294
      %2296 = vmatmul.bf16.gmra.mxu0 %v2172
      %v2297 = vpop.f32.mrf.mxu0
      %v2298 = vadd.f32 %v2208, %v2297
      %v2299 = vpop.f32.mrf.mxu0
      %v2300 = vadd.f32 %v2208, %v2299
      %2301 = vmatmul.bf16.gmra.mxu0 %v2173
      %v2302 = vpop.f32.mrf.mxu0
      %v2303 = vadd.f32 %v2208, %v2302
      %v2304 = vpop.f32.mrf.mxu0
      %v2305 = vadd.f32 %v2208, %v2304
      %2306 = vmatmul.bf16.gmra.mxu0 %v2174
      %v2307 = vpop.f32.mrf.mxu0
      %v2308 = vadd.f32 %v2208, %v2307
      %v2309 = vpop.f32.mrf.mxu0
      %v2310 = vadd.f32 %v2208, %v2309
      %2311 = vmatmul.bf16.gmra.mxu0 %v2175
      %v2312 = vpop.f32.mrf.mxu0
      %v2313 = vadd.f32 %v2208, %v2312
      %v2314 = vpop.f32.mrf.mxu0
      %v2315 = vadd.f32 %v2208, %v2314
      %2316 = vmatmul.bf16.gmra.mxu0 %v2176
      %v2317 = vpop.f32.mrf.mxu0
      %v2318 = vadd.f32 %v2208, %v2317
      %v2319 = vpop.f32.mrf.mxu0
      %v2320 = vadd.f32 %v2208, %v2319
      %2321 = vmatmul.bf16.gmra.mxu0 %v2177
      %v2322 = vpop.f32.mrf.mxu0
      %v2323 = vadd.f32 %v2208, %v2322
      %v2324 = vpop.f32.mrf.mxu0
      %v2325 = vadd.f32 %v2208, %v2324
      %2326 = vmatmul.bf16.gmra.mxu0 %v2178
      %v2327 = vpop.f32.mrf.mxu0
      %v2328 = vadd.f32 %v2208, %v2327
      %v2329 = vpop.f32.mrf.mxu0
      %v2330 = vadd.f32 %v2208, %v2329
      %2331 = vmatmul.bf16.gmra.mxu0 %v2179
      %v2332 = vpop.f32.mrf.mxu0
      %v2333 = vadd.f32 %v2208, %v2332
      %v2334 = vpop.f32.mrf.mxu0
      %v2335 = vadd.f32 %v2208, %v2334
      %2336 = vmatmul.bf16.gmra.mxu0 %v2180
      %v2337 = vpop.f32.mrf.mxu0
      %v2338 = vadd.f32 %v2208, %v2337
      %v2339 = vpop.f32.mrf.mxu0
      %v2340 = vadd.f32 %v2208, %v2339
      %2341 = vmatmul.bf16.gmra.mxu0 %v2181
      %v2342 = vpop.f32.mrf.mxu0
      %v2343 = vadd.f32 %v2208, %v2342
      %v2344 = vpop.f32.mrf.mxu0
      %v2345 = vadd.f32 %v2208, %v2344
      %2346 = vmatmul.bf16.gmra.mxu0 %v2182
      %v2347 = vpop.f32.mrf.mxu0
      %v2348 = vadd.f32 %v2208, %v2347
      %v2349 = vpop.f32.mrf.mxu0
      %v2350 = vadd.f32 %v2208, %v2349
      %2351 = vmatmul.bf16.gmra.mxu0 %v2183
      %v2352 = vpop.f32.mrf.mxu0
      %v2353 = vadd.f32 %v2208, %v2352
      %v2354 = vpop.f32.mrf.mxu0
      %v2355 = vadd.f32 %v2208, %v2354
      %2356 = vmatmul.bf16.gmra.mxu0 %v2184
      %v2357 = vpop.f32.mrf.mxu0
      %v2358 = vadd.f32 %v2208, %v2357
      %v2359 = vpop.f32.mrf.mxu0
      %v2360 = vadd.f32 %v2208, %v2359
      %2361 = vmatmul.bf16.gmra.mxu0 %v2185
      %v2362 = vpop.f32.mrf.mxu0
      %v2363 = vadd.f32 %v2208, %v2362
      %v2364 = vpop.f32.mrf.mxu0
      %v2365 = vadd.f32 %v2208, %v2364
      %2366 = vmatmul.bf16.gmra.mxu0 %v2186
      %v2367 = vpop.f32.mrf.mxu0
      %v2368 = vadd.f32 %v2208, %v2367
      %v2369 = vpop.f32.mrf.mxu0
      %v2370 = vadd.f32 %v2208, %v2369
      %2371 = vmatmul.bf16.gmra.mxu0 %v2187
      %v2372 = vpop.f32.mrf.mxu0
      %v2373 = vadd.f32 %v2208, %v2372
      %v2374 = vpop.f32.mrf.mxu0
      %v2375 = vadd.f32 %v2208, %v2374
      %2376 = vmatmul.bf16.gmra.mxu0 %v2188
      %v2377 = vpop.f32.mrf.mxu0
      %v2378 = vadd.f32 %v2208, %v2377
      %v2379 = vpop.f32.mrf.mxu0
      %v2380 = vadd.f32 %v2208, %v2379
      %2381 = vmatmul.bf16.gmra.mxu0 %v2189
      %v2382 = vpop.f32.mrf.mxu0
      %v2383 = vadd.f32 %v2208, %v2382
      %v2384 = vpop.f32.mrf.mxu0
      %v2385 = vadd.f32 %v2208, %v2384
      %2386 = vdwg.mxu0
      %vm2387 = vcmp.gt.f32.partialorder %v2268, 0.0
      %vm2388 = vcmp.gt.f32.partialorder %v2270, 0.0
      %vm2389 = vcmp.gt.f32.partialorder %v2273, 0.0
      %vm2390 = vcmp.gt.f32.partialorder %v2275, 0.0
      %vm2391 = vcmp.gt.f32.partialorder %v2278, 0.0
      %vm2392 = vcmp.gt.f32.partialorder %v2280, 0.0
      %vm2393 = vcmp.gt.f32.partialorder %v2283, 0.0
      %vm2394 = vcmp.gt.f32.partialorder %v2285, 0.0
      %vm2395 = vcmp.gt.f32.partialorder %v2288, 0.0
      %vm2396 = vcmp.gt.f32.partialorder %v2290, 0.0
      %vm2397 = vcmp.gt.f32.partialorder %v2293, 0.0
      %vm2398 = vcmp.gt.f32.partialorder %v2295, 0.0
      %vm2399 = vcmp.gt.f32.partialorder %v2298, 0.0
      %vm2400 = vcmp.gt.f32.partialorder %v2300, 0.0
      %vm2401 = vcmp.gt.f32.partialorder %v2303, 0.0
      %vm2402 = vcmp.gt.f32.partialorder %v2305, 0.0
      %vm2403 = vcmp.gt.f32.partialorder %v2308, 0.0
      %vm2404 = vcmp.gt.f32.partialorder %v2310, 0.0
      %vm2405 = vcmp.gt.f32.partialorder %v2313, 0.0
      %vm2406 = vcmp.gt.f32.partialorder %v2315, 0.0
      %vm2407 = vcmp.gt.f32.partialorder %v2318, 0.0
      %vm2408 = vcmp.gt.f32.partialorder %v2320, 0.0
      %vm2409 = vcmp.gt.f32.partialorder %v2323, 0.0
      %vm2410 = vcmp.gt.f32.partialorder %v2325, 0.0
      %vm2411 = vcmp.gt.f32.partialorder %v2328, 0.0
      %vm2412 = vcmp.gt.f32.partialorder %v2330, 0.0
      %vm2413 = vcmp.gt.f32.partialorder %v2333, 0.0
      %vm2414 = vcmp.gt.f32.partialorder %v2335, 0.0
      %vm2415 = vcmp.gt.f32.partialorder %v2338, 0.0
      %vm2416 = vcmp.gt.f32.partialorder %v2340, 0.0
      %vm2417 = vcmp.gt.f32.partialorder %v2343, 0.0
      %vm2418 = vcmp.gt.f32.partialorder %v2345, 0.0
      %vm2419 = vcmp.gt.f32.partialorder %v2348, 0.0
      %vm2420 = vcmp.gt.f32.partialorder %v2350, 0.0
      %vm2421 = vcmp.gt.f32.partialorder %v2353, 0.0
      %vm2422 = vcmp.gt.f32.partialorder %v2355, 0.0
      %vm2423 = vcmp.gt.f32.partialorder %v2358, 0.0
      %vm2424 = vcmp.gt.f32.partialorder %v2360, 0.0
      %vm2425 = vcmp.gt.f32.partialorder %v2363, 0.0
      %vm2426 = vcmp.gt.f32.partialorder %v2365, 0.0
      %vm2427 = vcmp.gt.f32.partialorder %v2368, 0.0
      %vm2428 = vcmp.gt.f32.partialorder %v2370, 0.0
      %vm2429 = vcmp.gt.f32.partialorder %v2373, 0.0
      %vm2430 = vcmp.gt.f32.partialorder %v2375, 0.0
      %vm2431 = vcmp.gt.f32.partialorder %v2378, 0.0
      %vm2432 = vcmp.gt.f32.partialorder %v2380, 0.0
      %vm2433 = vcmp.gt.f32.partialorder %v2383, 0.0
      %vm2434 = vcmp.gt.f32.partialorder %v2385, 0.0
      %v2435 = vld [vmem:[%s3] sm:$0x1]
      %v2437 = vperm.slane %v2435, 0
      %v2439 = vmul.f32 %v2268, %v2437
      %v2440 = vmul.f32 %v2270, %v2437
      %v2441 = vmul.f32 %v2273, %v2437
      %v2442 = vmul.f32 %v2275, %v2437
      %v2443 = vmul.f32 %v2278, %v2437
      %v2444 = vmul.f32 %v2280, %v2437
      %v2445 = vmul.f32 %v2283, %v2437
      %v2446 = vmul.f32 %v2285, %v2437
      %v2447 = vmul.f32 %v2288, %v2437
      %v2448 = vmul.f32 %v2290, %v2437
      %v2449 = vmul.f32 %v2293, %v2437
      %v2450 = vmul.f32 %v2295, %v2437
      %v2451 = vmul.f32 %v2298, %v2437
      %v2452 = vmul.f32 %v2300, %v2437
      %v2453 = vmul.f32 %v2303, %v2437
      %v2454 = vmul.f32 %v2305, %v2437
      %v2455 = vmul.f32 %v2308, %v2437
      %v2456 = vmul.f32 %v2310, %v2437
      %v2457 = vmul.f32 %v2313, %v2437
      %v2458 = vmul.f32 %v2315, %v2437
      %v2459 = vmul.f32 %v2318, %v2437
      %v2460 = vmul.f32 %v2320, %v2437
      %v2461 = vmul.f32 %v2323, %v2437
      %v2462 = vmul.f32 %v2325, %v2437
      %v2463 = vmul.f32 %v2328, %v2437
      %v2464 = vmul.f32 %v2330, %v2437
      %v2465 = vmul.f32 %v2333, %v2437
      %v2466 = vmul.f32 %v2335, %v2437
      %v2467 = vmul.f32 %v2338, %v2437
      %v2468 = vmul.f32 %v2340, %v2437
      %v2469 = vmul.f32 %v2343, %v2437
      %v2470 = vmul.f32 %v2345, %v2437
      %v2471 = vmul.f32 %v2348, %v2437
      %v2472 = vmul.f32 %v2350, %v2437
      %v2473 = vmul.f32 %v2353, %v2437
      %v2474 = vmul.f32 %v2355, %v2437
      %v2475 = vmul.f32 %v2358, %v2437
      %v2476 = vmul.f32 %v2360, %v2437
      %v2477 = vmul.f32 %v2363, %v2437
      %v2478 = vmul.f32 %v2365, %v2437
      %v2479 = vmul.f32 %v2368, %v2437
      %v2480 = vmul.f32 %v2370, %v2437
      %v2481 = vmul.f32 %v2373, %v2437
      %v2482 = vmul.f32 %v2375, %v2437
      %v2483 = vmul.f32 %v2378, %v2437
      %v2484 = vmul.f32 %v2380, %v2437
      %v2485 = vmul.f32 %v2383, %v2437
      %v2486 = vmul.f32 %v2385, %v2437
      %v2487 = vsel %vm2387, %v2268, %v2439
      %v2488 = vsel %vm2388, %v2270, %v2440
      %v2489 = vsel %vm2389, %v2273, %v2441
      %v2490 = vsel %vm2390, %v2275, %v2442
      %v2491 = vsel %vm2391, %v2278, %v2443
      %v2492 = vsel %vm2392, %v2280, %v2444
      %v2493 = vsel %vm2393, %v2283, %v2445
      %v2494 = vsel %vm2394, %v2285, %v2446
      %v2495 = vsel %vm2395, %v2288, %v2447
      %v2496 = vsel %vm2396, %v2290, %v2448
      %v2497 = vsel %vm2397, %v2293, %v2449
      %v2498 = vsel %vm2398, %v2295, %v2450
      %v2499 = vsel %vm2399, %v2298, %v2451
      %v2500 = vsel %vm2400, %v2300, %v2452
      %v2501 = vsel %vm2401, %v2303, %v2453
      %v2502 = vsel %vm2402, %v2305, %v2454
      %v2503 = vsel %vm2403, %v2308, %v2455
      %v2504 = vsel %vm2404, %v2310, %v2456
      %v2505 = vsel %vm2405, %v2313, %v2457
      %v2506 = vsel %vm2406, %v2315, %v2458
      %v2507 = vsel %vm2407, %v2318, %v2459
      %v2508 = vsel %vm2408, %v2320, %v2460
      %v2509 = vsel %vm2409, %v2323, %v2461
      %v2510 = vsel %vm2410, %v2325, %v2462
      %v2511 = vsel %vm2411, %v2328, %v2463
      %v2512 = vsel %vm2412, %v2330, %v2464
      %v2513 = vsel %vm2413, %v2333, %v2465
      %v2514 = vsel %vm2414, %v2335, %v2466
      %v2515 = vsel %vm2415, %v2338, %v2467
      %v2516 = vsel %vm2416, %v2340, %v2468
      %v2517 = vsel %vm2417, %v2343, %v2469
      %v2518 = vsel %vm2418, %v2345, %v2470
      %v2519 = vsel %vm2419, %v2348, %v2471
      %v2520 = vsel %vm2420, %v2350, %v2472
      %v2521 = vsel %vm2421, %v2353, %v2473
      %v2522 = vsel %vm2422, %v2355, %v2474
      %v2523 = vsel %vm2423, %v2358, %v2475
      %v2524 = vsel %vm2424, %v2360, %v2476
      %v2525 = vsel %vm2425, %v2363, %v2477
      %v2526 = vsel %vm2426, %v2365, %v2478
      %v2527 = vsel %vm2427, %v2368, %v2479
      %v2528 = vsel %vm2428, %v2370, %v2480
      %v2529 = vsel %vm2429, %v2373, %v2481
      %v2530 = vsel %vm2430, %v2375, %v2482
      %v2531 = vsel %vm2431, %v2378, %v2483
      %v2532 = vsel %vm2432, %v2380, %v2484
      %v2533 = vsel %vm2433, %v2383, %v2485
      %v2534 = vsel %vm2434, %v2385, %v2486
      %v2535 = vlaneseq
      %v2536 = vshrl.u32 %v2535, 7
      %v2537 = vadd.s32 %v2536, 8
      %v2538 = vadd.s32 %v2536, 16
      %v2539 = vadd.s32 %v2536, 24
      %v2540 = vadd.s32 %v2536, 32
      %v2541 = vadd.s32 %v2536, 40
      %v2542 = vadd.s32 %v2536, 48
      %v2543 = vadd.s32 %v2536, 56
      %v2544 = vadd.s32 %v2536, 64
      %v2545 = vadd.s32 %v2536, 72
      %v2546 = vadd.s32 %v2536, 80
      %v2547 = vadd.s32 %v2536, 88
      %v2548 = vadd.s32 %v2536, 96
      %v2549 = vadd.s32 %v2536, 104
      %v2550 = vadd.s32 %v2536, 112
      %v2551 = vadd.s32 %v2536, 120
      %v2552 = vadd.s32 %v2536, 128
      %v2553 = vadd.s32 %v2536, 136
      %v2554 = vadd.s32 %v2536, 144
      %v2555 = vadd.s32 %v2536, 152
      %v2556 = vadd.s32 %v2536, 160
      %v2557 = vadd.s32 %v2536, 168
      %v2558 = vadd.s32 %v2536, 176
      %v2559 = vadd.s32 %v2536, 184
      %v2560 = vadd.s32 %v2536, 192
      %v2561 = vadd.s32 %v2536, 200
      %v2562 = vadd.s32 %v2536, 208
      %v2563 = vadd.s32 %v2536, 216
      %v2564 = vadd.s32 %v2536, 224
      %v2565 = vadd.s32 %v2536, 232
      %v2566 = vadd.s32 %v2536, 240
      %v2567 = vadd.s32 %v2536, 248
      %v2568 = vadd.s32 %v2536, 256
      %v2569 = vadd.s32 %v2536, 264
      %v2570 = vadd.s32 %v2536, 272
      %v2571 = vadd.s32 %v2536, 280
      %v2572 = vadd.s32 %v2536, 288
      %v2573 = vadd.s32 %v2536, 296
      %v2574 = vadd.s32 %v2536, 304
      %v2575 = vadd.s32 %v2536, 312
      %v2576 = vadd.s32 %v2536, 320
      %v2577 = vadd.s32 %v2536, 328
      %v2578 = vadd.s32 %v2536, 336
      %v2579 = vadd.s32 %v2536, 344
      %v2580 = vadd.s32 %v2536, 352
      %v2581 = vadd.s32 %v2536, 360
      %v2582 = vadd.s32 %v2536, 368
      %v2583 = vadd.s32 %v2536, 376
      %vm2584 = vcmp.lt.s32.totalorder %v2536, 0
      %v2585 = vsub.s32 0, %v2536
      %v2586 = vsel %vm2584, %v2585, %v2536
      %v2587 = vand.u32 %v2586, 65535
      %v2588 = vshrl.u32 %v2586, 16
      %v2590 = vmul.u32 %v2587, 43691
      %v2591 = vmul.u32 %v2587, 43690
      %v2592 = vmul.u32 %v2588, 43691
      %v2593 = vmul.u32 %v2588, 43690
      %v2594 = vshll.u32 %v2591, 16
      %v2595 = vshrl.u32 %v2591, 16
      %v2596 = vshll.u32 %v2592, 16
      %v2597 = vshrl.u32 %v2592, 16
      %vm2598 = vc.u32 %v2590, %v2594
      %v2599 = vsel %vm2598, 1, 0
      %v2600 = vadd.s32 %v2590, %v2594
      %v2601 = vadd.s32 %v2593, %v2599
      %vm2602 = vc.u32 %v2600, %v2596
      %v2603 = vsel %vm2602, 1, 0
      %v2604 = vadd.s32 %v2600, %v2596
      %v2605 = vadd.s32 %v2601, %v2603
      %v2606 = vadd.s32 %v2605, %v2595
      %v2607 = vadd.s32 %v2606, %v2597
      %v2608 = vshrl.u32 %v2607, 4
      %v2609 = vmul.u32 %v2608, 24
      %v2610 = vsub.s32 %v2586, %v2609
      %v2611 = vsub.s32 0, %v2610
      %v2612 = vsel %vm2584, %v2611, %v2610
      %vm2613 = vcmp.lt.s32.totalorder %v2537, 0
      %v2614 = vsub.s32 0, %v2537
      %v2615 = vsel %vm2613, %v2614, %v2537
      %v2616 = vand.u32 %v2615, 65535
      %v2617 = vshrl.u32 %v2615, 16
      %v2619 = vmul.u32 %v2616, 43691
      %v2620 = vmul.u32 %v2616, 43690
      %v2621 = vmul.u32 %v2617, 43691
      %v2622 = vmul.u32 %v2617, 43690
      %v2623 = vshll.u32 %v2620, 16
      %v2624 = vshrl.u32 %v2620, 16
      %v2625 = vshll.u32 %v2621, 16
      %v2626 = vshrl.u32 %v2621, 16
      %vm2627 = vc.u32 %v2619, %v2623
      %v2628 = vsel %vm2627, 1, 0
      %v2629 = vadd.s32 %v2619, %v2623
      %v2630 = vadd.s32 %v2622, %v2628
      %vm2631 = vc.u32 %v2629, %v2625
      %v2632 = vsel %vm2631, 1, 0
      %v2633 = vadd.s32 %v2629, %v2625
      %v2634 = vadd.s32 %v2630, %v2632
      %v2635 = vadd.s32 %v2634, %v2624
      %v2636 = vadd.s32 %v2635, %v2626
      %v2637 = vshrl.u32 %v2636, 4
      %v2638 = vmul.u32 %v2637, 24
      %v2639 = vsub.s32 %v2615, %v2638
      %v2640 = vsub.s32 0, %v2639
      %v2641 = vsel %vm2613, %v2640, %v2639
      %vm2642 = vcmp.lt.s32.totalorder %v2538, 0
      %v2643 = vsub.s32 0, %v2538
      %v2644 = vsel %vm2642, %v2643, %v2538
      %v2645 = vand.u32 %v2644, 65535
      %v2646 = vshrl.u32 %v2644, 16
      %v2648 = vmul.u32 %v2645, 43691
      %v2649 = vmul.u32 %v2645, 43690
      %v2650 = vmul.u32 %v2646, 43691
      %v2651 = vmul.u32 %v2646, 43690
      %v2652 = vshll.u32 %v2649, 16
      %v2653 = vshrl.u32 %v2649, 16
      %v2654 = vshll.u32 %v2650, 16
      %v2655 = vshrl.u32 %v2650, 16
      %vm2656 = vc.u32 %v2648, %v2652
      %v2657 = vsel %vm2656, 1, 0
      %v2658 = vadd.s32 %v2648, %v2652
      %v2659 = vadd.s32 %v2651, %v2657
      %vm2660 = vc.u32 %v2658, %v2654
      %v2661 = vsel %vm2660, 1, 0
      %v2662 = vadd.s32 %v2658, %v2654
      %v2663 = vadd.s32 %v2659, %v2661
      %v2664 = vadd.s32 %v2663, %v2653
      %v2665 = vadd.s32 %v2664, %v2655
      %v2666 = vshrl.u32 %v2665, 4
      %v2667 = vmul.u32 %v2666, 24
      %v2668 = vsub.s32 %v2644, %v2667
      %v2669 = vsub.s32 0, %v2668
      %v2670 = vsel %vm2642, %v2669, %v2668
      %vm2671 = vcmp.lt.s32.totalorder %v2539, 0
      %v2672 = vsub.s32 0, %v2539
      %v2673 = vsel %vm2671, %v2672, %v2539
      %v2674 = vand.u32 %v2673, 65535
      %v2675 = vshrl.u32 %v2673, 16
      %v2677 = vmul.u32 %v2674, 43691
      %v2678 = vmul.u32 %v2674, 43690
      %v2679 = vmul.u32 %v2675, 43691
      %v2680 = vmul.u32 %v2675, 43690
      %v2681 = vshll.u32 %v2678, 16
      %v2682 = vshrl.u32 %v2678, 16
      %v2683 = vshll.u32 %v2679, 16
      %v2684 = vshrl.u32 %v2679, 16
      %vm2685 = vc.u32 %v2677, %v2681
      %v2686 = vsel %vm2685, 1, 0
      %v2687 = vadd.s32 %v2677, %v2681
      %v2688 = vadd.s32 %v2680, %v2686
      %vm2689 = vc.u32 %v2687, %v2683
      %v2690 = vsel %vm2689, 1, 0
      %v2691 = vadd.s32 %v2687, %v2683
      %v2692 = vadd.s32 %v2688, %v2690
      %v2693 = vadd.s32 %v2692, %v2682
      %v2694 = vadd.s32 %v2693, %v2684
      %v2695 = vshrl.u32 %v2694, 4
      %v2696 = vmul.u32 %v2695, 24
      %v2697 = vsub.s32 %v2673, %v2696
      %v2698 = vsub.s32 0, %v2697
      %v2699 = vsel %vm2671, %v2698, %v2697
      %vm2700 = vcmp.lt.s32.totalorder %v2540, 0
      %v2701 = vsub.s32 0, %v2540
      %v2702 = vsel %vm2700, %v2701, %v2540
      %v2703 = vand.u32 %v2702, 65535
      %v2704 = vshrl.u32 %v2702, 16
      %v2706 = vmul.u32 %v2703, 43691
      %v2707 = vmul.u32 %v2703, 43690
      %v2708 = vmul.u32 %v2704, 43691
      %v2709 = vmul.u32 %v2704, 43690
      %v2710 = vshll.u32 %v2707, 16
      %v2711 = vshrl.u32 %v2707, 16
      %v2712 = vshll.u32 %v2708, 16
      %v2713 = vshrl.u32 %v2708, 16
      %vm2714 = vc.u32 %v2706, %v2710
      %v2715 = vsel %vm2714, 1, 0
      %v2716 = vadd.s32 %v2706, %v2710
      %v2717 = vadd.s32 %v2709, %v2715
      %vm2718 = vc.u32 %v2716, %v2712
      %v2719 = vsel %vm2718, 1, 0
      %v2720 = vadd.s32 %v2716, %v2712
      %v2721 = vadd.s32 %v2717, %v2719
      %v2722 = vadd.s32 %v2721, %v2711
      %v2723 = vadd.s32 %v2722, %v2713
      %v2724 = vshrl.u32 %v2723, 4
      %v2725 = vmul.u32 %v2724, 24
      %v2726 = vsub.s32 %v2702, %v2725
      %v2727 = vsub.s32 0, %v2726
      %v2728 = vsel %vm2700, %v2727, %v2726
      %vm2729 = vcmp.lt.s32.totalorder %v2541, 0
      %v2730 = vsub.s32 0, %v2541
      %v2731 = vsel %vm2729, %v2730, %v2541
      %v2732 = vand.u32 %v2731, 65535
      %v2733 = vshrl.u32 %v2731, 16
      %v2735 = vmul.u32 %v2732, 43691
      %v2736 = vmul.u32 %v2732, 43690
      %v2737 = vmul.u32 %v2733, 43691
      %v2738 = vmul.u32 %v2733, 43690
      %v2739 = vshll.u32 %v2736, 16
      %v2740 = vshrl.u32 %v2736, 16
      %v2741 = vshll.u32 %v2737, 16
      %v2742 = vshrl.u32 %v2737, 16
      %vm2743 = vc.u32 %v2735, %v2739
      %v2744 = vsel %vm2743, 1, 0
      %v2745 = vadd.s32 %v2735, %v2739
      %v2746 = vadd.s32 %v2738, %v2744
      %vm2747 = vc.u32 %v2745, %v2741
      %v2748 = vsel %vm2747, 1, 0
      %v2749 = vadd.s32 %v2745, %v2741
      %v2750 = vadd.s32 %v2746, %v2748
      %v2751 = vadd.s32 %v2750, %v2740
      %v2752 = vadd.s32 %v2751, %v2742
      %v2753 = vshrl.u32 %v2752, 4
      %v2754 = vmul.u32 %v2753, 24
      %v2755 = vsub.s32 %v2731, %v2754
      %v2756 = vsub.s32 0, %v2755
      %v2757 = vsel %vm2729, %v2756, %v2755
      %vm2758 = vcmp.lt.s32.totalorder %v2542, 0
      %v2759 = vsub.s32 0, %v2542
      %v2760 = vsel %vm2758, %v2759, %v2542
      %v2761 = vand.u32 %v2760, 65535
      %v2762 = vshrl.u32 %v2760, 16
      %v2764 = vmul.u32 %v2761, 43691
      %v2765 = vmul.u32 %v2761, 43690
      %v2766 = vmul.u32 %v2762, 43691
      %v2767 = vmul.u32 %v2762, 43690
      %v2768 = vshll.u32 %v2765, 16
      %v2769 = vshrl.u32 %v2765, 16
      %v2770 = vshll.u32 %v2766, 16
      %v2771 = vshrl.u32 %v2766, 16
      %vm2772 = vc.u32 %v2764, %v2768
      %v2773 = vsel %vm2772, 1, 0
      %v2774 = vadd.s32 %v2764, %v2768
      %v2775 = vadd.s32 %v2767, %v2773
      %vm2776 = vc.u32 %v2774, %v2770
      %v2777 = vsel %vm2776, 1, 0
      %v2778 = vadd.s32 %v2774, %v2770
      %v2779 = vadd.s32 %v2775, %v2777
      %v2780 = vadd.s32 %v2779, %v2769
      %v2781 = vadd.s32 %v2780, %v2771
      %v2782 = vshrl.u32 %v2781, 4
      %v2783 = vmul.u32 %v2782, 24
      %v2784 = vsub.s32 %v2760, %v2783
      %v2785 = vsub.s32 0, %v2784
      %v2786 = vsel %vm2758, %v2785, %v2784
      %vm2787 = vcmp.lt.s32.totalorder %v2543, 0
      %v2788 = vsub.s32 0, %v2543
      %v2789 = vsel %vm2787, %v2788, %v2543
      %v2790 = vand.u32 %v2789, 65535
      %v2791 = vshrl.u32 %v2789, 16
      %v2793 = vmul.u32 %v2790, 43691
      %v2794 = vmul.u32 %v2790, 43690
      %v2795 = vmul.u32 %v2791, 43691
      %v2796 = vmul.u32 %v2791, 43690
      %v2797 = vshll.u32 %v2794, 16
      %v2798 = vshrl.u32 %v2794, 16
      %v2799 = vshll.u32 %v2795, 16
      %v2800 = vshrl.u32 %v2795, 16
      %vm2801 = vc.u32 %v2793, %v2797
      %v2802 = vsel %vm2801, 1, 0
      %v2803 = vadd.s32 %v2793, %v2797
      %v2804 = vadd.s32 %v2796, %v2802
      %vm2805 = vc.u32 %v2803, %v2799
      %v2806 = vsel %vm2805, 1, 0
      %v2807 = vadd.s32 %v2803, %v2799
      %v2808 = vadd.s32 %v2804, %v2806
      %v2809 = vadd.s32 %v2808, %v2798
      %v2810 = vadd.s32 %v2809, %v2800
      %v2811 = vshrl.u32 %v2810, 4
      %v2812 = vmul.u32 %v2811, 24
      %v2813 = vsub.s32 %v2789, %v2812
      %v2814 = vsub.s32 0, %v2813
      %v2815 = vsel %vm2787, %v2814, %v2813
      %vm2816 = vcmp.lt.s32.totalorder %v2544, 0
      %v2817 = vsub.s32 0, %v2544
      %v2818 = vsel %vm2816, %v2817, %v2544
      %v2819 = vand.u32 %v2818, 65535
      %v2820 = vshrl.u32 %v2818, 16
      %v2822 = vmul.u32 %v2819, 43691
      %v2823 = vmul.u32 %v2819, 43690
      %v2824 = vmul.u32 %v2820, 43691
      %v2825 = vmul.u32 %v2820, 43690
      %v2826 = vshll.u32 %v2823, 16
      %v2827 = vshrl.u32 %v2823, 16
      %v2828 = vshll.u32 %v2824, 16
      %v2829 = vshrl.u32 %v2824, 16
      %vm2830 = vc.u32 %v2822, %v2826
      %v2831 = vsel %vm2830, 1, 0
      %v2832 = vadd.s32 %v2822, %v2826
      %v2833 = vadd.s32 %v2825, %v2831
      %vm2834 = vc.u32 %v2832, %v2828
      %v2835 = vsel %vm2834, 1, 0
      %v2836 = vadd.s32 %v2832, %v2828
      %v2837 = vadd.s32 %v2833, %v2835
      %v2838 = vadd.s32 %v2837, %v2827
      %v2839 = vadd.s32 %v2838, %v2829
      %v2840 = vshrl.u32 %v2839, 4
      %v2841 = vmul.u32 %v2840, 24
      %v2842 = vsub.s32 %v2818, %v2841
      %v2843 = vsub.s32 0, %v2842
      %v2844 = vsel %vm2816, %v2843, %v2842
      %vm2845 = vcmp.lt.s32.totalorder %v2545, 0
      %v2846 = vsub.s32 0, %v2545
      %v2847 = vsel %vm2845, %v2846, %v2545
      %v2848 = vand.u32 %v2847, 65535
      %v2849 = vshrl.u32 %v2847, 16
      %v2851 = vmul.u32 %v2848, 43691
      %v2852 = vmul.u32 %v2848, 43690
      %v2853 = vmul.u32 %v2849, 43691
      %v2854 = vmul.u32 %v2849, 43690
      %v2855 = vshll.u32 %v2852, 16
      %v2856 = vshrl.u32 %v2852, 16
      %v2857 = vshll.u32 %v2853, 16
      %v2858 = vshrl.u32 %v2853, 16
      %vm2859 = vc.u32 %v2851, %v2855
      %v2860 = vsel %vm2859, 1, 0
      %v2861 = vadd.s32 %v2851, %v2855
      %v2862 = vadd.s32 %v2854, %v2860
      %vm2863 = vc.u32 %v2861, %v2857
      %v2864 = vsel %vm2863, 1, 0
      %v2865 = vadd.s32 %v2861, %v2857
      %v2866 = vadd.s32 %v2862, %v2864
      %v2867 = vadd.s32 %v2866, %v2856
      %v2868 = vadd.s32 %v2867, %v2858
      %v2869 = vshrl.u32 %v2868, 4
      %v2870 = vmul.u32 %v2869, 24
      %v2871 = vsub.s32 %v2847, %v2870
      %v2872 = vsub.s32 0, %v2871
      %v2873 = vsel %vm2845, %v2872, %v2871
      %vm2874 = vcmp.lt.s32.totalorder %v2546, 0
      %v2875 = vsub.s32 0, %v2546
      %v2876 = vsel %vm2874, %v2875, %v2546
      %v2877 = vand.u32 %v2876, 65535
      %v2878 = vshrl.u32 %v2876, 16
      %v2880 = vmul.u32 %v2877, 43691
      %v2881 = vmul.u32 %v2877, 43690
      %v2882 = vmul.u32 %v2878, 43691
      %v2883 = vmul.u32 %v2878, 43690
      %v2884 = vshll.u32 %v2881, 16
      %v2885 = vshrl.u32 %v2881, 16
      %v2886 = vshll.u32 %v2882, 16
      %v2887 = vshrl.u32 %v2882, 16
      %vm2888 = vc.u32 %v2880, %v2884
      %v2889 = vsel %vm2888, 1, 0
      %v2890 = vadd.s32 %v2880, %v2884
      %v2891 = vadd.s32 %v2883, %v2889
      %vm2892 = vc.u32 %v2890, %v2886
      %v2893 = vsel %vm2892, 1, 0
      %v2894 = vadd.s32 %v2890, %v2886
      %v2895 = vadd.s32 %v2891, %v2893
      %v2896 = vadd.s32 %v2895, %v2885
      %v2897 = vadd.s32 %v2896, %v2887
      %v2898 = vshrl.u32 %v2897, 4
      %v2899 = vmul.u32 %v2898, 24
      %v2900 = vsub.s32 %v2876, %v2899
      %v2901 = vsub.s32 0, %v2900
      %v2902 = vsel %vm2874, %v2901, %v2900
      %vm2903 = vcmp.lt.s32.totalorder %v2547, 0
      %v2904 = vsub.s32 0, %v2547
      %v2905 = vsel %vm2903, %v2904, %v2547
      %v2906 = vand.u32 %v2905, 65535
      %v2907 = vshrl.u32 %v2905, 16
      %v2909 = vmul.u32 %v2906, 43691
      %v2910 = vmul.u32 %v2906, 43690
      %v2911 = vmul.u32 %v2907, 43691
      %v2912 = vmul.u32 %v2907, 43690
      %v2913 = vshll.u32 %v2910, 16
      %v2914 = vshrl.u32 %v2910, 16
      %v2915 = vshll.u32 %v2911, 16
      %v2916 = vshrl.u32 %v2911, 16
      %vm2917 = vc.u32 %v2909, %v2913
      %v2918 = vsel %vm2917, 1, 0
      %v2919 = vadd.s32 %v2909, %v2913
      %v2920 = vadd.s32 %v2912, %v2918
      %vm2921 = vc.u32 %v2919, %v2915
      %v2922 = vsel %vm2921, 1, 0
      %v2923 = vadd.s32 %v2919, %v2915
      %v2924 = vadd.s32 %v2920, %v2922
      %v2925 = vadd.s32 %v2924, %v2914
      %v2926 = vadd.s32 %v2925, %v2916
      %v2927 = vshrl.u32 %v2926, 4
      %v2928 = vmul.u32 %v2927, 24
      %v2929 = vsub.s32 %v2905, %v2928
      %v2930 = vsub.s32 0, %v2929
      %v2931 = vsel %vm2903, %v2930, %v2929
      %vm2932 = vcmp.lt.s32.totalorder %v2548, 0
      %v2933 = vsub.s32 0, %v2548
      %v2934 = vsel %vm2932, %v2933, %v2548
      %v2935 = vand.u32 %v2934, 65535
      %v2936 = vshrl.u32 %v2934, 16
      %v2938 = vmul.u32 %v2935, 43691
      %v2939 = vmul.u32 %v2935, 43690
      %v2940 = vmul.u32 %v2936, 43691
      %v2941 = vmul.u32 %v2936, 43690
      %v2942 = vshll.u32 %v2939, 16
      %v2943 = vshrl.u32 %v2939, 16
      %v2944 = vshll.u32 %v2940, 16
      %v2945 = vshrl.u32 %v2940, 16
      %vm2946 = vc.u32 %v2938, %v2942
      %v2947 = vsel %vm2946, 1, 0
      %v2948 = vadd.s32 %v2938, %v2942
      %v2949 = vadd.s32 %v2941, %v2947
      %vm2950 = vc.u32 %v2948, %v2944
      %v2951 = vsel %vm2950, 1, 0
      %v2952 = vadd.s32 %v2948, %v2944
      %v2953 = vadd.s32 %v2949, %v2951
      %v2954 = vadd.s32 %v2953, %v2943
      %v2955 = vadd.s32 %v2954, %v2945
      %v2956 = vshrl.u32 %v2955, 4
      %v2957 = vmul.u32 %v2956, 24
      %v2958 = vsub.s32 %v2934, %v2957
      %v2959 = vsub.s32 0, %v2958
      %v2960 = vsel %vm2932, %v2959, %v2958
      %vm2961 = vcmp.lt.s32.totalorder %v2549, 0
      %v2962 = vsub.s32 0, %v2549
      %v2963 = vsel %vm2961, %v2962, %v2549
      %v2964 = vand.u32 %v2963, 65535
      %v2965 = vshrl.u32 %v2963, 16
      %v2967 = vmul.u32 %v2964, 43691
      %v2968 = vmul.u32 %v2964, 43690
      %v2969 = vmul.u32 %v2965, 43691
      %v2970 = vmul.u32 %v2965, 43690
      %v2971 = vshll.u32 %v2968, 16
      %v2972 = vshrl.u32 %v2968, 16
      %v2973 = vshll.u32 %v2969, 16
      %v2974 = vshrl.u32 %v2969, 16
      %vm2975 = vc.u32 %v2967, %v2971
      %v2976 = vsel %vm2975, 1, 0
      %v2977 = vadd.s32 %v2967, %v2971
      %v2978 = vadd.s32 %v2970, %v2976
      %vm2979 = vc.u32 %v2977, %v2973
      %v2980 = vsel %vm2979, 1, 0
      %v2981 = vadd.s32 %v2977, %v2973
      %v2982 = vadd.s32 %v2978, %v2980
      %v2983 = vadd.s32 %v2982, %v2972
      %v2984 = vadd.s32 %v2983, %v2974
      %v2985 = vshrl.u32 %v2984, 4
      %v2986 = vmul.u32 %v2985, 24
      %v2987 = vsub.s32 %v2963, %v2986
      %v2988 = vsub.s32 0, %v2987
      %v2989 = vsel %vm2961, %v2988, %v2987
      %vm2990 = vcmp.lt.s32.totalorder %v2550, 0
      %v2991 = vsub.s32 0, %v2550
      %v2992 = vsel %vm2990, %v2991, %v2550
      %v2993 = vand.u32 %v2992, 65535
      %v2994 = vshrl.u32 %v2992, 16
      %v2996 = vmul.u32 %v2993, 43691
      %v2997 = vmul.u32 %v2993, 43690
      %v2998 = vmul.u32 %v2994, 43691
      %v2999 = vmul.u32 %v2994, 43690
      %v3000 = vshll.u32 %v2997, 16
      %v3001 = vshrl.u32 %v2997, 16
      %v3002 = vshll.u32 %v2998, 16
      %v3003 = vshrl.u32 %v2998, 16
      %vm3004 = vc.u32 %v2996, %v3000
      %v3005 = vsel %vm3004, 1, 0
      %v3006 = vadd.s32 %v2996, %v3000
      %v3007 = vadd.s32 %v2999, %v3005
      %vm3008 = vc.u32 %v3006, %v3002
      %v3009 = vsel %vm3008, 1, 0
      %v3010 = vadd.s32 %v3006, %v3002
      %v3011 = vadd.s32 %v3007, %v3009
      %v3012 = vadd.s32 %v3011, %v3001
      %v3013 = vadd.s32 %v3012, %v3003
      %v3014 = vshrl.u32 %v3013, 4
      %v3015 = vmul.u32 %v3014, 24
      %v3016 = vsub.s32 %v2992, %v3015
      %v3017 = vsub.s32 0, %v3016
      %v3018 = vsel %vm2990, %v3017, %v3016
      %vm3019 = vcmp.lt.s32.totalorder %v2551, 0
      %v3020 = vsub.s32 0, %v2551
      %v3021 = vsel %vm3019, %v3020, %v2551
      %v3022 = vand.u32 %v3021, 65535
      %v3023 = vshrl.u32 %v3021, 16
      %v3025 = vmul.u32 %v3022, 43691
      %v3026 = vmul.u32 %v3022, 43690
      %v3027 = vmul.u32 %v3023, 43691
      %v3028 = vmul.u32 %v3023, 43690
      %v3029 = vshll.u32 %v3026, 16
      %v3030 = vshrl.u32 %v3026, 16
      %v3031 = vshll.u32 %v3027, 16
      %v3032 = vshrl.u32 %v3027, 16
      %vm3033 = vc.u32 %v3025, %v3029
      %v3034 = vsel %vm3033, 1, 0
      %v3035 = vadd.s32 %v3025, %v3029
      %v3036 = vadd.s32 %v3028, %v3034
      %vm3037 = vc.u32 %v3035, %v3031
      %v3038 = vsel %vm3037, 1, 0
      %v3039 = vadd.s32 %v3035, %v3031
      %v3040 = vadd.s32 %v3036, %v3038
      %v3041 = vadd.s32 %v3040, %v3030
      %v3042 = vadd.s32 %v3041, %v3032
      %v3043 = vshrl.u32 %v3042, 4
      %v3044 = vmul.u32 %v3043, 24
      %v3045 = vsub.s32 %v3021, %v3044
      %v3046 = vsub.s32 0, %v3045
      %v3047 = vsel %vm3019, %v3046, %v3045
      %vm3048 = vcmp.lt.s32.totalorder %v2552, 0
      %v3049 = vsub.s32 0, %v2552
      %v3050 = vsel %vm3048, %v3049, %v2552
      %v3051 = vand.u32 %v3050, 65535
      %v3052 = vshrl.u32 %v3050, 16
      %v3054 = vmul.u32 %v3051, 43691
      %v3055 = vmul.u32 %v3051, 43690
      %v3056 = vmul.u32 %v3052, 43691
      %v3057 = vmul.u32 %v3052, 43690
      %v3058 = vshll.u32 %v3055, 16
      %v3059 = vshrl.u32 %v3055, 16
      %v3060 = vshll.u32 %v3056, 16
      %v3061 = vshrl.u32 %v3056, 16
      %vm3062 = vc.u32 %v3054, %v3058
      %v3063 = vsel %vm3062, 1, 0
      %v3064 = vadd.s32 %v3054, %v3058
      %v3065 = vadd.s32 %v3057, %v3063
      %vm3066 = vc.u32 %v3064, %v3060
      %v3067 = vsel %vm3066, 1, 0
      %v3068 = vadd.s32 %v3064, %v3060
      %v3069 = vadd.s32 %v3065, %v3067
      %v3070 = vadd.s32 %v3069, %v3059
      %v3071 = vadd.s32 %v3070, %v3061
      %v3072 = vshrl.u32 %v3071, 4
      %v3073 = vmul.u32 %v3072, 24
      %v3074 = vsub.s32 %v3050, %v3073
      %v3075 = vsub.s32 0, %v3074
      %v3076 = vsel %vm3048, %v3075, %v3074
      %vm3077 = vcmp.lt.s32.totalorder %v2553, 0
      %v3078 = vsub.s32 0, %v2553
      %v3079 = vsel %vm3077, %v3078, %v2553
      %v3080 = vand.u32 %v3079, 65535
      %v3081 = vshrl.u32 %v3079, 16
      %v3083 = vmul.u32 %v3080, 43691
      %v3084 = vmul.u32 %v3080, 43690
      %v3085 = vmul.u32 %v3081, 43691
      %v3086 = vmul.u32 %v3081, 43690
      %v3087 = vshll.u32 %v3084, 16
      %v3088 = vshrl.u32 %v3084, 16
      %v3089 = vshll.u32 %v3085, 16
      %v3090 = vshrl.u32 %v3085, 16
      %vm3091 = vc.u32 %v3083, %v3087
      %v3092 = vsel %vm3091, 1, 0
      %v3093 = vadd.s32 %v3083, %v3087
      %v3094 = vadd.s32 %v3086, %v3092
      %vm3095 = vc.u32 %v3093, %v3089
      %v3096 = vsel %vm3095, 1, 0
      %v3097 = vadd.s32 %v3093, %v3089
      %v3098 = vadd.s32 %v3094, %v3096
      %v3099 = vadd.s32 %v3098, %v3088
      %v3100 = vadd.s32 %v3099, %v3090
      %v3101 = vshrl.u32 %v3100, 4
      %v3102 = vmul.u32 %v3101, 24
      %v3103 = vsub.s32 %v3079, %v3102
      %v3104 = vsub.s32 0, %v3103
      %v3105 = vsel %vm3077, %v3104, %v3103
      %vm3106 = vcmp.lt.s32.totalorder %v2554, 0
      %v3107 = vsub.s32 0, %v2554
      %v3108 = vsel %vm3106, %v3107, %v2554
      %v3109 = vand.u32 %v3108, 65535
      %v3110 = vshrl.u32 %v3108, 16
      %v3112 = vmul.u32 %v3109, 43691
      %v3113 = vmul.u32 %v3109, 43690
      %v3114 = vmul.u32 %v3110, 43691
      %v3115 = vmul.u32 %v3110, 43690
      %v3116 = vshll.u32 %v3113, 16
      %v3117 = vshrl.u32 %v3113, 16
      %v3118 = vshll.u32 %v3114, 16
      %v3119 = vshrl.u32 %v3114, 16
      %vm3120 = vc.u32 %v3112, %v3116
      %v3121 = vsel %vm3120, 1, 0
      %v3122 = vadd.s32 %v3112, %v3116
      %v3123 = vadd.s32 %v3115, %v3121
      %vm3124 = vc.u32 %v3122, %v3118
      %v3125 = vsel %vm3124, 1, 0
      %v3126 = vadd.s32 %v3122, %v3118
      %v3127 = vadd.s32 %v3123, %v3125
      %v3128 = vadd.s32 %v3127, %v3117
      %v3129 = vadd.s32 %v3128, %v3119
      %v3130 = vshrl.u32 %v3129, 4
      %v3131 = vmul.u32 %v3130, 24
      %v3132 = vsub.s32 %v3108, %v3131
      %v3133 = vsub.s32 0, %v3132
      %v3134 = vsel %vm3106, %v3133, %v3132
      %vm3135 = vcmp.lt.s32.totalorder %v2555, 0
      %v3136 = vsub.s32 0, %v2555
      %v3137 = vsel %vm3135, %v3136, %v2555
      %v3138 = vand.u32 %v3137, 65535
      %v3139 = vshrl.u32 %v3137, 16
      %v3141 = vmul.u32 %v3138, 43691
      %v3142 = vmul.u32 %v3138, 43690
      %v3143 = vmul.u32 %v3139, 43691
      %v3144 = vmul.u32 %v3139, 43690
      %v3145 = vshll.u32 %v3142, 16
      %v3146 = vshrl.u32 %v3142, 16
      %v3147 = vshll.u32 %v3143, 16
      %v3148 = vshrl.u32 %v3143, 16
      %vm3149 = vc.u32 %v3141, %v3145
      %v3150 = vsel %vm3149, 1, 0
      %v3151 = vadd.s32 %v3141, %v3145
      %v3152 = vadd.s32 %v3144, %v3150
      %vm3153 = vc.u32 %v3151, %v3147
      %v3154 = vsel %vm3153, 1, 0
      %v3155 = vadd.s32 %v3151, %v3147
      %v3156 = vadd.s32 %v3152, %v3154
      %v3157 = vadd.s32 %v3156, %v3146
      %v3158 = vadd.s32 %v3157, %v3148
      %v3159 = vshrl.u32 %v3158, 4
      %v3160 = vmul.u32 %v3159, 24
      %v3161 = vsub.s32 %v3137, %v3160
      %v3162 = vsub.s32 0, %v3161
      %v3163 = vsel %vm3135, %v3162, %v3161
      %vm3164 = vcmp.lt.s32.totalorder %v2556, 0
      %v3165 = vsub.s32 0, %v2556
      %v3166 = vsel %vm3164, %v3165, %v2556
      %v3167 = vand.u32 %v3166, 65535
      %v3168 = vshrl.u32 %v3166, 16
      %v3170 = vmul.u32 %v3167, 43691
      %v3171 = vmul.u32 %v3167, 43690
      %v3172 = vmul.u32 %v3168, 43691
      %v3173 = vmul.u32 %v3168, 43690
      %v3174 = vshll.u32 %v3171, 16
      %v3175 = vshrl.u32 %v3171, 16
      %v3176 = vshll.u32 %v3172, 16
      %v3177 = vshrl.u32 %v3172, 16
      %vm3178 = vc.u32 %v3170, %v3174
      %v3179 = vsel %vm3178, 1, 0
      %v3180 = vadd.s32 %v3170, %v3174
      %v3181 = vadd.s32 %v3173, %v3179
      %vm3182 = vc.u32 %v3180, %v3176
      %v3183 = vsel %vm3182, 1, 0
      %v3184 = vadd.s32 %v3180, %v3176
      %v3185 = vadd.s32 %v3181, %v3183
      %v3186 = vadd.s32 %v3185, %v3175
      %v3187 = vadd.s32 %v3186, %v3177
      %v3188 = vshrl.u32 %v3187, 4
      %v3189 = vmul.u32 %v3188, 24
      %v3190 = vsub.s32 %v3166, %v3189
      %v3191 = vsub.s32 0, %v3190
      %v3192 = vsel %vm3164, %v3191, %v3190
      %vm3193 = vcmp.lt.s32.totalorder %v2557, 0
      %v3194 = vsub.s32 0, %v2557
      %v3195 = vsel %vm3193, %v3194, %v2557
      %v3196 = vand.u32 %v3195, 65535
      %v3197 = vshrl.u32 %v3195, 16
      %v3199 = vmul.u32 %v3196, 43691
      %v3200 = vmul.u32 %v3196, 43690
      %v3201 = vmul.u32 %v3197, 43691
      %v3202 = vmul.u32 %v3197, 43690
      %v3203 = vshll.u32 %v3200, 16
      %v3204 = vshrl.u32 %v3200, 16
      %v3205 = vshll.u32 %v3201, 16
      %v3206 = vshrl.u32 %v3201, 16
      %vm3207 = vc.u32 %v3199, %v3203
      %v3208 = vsel %vm3207, 1, 0
      %v3209 = vadd.s32 %v3199, %v3203
      %v3210 = vadd.s32 %v3202, %v3208
      %vm3211 = vc.u32 %v3209, %v3205
      %v3212 = vsel %vm3211, 1, 0
      %v3213 = vadd.s32 %v3209, %v3205
      %v3214 = vadd.s32 %v3210, %v3212
      %v3215 = vadd.s32 %v3214, %v3204
      %v3216 = vadd.s32 %v3215, %v3206
      %v3217 = vshrl.u32 %v3216, 4
      %v3218 = vmul.u32 %v3217, 24
      %v3219 = vsub.s32 %v3195, %v3218
      %v3220 = vsub.s32 0, %v3219
      %v3221 = vsel %vm3193, %v3220, %v3219
      %vm3222 = vcmp.lt.s32.totalorder %v2558, 0
      %v3223 = vsub.s32 0, %v2558
      %v3224 = vsel %vm3222, %v3223, %v2558
      %v3225 = vand.u32 %v3224, 65535
      %v3226 = vshrl.u32 %v3224, 16
      %v3228 = vmul.u32 %v3225, 43691
      %v3229 = vmul.u32 %v3225, 43690
      %v3230 = vmul.u32 %v3226, 43691
      %v3231 = vmul.u32 %v3226, 43690
      %v3232 = vshll.u32 %v3229, 16
      %v3233 = vshrl.u32 %v3229, 16
      %v3234 = vshll.u32 %v3230, 16
      %v3235 = vshrl.u32 %v3230, 16
      %vm3236 = vc.u32 %v3228, %v3232
      %v3237 = vsel %vm3236, 1, 0
      %v3238 = vadd.s32 %v3228, %v3232
      %v3239 = vadd.s32 %v3231, %v3237
      %vm3240 = vc.u32 %v3238, %v3234
      %v3241 = vsel %vm3240, 1, 0
      %v3242 = vadd.s32 %v3238, %v3234
      %v3243 = vadd.s32 %v3239, %v3241
      %v3244 = vadd.s32 %v3243, %v3233
      %v3245 = vadd.s32 %v3244, %v3235
      %v3246 = vshrl.u32 %v3245, 4
      %v3247 = vmul.u32 %v3246, 24
      %v3248 = vsub.s32 %v3224, %v3247
      %v3249 = vsub.s32 0, %v3248
      %v3250 = vsel %vm3222, %v3249, %v3248
      %vm3251 = vcmp.lt.s32.totalorder %v2559, 0
      %v3252 = vsub.s32 0, %v2559
      %v3253 = vsel %vm3251, %v3252, %v2559
      %v3254 = vand.u32 %v3253, 65535
      %v3255 = vshrl.u32 %v3253, 16
      %v3257 = vmul.u32 %v3254, 43691
      %v3258 = vmul.u32 %v3254, 43690
      %v3259 = vmul.u32 %v3255, 43691
      %v3260 = vmul.u32 %v3255, 43690
      %v3261 = vshll.u32 %v3258, 16
      %v3262 = vshrl.u32 %v3258, 16
      %v3263 = vshll.u32 %v3259, 16
      %v3264 = vshrl.u32 %v3259, 16
      %vm3265 = vc.u32 %v3257, %v3261
      %v3266 = vsel %vm3265, 1, 0
      %v3267 = vadd.s32 %v3257, %v3261
      %v3268 = vadd.s32 %v3260, %v3266
      %vm3269 = vc.u32 %v3267, %v3263
      %v3270 = vsel %vm3269, 1, 0
      %v3271 = vadd.s32 %v3267, %v3263
      %v3272 = vadd.s32 %v3268, %v3270
      %v3273 = vadd.s32 %v3272, %v3262
      %v3274 = vadd.s32 %v3273, %v3264
      %v3275 = vshrl.u32 %v3274, 4
      %v3276 = vmul.u32 %v3275, 24
      %v3277 = vsub.s32 %v3253, %v3276
      %v3278 = vsub.s32 0, %v3277
      %v3279 = vsel %vm3251, %v3278, %v3277
      %vm3280 = vcmp.lt.s32.totalorder %v2560, 0
      %v3281 = vsub.s32 0, %v2560
      %v3282 = vsel %vm3280, %v3281, %v2560
      %v3283 = vand.u32 %v3282, 65535
      %v3284 = vshrl.u32 %v3282, 16
      %v3286 = vmul.u32 %v3283, 43691
      %v3287 = vmul.u32 %v3283, 43690
      %v3288 = vmul.u32 %v3284, 43691
      %v3289 = vmul.u32 %v3284, 43690
      %v3290 = vshll.u32 %v3287, 16
      %v3291 = vshrl.u32 %v3287, 16
      %v3292 = vshll.u32 %v3288, 16
      %v3293 = vshrl.u32 %v3288, 16
      %vm3294 = vc.u32 %v3286, %v3290
      %v3295 = vsel %vm3294, 1, 0
      %v3296 = vadd.s32 %v3286, %v3290
      %v3297 = vadd.s32 %v3289, %v3295
      %vm3298 = vc.u32 %v3296, %v3292
      %v3299 = vsel %vm3298, 1, 0
      %v3300 = vadd.s32 %v3296, %v3292
      %v3301 = vadd.s32 %v3297, %v3299
      %v3302 = vadd.s32 %v3301, %v3291
      %v3303 = vadd.s32 %v3302, %v3293
      %v3304 = vshrl.u32 %v3303, 4
      %v3305 = vmul.u32 %v3304, 24
      %v3306 = vsub.s32 %v3282, %v3305
      %v3307 = vsub.s32 0, %v3306
      %v3308 = vsel %vm3280, %v3307, %v3306
      %vm3309 = vcmp.lt.s32.totalorder %v2561, 0
      %v3310 = vsub.s32 0, %v2561
      %v3311 = vsel %vm3309, %v3310, %v2561
      %v3312 = vand.u32 %v3311, 65535
      %v3313 = vshrl.u32 %v3311, 16
      %v3315 = vmul.u32 %v3312, 43691
      %v3316 = vmul.u32 %v3312, 43690
      %v3317 = vmul.u32 %v3313, 43691
      %v3318 = vmul.u32 %v3313, 43690
      %v3319 = vshll.u32 %v3316, 16
      %v3320 = vshrl.u32 %v3316, 16
      %v3321 = vshll.u32 %v3317, 16
      %v3322 = vshrl.u32 %v3317, 16
      %vm3323 = vc.u32 %v3315, %v3319
      %v3324 = vsel %vm3323, 1, 0
      %v3325 = vadd.s32 %v3315, %v3319
      %v3326 = vadd.s32 %v3318, %v3324
      %vm3327 = vc.u32 %v3325, %v3321
      %v3328 = vsel %vm3327, 1, 0
      %v3329 = vadd.s32 %v3325, %v3321
      %v3330 = vadd.s32 %v3326, %v3328
      %v3331 = vadd.s32 %v3330, %v3320
      %v3332 = vadd.s32 %v3331, %v3322
      %v3333 = vshrl.u32 %v3332, 4
      %v3334 = vmul.u32 %v3333, 24
      %v3335 = vsub.s32 %v3311, %v3334
      %v3336 = vsub.s32 0, %v3335
      %v3337 = vsel %vm3309, %v3336, %v3335
      %vm3338 = vcmp.lt.s32.totalorder %v2562, 0
      %v3339 = vsub.s32 0, %v2562
      %v3340 = vsel %vm3338, %v3339, %v2562
      %v3341 = vand.u32 %v3340, 65535
      %v3342 = vshrl.u32 %v3340, 16
      %v3344 = vmul.u32 %v3341, 43691
      %v3345 = vmul.u32 %v3341, 43690
      %v3346 = vmul.u32 %v3342, 43691
      %v3347 = vmul.u32 %v3342, 43690
      %v3348 = vshll.u32 %v3345, 16
      %v3349 = vshrl.u32 %v3345, 16
      %v3350 = vshll.u32 %v3346, 16
      %v3351 = vshrl.u32 %v3346, 16
      %vm3352 = vc.u32 %v3344, %v3348
      %v3353 = vsel %vm3352, 1, 0
      %v3354 = vadd.s32 %v3344, %v3348
      %v3355 = vadd.s32 %v3347, %v3353
      %vm3356 = vc.u32 %v3354, %v3350
      %v3357 = vsel %vm3356, 1, 0
      %v3358 = vadd.s32 %v3354, %v3350
      %v3359 = vadd.s32 %v3355, %v3357
      %v3360 = vadd.s32 %v3359, %v3349
      %v3361 = vadd.s32 %v3360, %v3351
      %v3362 = vshrl.u32 %v3361, 4
      %v3363 = vmul.u32 %v3362, 24
      %v3364 = vsub.s32 %v3340, %v3363
      %v3365 = vsub.s32 0, %v3364
      %v3366 = vsel %vm3338, %v3365, %v3364
      %vm3367 = vcmp.lt.s32.totalorder %v2563, 0
      %v3368 = vsub.s32 0, %v2563
      %v3369 = vsel %vm3367, %v3368, %v2563
      %v3370 = vand.u32 %v3369, 65535
      %v3371 = vshrl.u32 %v3369, 16
      %v3373 = vmul.u32 %v3370, 43691
      %v3374 = vmul.u32 %v3370, 43690
      %v3375 = vmul.u32 %v3371, 43691
      %v3376 = vmul.u32 %v3371, 43690
      %v3377 = vshll.u32 %v3374, 16
      %v3378 = vshrl.u32 %v3374, 16
      %v3379 = vshll.u32 %v3375, 16
      %v3380 = vshrl.u32 %v3375, 16
      %vm3381 = vc.u32 %v3373, %v3377
      %v3382 = vsel %vm3381, 1, 0
      %v3383 = vadd.s32 %v3373, %v3377
      %v3384 = vadd.s32 %v3376, %v3382
      %vm3385 = vc.u32 %v3383, %v3379
      %v3386 = vsel %vm3385, 1, 0
      %v3387 = vadd.s32 %v3383, %v3379
      %v3388 = vadd.s32 %v3384, %v3386
      %v3389 = vadd.s32 %v3388, %v3378
      %v3390 = vadd.s32 %v3389, %v3380
      %v3391 = vshrl.u32 %v3390, 4
      %v3392 = vmul.u32 %v3391, 24
      %v3393 = vsub.s32 %v3369, %v3392
      %v3394 = vsub.s32 0, %v3393
      %v3395 = vsel %vm3367, %v3394, %v3393
      %vm3396 = vcmp.lt.s32.totalorder %v2564, 0
      %v3397 = vsub.s32 0, %v2564
      %v3398 = vsel %vm3396, %v3397, %v2564
      %v3399 = vand.u32 %v3398, 65535
      %v3400 = vshrl.u32 %v3398, 16
      %v3402 = vmul.u32 %v3399, 43691
      %v3403 = vmul.u32 %v3399, 43690
      %v3404 = vmul.u32 %v3400, 43691
      %v3405 = vmul.u32 %v3400, 43690
      %v3406 = vshll.u32 %v3403, 16
      %v3407 = vshrl.u32 %v3403, 16
      %v3408 = vshll.u32 %v3404, 16
      %v3409 = vshrl.u32 %v3404, 16
      %vm3410 = vc.u32 %v3402, %v3406
      %v3411 = vsel %vm3410, 1, 0
      %v3412 = vadd.s32 %v3402, %v3406
      %v3413 = vadd.s32 %v3405, %v3411
      %vm3414 = vc.u32 %v3412, %v3408
      %v3415 = vsel %vm3414, 1, 0
      %v3416 = vadd.s32 %v3412, %v3408
      %v3417 = vadd.s32 %v3413, %v3415
      %v3418 = vadd.s32 %v3417, %v3407
      %v3419 = vadd.s32 %v3418, %v3409
      %v3420 = vshrl.u32 %v3419, 4
      %v3421 = vmul.u32 %v3420, 24
      %v3422 = vsub.s32 %v3398, %v3421
      %v3423 = vsub.s32 0, %v3422
      %v3424 = vsel %vm3396, %v3423, %v3422
      %vm3425 = vcmp.lt.s32.totalorder %v2565, 0
      %v3426 = vsub.s32 0, %v2565
      %v3427 = vsel %vm3425, %v3426, %v2565
      %v3428 = vand.u32 %v3427, 65535
      %v3429 = vshrl.u32 %v3427, 16
      %v3431 = vmul.u32 %v3428, 43691
      %v3432 = vmul.u32 %v3428, 43690
      %v3433 = vmul.u32 %v3429, 43691
      %v3434 = vmul.u32 %v3429, 43690
      %v3435 = vshll.u32 %v3432, 16
      %v3436 = vshrl.u32 %v3432, 16
      %v3437 = vshll.u32 %v3433, 16
      %v3438 = vshrl.u32 %v3433, 16
      %vm3439 = vc.u32 %v3431, %v3435
      %v3440 = vsel %vm3439, 1, 0
      %v3441 = vadd.s32 %v3431, %v3435
      %v3442 = vadd.s32 %v3434, %v3440
      %vm3443 = vc.u32 %v3441, %v3437
      %v3444 = vsel %vm3443, 1, 0
      %v3445 = vadd.s32 %v3441, %v3437
      %v3446 = vadd.s32 %v3442, %v3444
      %v3447 = vadd.s32 %v3446, %v3436
      %v3448 = vadd.s32 %v3447, %v3438
      %v3449 = vshrl.u32 %v3448, 4
      %v3450 = vmul.u32 %v3449, 24
      %v3451 = vsub.s32 %v3427, %v3450
      %v3452 = vsub.s32 0, %v3451
      %v3453 = vsel %vm3425, %v3452, %v3451
      %vm3454 = vcmp.lt.s32.totalorder %v2566, 0
      %v3455 = vsub.s32 0, %v2566
      %v3456 = vsel %vm3454, %v3455, %v2566
      %v3457 = vand.u32 %v3456, 65535
      %v3458 = vshrl.u32 %v3456, 16
      %v3460 = vmul.u32 %v3457, 43691
      %v3461 = vmul.u32 %v3457, 43690
      %v3462 = vmul.u32 %v3458, 43691
      %v3463 = vmul.u32 %v3458, 43690
      %v3464 = vshll.u32 %v3461, 16
      %v3465 = vshrl.u32 %v3461, 16
      %v3466 = vshll.u32 %v3462, 16
      %v3467 = vshrl.u32 %v3462, 16
      %vm3468 = vc.u32 %v3460, %v3464
      %v3469 = vsel %vm3468, 1, 0
      %v3470 = vadd.s32 %v3460, %v3464
      %v3471 = vadd.s32 %v3463, %v3469
      %vm3472 = vc.u32 %v3470, %v3466
      %v3473 = vsel %vm3472, 1, 0
      %v3474 = vadd.s32 %v3470, %v3466
      %v3475 = vadd.s32 %v3471, %v3473
      %v3476 = vadd.s32 %v3475, %v3465
      %v3477 = vadd.s32 %v3476, %v3467
      %v3478 = vshrl.u32 %v3477, 4
      %v3479 = vmul.u32 %v3478, 24
      %v3480 = vsub.s32 %v3456, %v3479
      %v3481 = vsub.s32 0, %v3480
      %v3482 = vsel %vm3454, %v3481, %v3480
      %vm3483 = vcmp.lt.s32.totalorder %v2567, 0
      %v3484 = vsub.s32 0, %v2567
      %v3485 = vsel %vm3483, %v3484, %v2567
      %v3486 = vand.u32 %v3485, 65535
      %v3487 = vshrl.u32 %v3485, 16
      %v3489 = vmul.u32 %v3486, 43691
      %v3490 = vmul.u32 %v3486, 43690
      %v3491 = vmul.u32 %v3487, 43691
      %v3492 = vmul.u32 %v3487, 43690
      %v3493 = vshll.u32 %v3490, 16
      %v3494 = vshrl.u32 %v3490, 16
      %v3495 = vshll.u32 %v3491, 16
      %v3496 = vshrl.u32 %v3491, 16
      %vm3497 = vc.u32 %v3489, %v3493
      %v3498 = vsel %vm3497, 1, 0
      %v3499 = vadd.s32 %v3489, %v3493
      %v3500 = vadd.s32 %v3492, %v3498
      %vm3501 = vc.u32 %v3499, %v3495
      %v3502 = vsel %vm3501, 1, 0
      %v3503 = vadd.s32 %v3499, %v3495
      %v3504 = vadd.s32 %v3500, %v3502
      %v3505 = vadd.s32 %v3504, %v3494
      %v3506 = vadd.s32 %v3505, %v3496
      %v3507 = vshrl.u32 %v3506, 4
      %v3508 = vmul.u32 %v3507, 24
      %v3509 = vsub.s32 %v3485, %v3508
      %v3510 = vsub.s32 0, %v3509
      %v3511 = vsel %vm3483, %v3510, %v3509
      %vm3512 = vcmp.lt.s32.totalorder %v2568, 0
      %v3513 = vsub.s32 0, %v2568
      %v3514 = vsel %vm3512, %v3513, %v2568
      %v3515 = vand.u32 %v3514, 65535
      %v3516 = vshrl.u32 %v3514, 16
      %v3518 = vmul.u32 %v3515, 43691
      %v3519 = vmul.u32 %v3515, 43690
      %v3520 = vmul.u32 %v3516, 43691
      %v3521 = vmul.u32 %v3516, 43690
      %v3522 = vshll.u32 %v3519, 16
      %v3523 = vshrl.u32 %v3519, 16
      %v3524 = vshll.u32 %v3520, 16
      %v3525 = vshrl.u32 %v3520, 16
      %vm3526 = vc.u32 %v3518, %v3522
      %v3527 = vsel %vm3526, 1, 0
      %v3528 = vadd.s32 %v3518, %v3522
      %v3529 = vadd.s32 %v3521, %v3527
      %vm3530 = vc.u32 %v3528, %v3524
      %v3531 = vsel %vm3530, 1, 0
      %v3532 = vadd.s32 %v3528, %v3524
      %v3533 = vadd.s32 %v3529, %v3531
      %v3534 = vadd.s32 %v3533, %v3523
      %v3535 = vadd.s32 %v3534, %v3525
      %v3536 = vshrl.u32 %v3535, 4
      %v3537 = vmul.u32 %v3536, 24
      %v3538 = vsub.s32 %v3514, %v3537
      %v3539 = vsub.s32 0, %v3538
      %v3540 = vsel %vm3512, %v3539, %v3538
      %vm3541 = vcmp.lt.s32.totalorder %v2569, 0
      %v3542 = vsub.s32 0, %v2569
      %v3543 = vsel %vm3541, %v3542, %v2569
      %v3544 = vand.u32 %v3543, 65535
      %v3545 = vshrl.u32 %v3543, 16
      %v3547 = vmul.u32 %v3544, 43691
      %v3548 = vmul.u32 %v3544, 43690
      %v3549 = vmul.u32 %v3545, 43691
      %v3550 = vmul.u32 %v3545, 43690
      %v3551 = vshll.u32 %v3548, 16
      %v3552 = vshrl.u32 %v3548, 16
      %v3553 = vshll.u32 %v3549, 16
      %v3554 = vshrl.u32 %v3549, 16
      %vm3555 = vc.u32 %v3547, %v3551
      %v3556 = vsel %vm3555, 1, 0
      %v3557 = vadd.s32 %v3547, %v3551
      %v3558 = vadd.s32 %v3550, %v3556
      %vm3559 = vc.u32 %v3557, %v3553
      %v3560 = vsel %vm3559, 1, 0
      %v3561 = vadd.s32 %v3557, %v3553
      %v3562 = vadd.s32 %v3558, %v3560
      %v3563 = vadd.s32 %v3562, %v3552
      %v3564 = vadd.s32 %v3563, %v3554
      %v3565 = vshrl.u32 %v3564, 4
      %v3566 = vmul.u32 %v3565, 24
      %v3567 = vsub.s32 %v3543, %v3566
      %v3568 = vsub.s32 0, %v3567
      %v3569 = vsel %vm3541, %v3568, %v3567
      %vm3570 = vcmp.lt.s32.totalorder %v2570, 0
      %v3571 = vsub.s32 0, %v2570
      %v3572 = vsel %vm3570, %v3571, %v2570
      %v3573 = vand.u32 %v3572, 65535
      %v3574 = vshrl.u32 %v3572, 16
      %v3576 = vmul.u32 %v3573, 43691
      %v3577 = vmul.u32 %v3573, 43690
      %v3578 = vmul.u32 %v3574, 43691
      %v3579 = vmul.u32 %v3574, 43690
      %v3580 = vshll.u32 %v3577, 16
      %v3581 = vshrl.u32 %v3577, 16
      %v3582 = vshll.u32 %v3578, 16
      %v3583 = vshrl.u32 %v3578, 16
      %vm3584 = vc.u32 %v3576, %v3580
      %v3585 = vsel %vm3584, 1, 0
      %v3586 = vadd.s32 %v3576, %v3580
      %v3587 = vadd.s32 %v3579, %v3585
      %vm3588 = vc.u32 %v3586, %v3582
      %v3589 = vsel %vm3588, 1, 0
      %v3590 = vadd.s32 %v3586, %v3582
      %v3591 = vadd.s32 %v3587, %v3589
      %v3592 = vadd.s32 %v3591, %v3581
      %v3593 = vadd.s32 %v3592, %v3583
      %v3594 = vshrl.u32 %v3593, 4
      %v3595 = vmul.u32 %v3594, 24
      %v3596 = vsub.s32 %v3572, %v3595
      %v3597 = vsub.s32 0, %v3596
      %v3598 = vsel %vm3570, %v3597, %v3596
      %vm3599 = vcmp.lt.s32.totalorder %v2571, 0
      %v3600 = vsub.s32 0, %v2571
      %v3601 = vsel %vm3599, %v3600, %v2571
      %v3602 = vand.u32 %v3601, 65535
      %v3603 = vshrl.u32 %v3601, 16
      %v3605 = vmul.u32 %v3602, 43691
      %v3606 = vmul.u32 %v3602, 43690
      %v3607 = vmul.u32 %v3603, 43691
      %v3608 = vmul.u32 %v3603, 43690
      %v3609 = vshll.u32 %v3606, 16
      %v3610 = vshrl.u32 %v3606, 16
      %v3611 = vshll.u32 %v3607, 16
      %v3612 = vshrl.u32 %v3607, 16
      %vm3613 = vc.u32 %v3605, %v3609
      %v3614 = vsel %vm3613, 1, 0
      %v3615 = vadd.s32 %v3605, %v3609
      %v3616 = vadd.s32 %v3608, %v3614
      %vm3617 = vc.u32 %v3615, %v3611
      %v3618 = vsel %vm3617, 1, 0
      %v3619 = vadd.s32 %v3615, %v3611
      %v3620 = vadd.s32 %v3616, %v3618
      %v3621 = vadd.s32 %v3620, %v3610
      %v3622 = vadd.s32 %v3621, %v3612
      %v3623 = vshrl.u32 %v3622, 4
      %v3624 = vmul.u32 %v3623, 24
      %v3625 = vsub.s32 %v3601, %v3624
      %v3626 = vsub.s32 0, %v3625
      %v3627 = vsel %vm3599, %v3626, %v3625
      %vm3628 = vcmp.lt.s32.totalorder %v2572, 0
      %v3629 = vsub.s32 0, %v2572
      %v3630 = vsel %vm3628, %v3629, %v2572
      %v3631 = vand.u32 %v3630, 65535
      %v3632 = vshrl.u32 %v3630, 16
      %v3634 = vmul.u32 %v3631, 43691
      %v3635 = vmul.u32 %v3631, 43690
      %v3636 = vmul.u32 %v3632, 43691
      %v3637 = vmul.u32 %v3632, 43690
      %v3638 = vshll.u32 %v3635, 16
      %v3639 = vshrl.u32 %v3635, 16
      %v3640 = vshll.u32 %v3636, 16
      %v3641 = vshrl.u32 %v3636, 16
      %vm3642 = vc.u32 %v3634, %v3638
      %v3643 = vsel %vm3642, 1, 0
      %v3644 = vadd.s32 %v3634, %v3638
      %v3645 = vadd.s32 %v3637, %v3643
      %vm3646 = vc.u32 %v3644, %v3640
      %v3647 = vsel %vm3646, 1, 0
      %v3648 = vadd.s32 %v3644, %v3640
      %v3649 = vadd.s32 %v3645, %v3647
      %v3650 = vadd.s32 %v3649, %v3639
      %v3651 = vadd.s32 %v3650, %v3641
      %v3652 = vshrl.u32 %v3651, 4
      %v3653 = vmul.u32 %v3652, 24
      %v3654 = vsub.s32 %v3630, %v3653
      %v3655 = vsub.s32 0, %v3654
      %v3656 = vsel %vm3628, %v3655, %v3654
      %vm3657 = vcmp.lt.s32.totalorder %v2573, 0
      %v3658 = vsub.s32 0, %v2573
      %v3659 = vsel %vm3657, %v3658, %v2573
      %v3660 = vand.u32 %v3659, 65535
      %v3661 = vshrl.u32 %v3659, 16
      %v3663 = vmul.u32 %v3660, 43691
      %v3664 = vmul.u32 %v3660, 43690
      %v3665 = vmul.u32 %v3661, 43691
      %v3666 = vmul.u32 %v3661, 43690
      %v3667 = vshll.u32 %v3664, 16
      %v3668 = vshrl.u32 %v3664, 16
      %v3669 = vshll.u32 %v3665, 16
      %v3670 = vshrl.u32 %v3665, 16
      %vm3671 = vc.u32 %v3663, %v3667
      %v3672 = vsel %vm3671, 1, 0
      %v3673 = vadd.s32 %v3663, %v3667
      %v3674 = vadd.s32 %v3666, %v3672
      %vm3675 = vc.u32 %v3673, %v3669
      %v3676 = vsel %vm3675, 1, 0
      %v3677 = vadd.s32 %v3673, %v3669
      %v3678 = vadd.s32 %v3674, %v3676
      %v3679 = vadd.s32 %v3678, %v3668
      %v3680 = vadd.s32 %v3679, %v3670
      %v3681 = vshrl.u32 %v3680, 4
      %v3682 = vmul.u32 %v3681, 24
      %v3683 = vsub.s32 %v3659, %v3682
      %v3684 = vsub.s32 0, %v3683
      %v3685 = vsel %vm3657, %v3684, %v3683
      %vm3686 = vcmp.lt.s32.totalorder %v2574, 0
      %v3687 = vsub.s32 0, %v2574
      %v3688 = vsel %vm3686, %v3687, %v2574
      %v3689 = vand.u32 %v3688, 65535
      %v3690 = vshrl.u32 %v3688, 16
      %v3692 = vmul.u32 %v3689, 43691
      %v3693 = vmul.u32 %v3689, 43690
      %v3694 = vmul.u32 %v3690, 43691
      %v3695 = vmul.u32 %v3690, 43690
      %v3696 = vshll.u32 %v3693, 16
      %v3697 = vshrl.u32 %v3693, 16
      %v3698 = vshll.u32 %v3694, 16
      %v3699 = vshrl.u32 %v3694, 16
      %vm3700 = vc.u32 %v3692, %v3696
      %v3701 = vsel %vm3700, 1, 0
      %v3702 = vadd.s32 %v3692, %v3696
      %v3703 = vadd.s32 %v3695, %v3701
      %vm3704 = vc.u32 %v3702, %v3698
      %v3705 = vsel %vm3704, 1, 0
      %v3706 = vadd.s32 %v3702, %v3698
      %v3707 = vadd.s32 %v3703, %v3705
      %v3708 = vadd.s32 %v3707, %v3697
      %v3709 = vadd.s32 %v3708, %v3699
      %v3710 = vshrl.u32 %v3709, 4
      %v3711 = vmul.u32 %v3710, 24
      %v3712 = vsub.s32 %v3688, %v3711
      %v3713 = vsub.s32 0, %v3712
      %v3714 = vsel %vm3686, %v3713, %v3712
      %vm3715 = vcmp.lt.s32.totalorder %v2575, 0
      %v3716 = vsub.s32 0, %v2575
      %v3717 = vsel %vm3715, %v3716, %v2575
      %v3718 = vand.u32 %v3717, 65535
      %v3719 = vshrl.u32 %v3717, 16
      %v3721 = vmul.u32 %v3718, 43691
      %v3722 = vmul.u32 %v3718, 43690
      %v3723 = vmul.u32 %v3719, 43691
      %v3724 = vmul.u32 %v3719, 43690
      %v3725 = vshll.u32 %v3722, 16
      %v3726 = vshrl.u32 %v3722, 16
      %v3727 = vshll.u32 %v3723, 16
      %v3728 = vshrl.u32 %v3723, 16
      %vm3729 = vc.u32 %v3721, %v3725
      %v3730 = vsel %vm3729, 1, 0
      %v3731 = vadd.s32 %v3721, %v3725
      %v3732 = vadd.s32 %v3724, %v3730
      %vm3733 = vc.u32 %v3731, %v3727
      %v3734 = vsel %vm3733, 1, 0
      %v3735 = vadd.s32 %v3731, %v3727
      %v3736 = vadd.s32 %v3732, %v3734
      %v3737 = vadd.s32 %v3736, %v3726
      %v3738 = vadd.s32 %v3737, %v3728
      %v3739 = vshrl.u32 %v3738, 4
      %v3740 = vmul.u32 %v3739, 24
      %v3741 = vsub.s32 %v3717, %v3740
      %v3742 = vsub.s32 0, %v3741
      %v3743 = vsel %vm3715, %v3742, %v3741
      %vm3744 = vcmp.lt.s32.totalorder %v2576, 0
      %v3745 = vsub.s32 0, %v2576
      %v3746 = vsel %vm3744, %v3745, %v2576
      %v3747 = vand.u32 %v3746, 65535
      %v3748 = vshrl.u32 %v3746, 16
      %v3750 = vmul.u32 %v3747, 43691
      %v3751 = vmul.u32 %v3747, 43690
      %v3752 = vmul.u32 %v3748, 43691
      %v3753 = vmul.u32 %v3748, 43690
      %v3754 = vshll.u32 %v3751, 16
      %v3755 = vshrl.u32 %v3751, 16
      %v3756 = vshll.u32 %v3752, 16
      %v3757 = vshrl.u32 %v3752, 16
      %vm3758 = vc.u32 %v3750, %v3754
      %v3759 = vsel %vm3758, 1, 0
      %v3760 = vadd.s32 %v3750, %v3754
      %v3761 = vadd.s32 %v3753, %v3759
      %vm3762 = vc.u32 %v3760, %v3756
      %v3763 = vsel %vm3762, 1, 0
      %v3764 = vadd.s32 %v3760, %v3756
      %v3765 = vadd.s32 %v3761, %v3763
      %v3766 = vadd.s32 %v3765, %v3755
      %v3767 = vadd.s32 %v3766, %v3757
      %v3768 = vshrl.u32 %v3767, 4
      %v3769 = vmul.u32 %v3768, 24
      %v3770 = vsub.s32 %v3746, %v3769
      %v3771 = vsub.s32 0, %v3770
      %v3772 = vsel %vm3744, %v3771, %v3770
      %vm3773 = vcmp.lt.s32.totalorder %v2577, 0
      %v3774 = vsub.s32 0, %v2577
      %v3775 = vsel %vm3773, %v3774, %v2577
      %v3776 = vand.u32 %v3775, 65535
      %v3777 = vshrl.u32 %v3775, 16
      %v3779 = vmul.u32 %v3776, 43691
      %v3780 = vmul.u32 %v3776, 43690
      %v3781 = vmul.u32 %v3777, 43691
      %v3782 = vmul.u32 %v3777, 43690
      %v3783 = vshll.u32 %v3780, 16
      %v3784 = vshrl.u32 %v3780, 16
      %v3785 = vshll.u32 %v3781, 16
      %v3786 = vshrl.u32 %v3781, 16
      %vm3787 = vc.u32 %v3779, %v3783
      %v3788 = vsel %vm3787, 1, 0
      %v3789 = vadd.s32 %v3779, %v3783
      %v3790 = vadd.s32 %v3782, %v3788
      %vm3791 = vc.u32 %v3789, %v3785
      %v3792 = vsel %vm3791, 1, 0
      %v3793 = vadd.s32 %v3789, %v3785
      %v3794 = vadd.s32 %v3790, %v3792
      %v3795 = vadd.s32 %v3794, %v3784
      %v3796 = vadd.s32 %v3795, %v3786
      %v3797 = vshrl.u32 %v3796, 4
      %v3798 = vmul.u32 %v3797, 24
      %v3799 = vsub.s32 %v3775, %v3798
      %v3800 = vsub.s32 0, %v3799
      %v3801 = vsel %vm3773, %v3800, %v3799
      %vm3802 = vcmp.lt.s32.totalorder %v2578, 0
      %v3803 = vsub.s32 0, %v2578
      %v3804 = vsel %vm3802, %v3803, %v2578
      %v3805 = vand.u32 %v3804, 65535
      %v3806 = vshrl.u32 %v3804, 16
      %v3808 = vmul.u32 %v3805, 43691
      %v3809 = vmul.u32 %v3805, 43690
      %v3810 = vmul.u32 %v3806, 43691
      %v3811 = vmul.u32 %v3806, 43690
      %v3812 = vshll.u32 %v3809, 16
      %v3813 = vshrl.u32 %v3809, 16
      %v3814 = vshll.u32 %v3810, 16
      %v3815 = vshrl.u32 %v3810, 16
      %vm3816 = vc.u32 %v3808, %v3812
      %v3817 = vsel %vm3816, 1, 0
      %v3818 = vadd.s32 %v3808, %v3812
      %v3819 = vadd.s32 %v3811, %v3817
      %vm3820 = vc.u32 %v3818, %v3814
      %v3821 = vsel %vm3820, 1, 0
      %v3822 = vadd.s32 %v3818, %v3814
      %v3823 = vadd.s32 %v3819, %v3821
      %v3824 = vadd.s32 %v3823, %v3813
      %v3825 = vadd.s32 %v3824, %v3815
      %v3826 = vshrl.u32 %v3825, 4
      %v3827 = vmul.u32 %v3826, 24
      %v3828 = vsub.s32 %v3804, %v3827
      %v3829 = vsub.s32 0, %v3828
      %v3830 = vsel %vm3802, %v3829, %v3828
      %vm3831 = vcmp.lt.s32.totalorder %v2579, 0
      %v3832 = vsub.s32 0, %v2579
      %v3833 = vsel %vm3831, %v3832, %v2579
      %v3834 = vand.u32 %v3833, 65535
      %v3835 = vshrl.u32 %v3833, 16
      %v3837 = vmul.u32 %v3834, 43691
      %v3838 = vmul.u32 %v3834, 43690
      %v3839 = vmul.u32 %v3835, 43691
      %v3840 = vmul.u32 %v3835, 43690
      %v3841 = vshll.u32 %v3838, 16
      %v3842 = vshrl.u32 %v3838, 16
      %v3843 = vshll.u32 %v3839, 16
      %v3844 = vshrl.u32 %v3839, 16
      %vm3845 = vc.u32 %v3837, %v3841
      %v3846 = vsel %vm3845, 1, 0
      %v3847 = vadd.s32 %v3837, %v3841
      %v3848 = vadd.s32 %v3840, %v3846
      %vm3849 = vc.u32 %v3847, %v3843
      %v3850 = vsel %vm3849, 1, 0
      %v3851 = vadd.s32 %v3847, %v3843
      %v3852 = vadd.s32 %v3848, %v3850
      %v3853 = vadd.s32 %v3852, %v3842
      %v3854 = vadd.s32 %v3853, %v3844
      %v3855 = vshrl.u32 %v3854, 4
      %v3856 = vmul.u32 %v3855, 24
      %v3857 = vsub.s32 %v3833, %v3856
      %v3858 = vsub.s32 0, %v3857
      %v3859 = vsel %vm3831, %v3858, %v3857
      %vm3860 = vcmp.lt.s32.totalorder %v2580, 0
      %v3861 = vsub.s32 0, %v2580
      %v3862 = vsel %vm3860, %v3861, %v2580
      %v3863 = vand.u32 %v3862, 65535
      %v3864 = vshrl.u32 %v3862, 16
      %v3866 = vmul.u32 %v3863, 43691
      %v3867 = vmul.u32 %v3863, 43690
      %v3868 = vmul.u32 %v3864, 43691
      %v3869 = vmul.u32 %v3864, 43690
      %v3870 = vshll.u32 %v3867, 16
      %v3871 = vshrl.u32 %v3867, 16
      %v3872 = vshll.u32 %v3868, 16
      %v3873 = vshrl.u32 %v3868, 16
      %vm3874 = vc.u32 %v3866, %v3870
      %v3875 = vsel %vm3874, 1, 0
      %v3876 = vadd.s32 %v3866, %v3870
      %v3877 = vadd.s32 %v3869, %v3875
      %vm3878 = vc.u32 %v3876, %v3872
      %v3879 = vsel %vm3878, 1, 0
      %v3880 = vadd.s32 %v3876, %v3872
      %v3881 = vadd.s32 %v3877, %v3879
      %v3882 = vadd.s32 %v3881, %v3871
      %v3883 = vadd.s32 %v3882, %v3873
      %v3884 = vshrl.u32 %v3883, 4
      %v3885 = vmul.u32 %v3884, 24
      %v3886 = vsub.s32 %v3862, %v3885
      %v3887 = vsub.s32 0, %v3886
      %v3888 = vsel %vm3860, %v3887, %v3886
      %vm3889 = vcmp.lt.s32.totalorder %v2581, 0
      %v3890 = vsub.s32 0, %v2581
      %v3891 = vsel %vm3889, %v3890, %v2581
      %v3892 = vand.u32 %v3891, 65535
      %v3893 = vshrl.u32 %v3891, 16
      %v3895 = vmul.u32 %v3892, 43691
      %v3896 = vmul.u32 %v3892, 43690
      %v3897 = vmul.u32 %v3893, 43691
      %v3898 = vmul.u32 %v3893, 43690
      %v3899 = vshll.u32 %v3896, 16
      %v3900 = vshrl.u32 %v3896, 16
      %v3901 = vshll.u32 %v3897, 16
      %v3902 = vshrl.u32 %v3897, 16
      %vm3903 = vc.u32 %v3895, %v3899
      %v3904 = vsel %vm3903, 1, 0
      %v3905 = vadd.s32 %v3895, %v3899
      %v3906 = vadd.s32 %v3898, %v3904
      %vm3907 = vc.u32 %v3905, %v3901
      %v3908 = vsel %vm3907, 1, 0
      %v3909 = vadd.s32 %v3905, %v3901
      %v3910 = vadd.s32 %v3906, %v3908
      %v3911 = vadd.s32 %v3910, %v3900
      %v3912 = vadd.s32 %v3911, %v3902
      %v3913 = vshrl.u32 %v3912, 4
      %v3914 = vmul.u32 %v3913, 24
      %v3915 = vsub.s32 %v3891, %v3914
      %v3916 = vsub.s32 0, %v3915
      %v3917 = vsel %vm3889, %v3916, %v3915
      %vm3918 = vcmp.lt.s32.totalorder %v2582, 0
      %v3919 = vsub.s32 0, %v2582
      %v3920 = vsel %vm3918, %v3919, %v2582
      %v3921 = vand.u32 %v3920, 65535
      %v3922 = vshrl.u32 %v3920, 16
      %v3924 = vmul.u32 %v3921, 43691
      %v3925 = vmul.u32 %v3921, 43690
      %v3926 = vmul.u32 %v3922, 43691
      %v3927 = vmul.u32 %v3922, 43690
      %v3928 = vshll.u32 %v3925, 16
      %v3929 = vshrl.u32 %v3925, 16
      %v3930 = vshll.u32 %v3926, 16
      %v3931 = vshrl.u32 %v3926, 16
      %vm3932 = vc.u32 %v3924, %v3928
      %v3933 = vsel %vm3932, 1, 0
      %v3934 = vadd.s32 %v3924, %v3928
      %v3935 = vadd.s32 %v3927, %v3933
      %vm3936 = vc.u32 %v3934, %v3930
      %v3937 = vsel %vm3936, 1, 0
      %v3938 = vadd.s32 %v3934, %v3930
      %v3939 = vadd.s32 %v3935, %v3937
      %v3940 = vadd.s32 %v3939, %v3929
      %v3941 = vadd.s32 %v3940, %v3931
      %v3942 = vshrl.u32 %v3941, 4
      %v3943 = vmul.u32 %v3942, 24
      %v3944 = vsub.s32 %v3920, %v3943
      %v3945 = vsub.s32 0, %v3944
      %v3946 = vsel %vm3918, %v3945, %v3944
      %vm3947 = vcmp.lt.s32.totalorder %v2583, 0
      %v3948 = vsub.s32 0, %v2583
      %v3949 = vsel %vm3947, %v3948, %v2583
      %v3950 = vand.u32 %v3949, 65535
      %v3951 = vshrl.u32 %v3949, 16
      %v3953 = vmul.u32 %v3950, 43691
      %v3954 = vmul.u32 %v3950, 43690
      %v3955 = vmul.u32 %v3951, 43691
      %v3956 = vmul.u32 %v3951, 43690
      %v3957 = vshll.u32 %v3954, 16
      %v3958 = vshrl.u32 %v3954, 16
      %v3959 = vshll.u32 %v3955, 16
      %v3960 = vshrl.u32 %v3955, 16
      %vm3961 = vc.u32 %v3953, %v3957
      %v3962 = vsel %vm3961, 1, 0
      %v3963 = vadd.s32 %v3953, %v3957
      %v3964 = vadd.s32 %v3956, %v3962
      %vm3965 = vc.u32 %v3963, %v3959
      %v3966 = vsel %vm3965, 1, 0
      %v3967 = vadd.s32 %v3963, %v3959
      %v3968 = vadd.s32 %v3964, %v3966
      %v3969 = vadd.s32 %v3968, %v3958
      %v3970 = vadd.s32 %v3969, %v3960
      %v3971 = vshrl.u32 %v3970, 4
      %v3972 = vmul.u32 %v3971, 24
      %v3973 = vsub.s32 %v3949, %v3972
      %v3974 = vsub.s32 0, %v3973
      %v3975 = vsel %vm3947, %v3974, %v3973
      %vm3976 = vcmp.ne.s32.totalorder %v2612, 0
      %vm3977 = vcmp.ne.s32.totalorder %v2641, 0
      %vm3978 = vcmp.ne.s32.totalorder %v2670, 0
      %vm3979 = vcmp.ne.s32.totalorder %v2699, 0
      %vm3980 = vcmp.ne.s32.totalorder %v2728, 0
      %vm3981 = vcmp.ne.s32.totalorder %v2757, 0
      %vm3982 = vcmp.ne.s32.totalorder %v2786, 0
      %vm3983 = vcmp.ne.s32.totalorder %v2815, 0
      %vm3984 = vcmp.ne.s32.totalorder %v2844, 0
      %vm3985 = vcmp.ne.s32.totalorder %v2873, 0
      %vm3986 = vcmp.ne.s32.totalorder %v2902, 0
      %vm3987 = vcmp.ne.s32.totalorder %v2931, 0
      %vm3988 = vcmp.ne.s32.totalorder %v2960, 0
      %vm3989 = vcmp.ne.s32.totalorder %v2989, 0
      %vm3990 = vcmp.ne.s32.totalorder %v3018, 0
      %vm3991 = vcmp.ne.s32.totalorder %v3047, 0
      %vm3992 = vcmp.ne.s32.totalorder %v3076, 0
      %vm3993 = vcmp.ne.s32.totalorder %v3105, 0
      %vm3994 = vcmp.ne.s32.totalorder %v3134, 0
      %vm3995 = vcmp.ne.s32.totalorder %v3163, 0
      %vm3996 = vcmp.ne.s32.totalorder %v3192, 0
      %vm3997 = vcmp.ne.s32.totalorder %v3221, 0
      %vm3998 = vcmp.ne.s32.totalorder %v3250, 0
      %vm3999 = vcmp.ne.s32.totalorder %v3279, 0
      %vm4000 = vcmp.ne.s32.totalorder %v3308, 0
      %vm4001 = vcmp.ne.s32.totalorder %v3337, 0
      %vm4002 = vcmp.ne.s32.totalorder %v3366, 0
      %vm4003 = vcmp.ne.s32.totalorder %v3395, 0
      %vm4004 = vcmp.ne.s32.totalorder %v3424, 0
      %vm4005 = vcmp.ne.s32.totalorder %v3453, 0
      %vm4006 = vcmp.ne.s32.totalorder %v3482, 0
      %vm4007 = vcmp.ne.s32.totalorder %v3511, 0
      %vm4008 = vcmp.ne.s32.totalorder %v3540, 0
      %vm4009 = vcmp.ne.s32.totalorder %v3569, 0
      %vm4010 = vcmp.ne.s32.totalorder %v3598, 0
      %vm4011 = vcmp.ne.s32.totalorder %v3627, 0
      %vm4012 = vcmp.ne.s32.totalorder %v3656, 0
      %vm4013 = vcmp.ne.s32.totalorder %v3685, 0
      %vm4014 = vcmp.ne.s32.totalorder %v3714, 0
      %vm4015 = vcmp.ne.s32.totalorder %v3743, 0
      %vm4016 = vcmp.ne.s32.totalorder %v3772, 0
      %vm4017 = vcmp.ne.s32.totalorder %v3801, 0
      %vm4018 = vcmp.ne.s32.totalorder %v3830, 0
      %vm4019 = vcmp.ne.s32.totalorder %v3859, 0
      %vm4020 = vcmp.ne.s32.totalorder %v3888, 0
      %vm4021 = vcmp.ne.s32.totalorder %v3917, 0
      %vm4022 = vcmp.ne.s32.totalorder %v3946, 0
      %vm4023 = vcmp.ne.s32.totalorder %v3975, 0
      %vm4024 = vcmp.lt.s32.totalorder %v2612, 0
      %vm4025 = vcmp.lt.s32.totalorder %v2641, 0
      %vm4026 = vcmp.lt.s32.totalorder %v2670, 0
      %vm4027 = vcmp.lt.s32.totalorder %v2699, 0
      %vm4028 = vcmp.lt.s32.totalorder %v2728, 0
      %vm4029 = vcmp.lt.s32.totalorder %v2757, 0
      %vm4030 = vcmp.lt.s32.totalorder %v2786, 0
      %vm4031 = vcmp.lt.s32.totalorder %v2815, 0
      %vm4032 = vcmp.lt.s32.totalorder %v2844, 0
      %vm4033 = vcmp.lt.s32.totalorder %v2873, 0
      %vm4034 = vcmp.lt.s32.totalorder %v2902, 0
      %vm4035 = vcmp.lt.s32.totalorder %v2931, 0
      %vm4036 = vcmp.lt.s32.totalorder %v2960, 0
      %vm4037 = vcmp.lt.s32.totalorder %v2989, 0
      %vm4038 = vcmp.lt.s32.totalorder %v3018, 0
      %vm4039 = vcmp.lt.s32.totalorder %v3047, 0
      %vm4040 = vcmp.lt.s32.totalorder %v3076, 0
      %vm4041 = vcmp.lt.s32.totalorder %v3105, 0
      %vm4042 = vcmp.lt.s32.totalorder %v3134, 0
      %vm4043 = vcmp.lt.s32.totalorder %v3163, 0
      %vm4044 = vcmp.lt.s32.totalorder %v3192, 0
      %vm4045 = vcmp.lt.s32.totalorder %v3221, 0
      %vm4046 = vcmp.lt.s32.totalorder %v3250, 0
      %vm4047 = vcmp.lt.s32.totalorder %v3279, 0
      %vm4048 = vcmp.lt.s32.totalorder %v3308, 0
      %vm4049 = vcmp.lt.s32.totalorder %v3337, 0
      %vm4050 = vcmp.lt.s32.totalorder %v3366, 0
      %vm4051 = vcmp.lt.s32.totalorder %v3395, 0
      %vm4052 = vcmp.lt.s32.totalorder %v3424, 0
      %vm4053 = vcmp.lt.s32.totalorder %v3453, 0
      %vm4054 = vcmp.lt.s32.totalorder %v3482, 0
      %vm4055 = vcmp.lt.s32.totalorder %v3511, 0
      %vm4056 = vcmp.lt.s32.totalorder %v3540, 0
      %vm4057 = vcmp.lt.s32.totalorder %v3569, 0
      %vm4058 = vcmp.lt.s32.totalorder %v3598, 0
      %vm4059 = vcmp.lt.s32.totalorder %v3627, 0
      %vm4060 = vcmp.lt.s32.totalorder %v3656, 0
      %vm4061 = vcmp.lt.s32.totalorder %v3685, 0
      %vm4062 = vcmp.lt.s32.totalorder %v3714, 0
      %vm4063 = vcmp.lt.s32.totalorder %v3743, 0
      %vm4064 = vcmp.lt.s32.totalorder %v3772, 0
      %vm4065 = vcmp.lt.s32.totalorder %v3801, 0
      %vm4066 = vcmp.lt.s32.totalorder %v3830, 0
      %vm4067 = vcmp.lt.s32.totalorder %v3859, 0
      %vm4068 = vcmp.lt.s32.totalorder %v3888, 0
      %vm4069 = vcmp.lt.s32.totalorder %v3917, 0
      %vm4070 = vcmp.lt.s32.totalorder %v3946, 0
      %vm4071 = vcmp.lt.s32.totalorder %v3975, 0
      %vm4072 = vmand %vm4024, %vm3976
      %vm4073 = vmand %vm4025, %vm3977
      %vm4074 = vmand %vm4026, %vm3978
      %vm4075 = vmand %vm4027, %vm3979
      %vm4076 = vmand %vm4028, %vm3980
      %vm4077 = vmand %vm4029, %vm3981
      %vm4078 = vmand %vm4030, %vm3982
      %vm4079 = vmand %vm4031, %vm3983
      %vm4080 = vmand %vm4032, %vm3984
      %vm4081 = vmand %vm4033, %vm3985
      %vm4082 = vmand %vm4034, %vm3986
      %vm4083 = vmand %vm4035, %vm3987
      %vm4084 = vmand %vm4036, %vm3988
      %vm4085 = vmand %vm4037, %vm3989
      %vm4086 = vmand %vm4038, %vm3990
      %vm4087 = vmand %vm4039, %vm3991
      %vm4088 = vmand %vm4040, %vm3992
      %vm4089 = vmand %vm4041, %vm3993
      %vm4090 = vmand %vm4042, %vm3994
      %vm4091 = vmand %vm4043, %vm3995
      %vm4092 = vmand %vm4044, %vm3996
      %vm4093 = vmand %vm4045, %vm3997
      %vm4094 = vmand %vm4046, %vm3998
      %vm4095 = vmand %vm4047, %vm3999
      %vm4096 = vmand %vm4048, %vm4000
      %vm4097 = vmand %vm4049, %vm4001
      %vm4098 = vmand %vm4050, %vm4002
      %vm4099 = vmand %vm4051, %vm4003
      %vm4100 = vmand %vm4052, %vm4004
      %vm4101 = vmand %vm4053, %vm4005
      %vm4102 = vmand %vm4054, %vm4006
      %vm4103 = vmand %vm4055, %vm4007
      %vm4104 = vmand %vm4056, %vm4008
      %vm4105 = vmand %vm4057, %vm4009
      %vm4106 = vmand %vm4058, %vm4010
      %vm4107 = vmand %vm4059, %vm4011
      %vm4108 = vmand %vm4060, %vm4012
      %vm4109 = vmand %vm4061, %vm4013
      %vm4110 = vmand %vm4062, %vm4014
      %vm4111 = vmand %vm4063, %vm4015
      %vm4112 = vmand %vm4064, %vm4016
      %vm4113 = vmand %vm4065, %vm4017
      %vm4114 = vmand %vm4066, %vm4018
      %vm4115 = vmand %vm4067, %vm4019
      %vm4116 = vmand %vm4068, %vm4020
      %vm4117 = vmand %vm4069, %vm4021
      %vm4118 = vmand %vm4070, %vm4022
      %vm4119 = vmand %vm4071, %vm4023
      %v4120 = vadd.s32 %v2612, 24
      %v4121 = vadd.s32 %v2641, 24
      %v4122 = vadd.s32 %v2670, 24
      %v4123 = vadd.s32 %v2699, 24
      %v4124 = vadd.s32 %v2728, 24
      %v4125 = vadd.s32 %v2757, 24
      %v4126 = vadd.s32 %v2786, 24
      %v4127 = vadd.s32 %v2815, 24
      %v4128 = vadd.s32 %v2844, 24
      %v4129 = vadd.s32 %v2873, 24
      %v4130 = vadd.s32 %v2902, 24
      %v4131 = vadd.s32 %v2931, 24
      %v4132 = vadd.s32 %v2960, 24
      %v4133 = vadd.s32 %v2989, 24
      %v4134 = vadd.s32 %v3018, 24
      %v4135 = vadd.s32 %v3047, 24
      %v4136 = vadd.s32 %v3076, 24
      %v4137 = vadd.s32 %v3105, 24
      %v4138 = vadd.s32 %v3134, 24
      %v4139 = vadd.s32 %v3163, 24
      %v4140 = vadd.s32 %v3192, 24
      %v4141 = vadd.s32 %v3221, 24
      %v4142 = vadd.s32 %v3250, 24
      %v4143 = vadd.s32 %v3279, 24
      %v4144 = vadd.s32 %v3308, 24
      %v4145 = vadd.s32 %v3337, 24
      %v4146 = vadd.s32 %v3366, 24
      %v4147 = vadd.s32 %v3395, 24
      %v4148 = vadd.s32 %v3424, 24
      %v4149 = vadd.s32 %v3453, 24
      %v4150 = vadd.s32 %v3482, 24
      %v4151 = vadd.s32 %v3511, 24
      %v4152 = vadd.s32 %v3540, 24
      %v4153 = vadd.s32 %v3569, 24
      %v4154 = vadd.s32 %v3598, 24
      %v4155 = vadd.s32 %v3627, 24
      %v4156 = vadd.s32 %v3656, 24
      %v4157 = vadd.s32 %v3685, 24
      %v4158 = vadd.s32 %v3714, 24
      %v4159 = vadd.s32 %v3743, 24
      %v4160 = vadd.s32 %v3772, 24
      %v4161 = vadd.s32 %v3801, 24
      %v4162 = vadd.s32 %v3830, 24
      %v4163 = vadd.s32 %v3859, 24
      %v4164 = vadd.s32 %v3888, 24
      %v4165 = vadd.s32 %v3917, 24
      %v4166 = vadd.s32 %v3946, 24
      %v4167 = vadd.s32 %v3975, 24
      %v4168 = vsel %vm4072, %v4120, %v2612
      %v4169 = vsel %vm4073, %v4121, %v2641
      %v4170 = vsel %vm4074, %v4122, %v2670
      %v4171 = vsel %vm4075, %v4123, %v2699
      %v4172 = vsel %vm4076, %v4124, %v2728
      %v4173 = vsel %vm4077, %v4125, %v2757
      %v4174 = vsel %vm4078, %v4126, %v2786
      %v4175 = vsel %vm4079, %v4127, %v2815
      %v4176 = vsel %vm4080, %v4128, %v2844
      %v4177 = vsel %vm4081, %v4129, %v2873
      %v4178 = vsel %vm4082, %v4130, %v2902
      %v4179 = vsel %vm4083, %v4131, %v2931
      %v4180 = vsel %vm4084, %v4132, %v2960
      %v4181 = vsel %vm4085, %v4133, %v2989
      %v4182 = vsel %vm4086, %v4134, %v3018
      %v4183 = vsel %vm4087, %v4135, %v3047
      %v4184 = vsel %vm4088, %v4136, %v3076
      %v4185 = vsel %vm4089, %v4137, %v3105
      %v4186 = vsel %vm4090, %v4138, %v3134
      %v4187 = vsel %vm4091, %v4139, %v3163
      %v4188 = vsel %vm4092, %v4140, %v3192
      %v4189 = vsel %vm4093, %v4141, %v3221
      %v4190 = vsel %vm4094, %v4142, %v3250
      %v4191 = vsel %vm4095, %v4143, %v3279
      %v4192 = vsel %vm4096, %v4144, %v3308
      %v4193 = vsel %vm4097, %v4145, %v3337
      %v4194 = vsel %vm4098, %v4146, %v3366
      %v4195 = vsel %vm4099, %v4147, %v3395
      %v4196 = vsel %vm4100, %v4148, %v3424
      %v4197 = vsel %vm4101, %v4149, %v3453
      %v4198 = vsel %vm4102, %v4150, %v3482
      %v4199 = vsel %vm4103, %v4151, %v3511
      %v4200 = vsel %vm4104, %v4152, %v3540
      %v4201 = vsel %vm4105, %v4153, %v3569
      %v4202 = vsel %vm4106, %v4154, %v3598
      %v4203 = vsel %vm4107, %v4155, %v3627
      %v4204 = vsel %vm4108, %v4156, %v3656
      %v4205 = vsel %vm4109, %v4157, %v3685
      %v4206 = vsel %vm4110, %v4158, %v3714
      %v4207 = vsel %vm4111, %v4159, %v3743
      %v4208 = vsel %vm4112, %v4160, %v3772
      %v4209 = vsel %vm4113, %v4161, %v3801
      %v4210 = vsel %vm4114, %v4162, %v3830
      %v4211 = vsel %vm4115, %v4163, %v3859
      %v4212 = vsel %vm4116, %v4164, %v3888
      %v4213 = vsel %vm4117, %v4165, %v3917
      %v4214 = vsel %vm4118, %v4166, %v3946
      %v4215 = vsel %vm4119, %v4167, %v3975
      %vm4216 = vcmp.lt.s32.totalorder %v4168, 16
      %vm4217 = vcmp.lt.s32.totalorder %v4169, 16
      %vm4218 = vcmp.lt.s32.totalorder %v4170, 16
      %vm4219 = vcmp.lt.s32.totalorder %v4171, 16
      %vm4220 = vcmp.lt.s32.totalorder %v4172, 16
      %vm4221 = vcmp.lt.s32.totalorder %v4173, 16
      %vm4222 = vcmp.lt.s32.totalorder %v4174, 16
      %vm4223 = vcmp.lt.s32.totalorder %v4175, 16
      %vm4224 = vcmp.lt.s32.totalorder %v4176, 16
      %vm4225 = vcmp.lt.s32.totalorder %v4177, 16
      %vm4226 = vcmp.lt.s32.totalorder %v4178, 16
      %vm4227 = vcmp.lt.s32.totalorder %v4179, 16
      %vm4228 = vcmp.lt.s32.totalorder %v4180, 16
      %vm4229 = vcmp.lt.s32.totalorder %v4181, 16
      %vm4230 = vcmp.lt.s32.totalorder %v4182, 16
      %vm4231 = vcmp.lt.s32.totalorder %v4183, 16
      %vm4232 = vcmp.lt.s32.totalorder %v4184, 16
      %vm4233 = vcmp.lt.s32.totalorder %v4185, 16
      %vm4234 = vcmp.lt.s32.totalorder %v4186, 16
      %vm4235 = vcmp.lt.s32.totalorder %v4187, 16
      %vm4236 = vcmp.lt.s32.totalorder %v4188, 16
      %vm4237 = vcmp.lt.s32.totalorder %v4189, 16
      %vm4238 = vcmp.lt.s32.totalorder %v4190, 16
      %vm4239 = vcmp.lt.s32.totalorder %v4191, 16
      %vm4240 = vcmp.lt.s32.totalorder %v4192, 16
      %vm4241 = vcmp.lt.s32.totalorder %v4193, 16
      %vm4242 = vcmp.lt.s32.totalorder %v4194, 16
      %vm4243 = vcmp.lt.s32.totalorder %v4195, 16
      %vm4244 = vcmp.lt.s32.totalorder %v4196, 16
      %vm4245 = vcmp.lt.s32.totalorder %v4197, 16
      %vm4246 = vcmp.lt.s32.totalorder %v4198, 16
      %vm4247 = vcmp.lt.s32.totalorder %v4199, 16
      %vm4248 = vcmp.lt.s32.totalorder %v4200, 16
      %vm4249 = vcmp.lt.s32.totalorder %v4201, 16
      %vm4250 = vcmp.lt.s32.totalorder %v4202, 16
      %vm4251 = vcmp.lt.s32.totalorder %v4203, 16
      %vm4252 = vcmp.lt.s32.totalorder %v4204, 16
      %vm4253 = vcmp.lt.s32.totalorder %v4205, 16
      %vm4254 = vcmp.lt.s32.totalorder %v4206, 16
      %vm4255 = vcmp.lt.s32.totalorder %v4207, 16
      %vm4256 = vcmp.lt.s32.totalorder %v4208, 16
      %vm4257 = vcmp.lt.s32.totalorder %v4209, 16
      %vm4258 = vcmp.lt.s32.totalorder %v4210, 16
      %vm4259 = vcmp.lt.s32.totalorder %v4211, 16
      %vm4260 = vcmp.lt.s32.totalorder %v4212, 16
      %vm4261 = vcmp.lt.s32.totalorder %v4213, 16
      %vm4262 = vcmp.lt.s32.totalorder %v4214, 16
      %vm4263 = vcmp.lt.s32.totalorder %v4215, 16
      %v4264 = vsel %vm4216, 1, 0
      %v4265 = vsel %vm4217, 1, 0
      %v4266 = vsel %vm4218, 1, 0
      %v4267 = vsel %vm4219, 1, 0
      %v4268 = vsel %vm4220, 1, 0
      %v4269 = vsel %vm4221, 1, 0
      %v4270 = vsel %vm4222, 1, 0
      %v4271 = vsel %vm4223, 1, 0
      %v4272 = vsel %vm4224, 1, 0
      %v4273 = vsel %vm4225, 1, 0
      %v4274 = vsel %vm4226, 1, 0
      %v4275 = vsel %vm4227, 1, 0
      %v4276 = vsel %vm4228, 1, 0
      %v4277 = vsel %vm4229, 1, 0
      %v4278 = vsel %vm4230, 1, 0
      %v4279 = vsel %vm4231, 1, 0
      %v4280 = vsel %vm4232, 1, 0
      %v4281 = vsel %vm4233, 1, 0
      %v4282 = vsel %vm4234, 1, 0
      %v4283 = vsel %vm4235, 1, 0
      %v4284 = vsel %vm4236, 1, 0
      %v4285 = vsel %vm4237, 1, 0
      %v4286 = vsel %vm4238, 1, 0
      %v4287 = vsel %vm4239, 1, 0
      %v4288 = vsel %vm4240, 1, 0
      %v4289 = vsel %vm4241, 1, 0
      %v4290 = vsel %vm4242, 1, 0
      %v4291 = vsel %vm4243, 1, 0
      %v4292 = vsel %vm4244, 1, 0
      %v4293 = vsel %vm4245, 1, 0
      %v4294 = vsel %vm4246, 1, 0
      %v4295 = vsel %vm4247, 1, 0
      %v4296 = vsel %vm4248, 1, 0
      %v4297 = vsel %vm4249, 1, 0
      %v4298 = vsel %vm4250, 1, 0
      %v4299 = vsel %vm4251, 1, 0
      %v4300 = vsel %vm4252, 1, 0
      %v4301 = vsel %vm4253, 1, 0
      %v4302 = vsel %vm4254, 1, 0
      %v4303 = vsel %vm4255, 1, 0
      %v4304 = vsel %vm4256, 1, 0
      %v4305 = vsel %vm4257, 1, 0
      %v4306 = vsel %vm4258, 1, 0
      %v4307 = vsel %vm4259, 1, 0
      %v4308 = vsel %vm4260, 1, 0
      %v4309 = vsel %vm4261, 1, 0
      %v4310 = vsel %vm4262, 1, 0
      %v4311 = vsel %vm4263, 1, 0
      %vm4312 = vcmp.eq.s32.totalorder %v4264, 1
      %vm4313 = vcmp.eq.s32.totalorder %v4265, 1
      %vm4314 = vcmp.eq.s32.totalorder %v4266, 1
      %vm4315 = vcmp.eq.s32.totalorder %v4267, 1
      %vm4316 = vcmp.eq.s32.totalorder %v4268, 1
      %vm4317 = vcmp.eq.s32.totalorder %v4269, 1
      %vm4318 = vcmp.eq.s32.totalorder %v4270, 1
      %vm4319 = vcmp.eq.s32.totalorder %v4271, 1
      %vm4320 = vcmp.eq.s32.totalorder %v4272, 1
      %vm4321 = vcmp.eq.s32.totalorder %v4273, 1
      %vm4322 = vcmp.eq.s32.totalorder %v4274, 1
      %vm4323 = vcmp.eq.s32.totalorder %v4275, 1
      %vm4324 = vcmp.eq.s32.totalorder %v4276, 1
      %vm4325 = vcmp.eq.s32.totalorder %v4277, 1
      %vm4326 = vcmp.eq.s32.totalorder %v4278, 1
      %vm4327 = vcmp.eq.s32.totalorder %v4279, 1
      %vm4328 = vcmp.eq.s32.totalorder %v4280, 1
      %vm4329 = vcmp.eq.s32.totalorder %v4281, 1
      %vm4330 = vcmp.eq.s32.totalorder %v4282, 1
      %vm4331 = vcmp.eq.s32.totalorder %v4283, 1
      %vm4332 = vcmp.eq.s32.totalorder %v4284, 1
      %vm4333 = vcmp.eq.s32.totalorder %v4285, 1
      %vm4334 = vcmp.eq.s32.totalorder %v4286, 1
      %vm4335 = vcmp.eq.s32.totalorder %v4287, 1
      %vm4336 = vcmp.eq.s32.totalorder %v4288, 1
      %vm4337 = vcmp.eq.s32.totalorder %v4289, 1
      %vm4338 = vcmp.eq.s32.totalorder %v4290, 1
      %vm4339 = vcmp.eq.s32.totalorder %v4291, 1
      %vm4340 = vcmp.eq.s32.totalorder %v4292, 1
      %vm4341 = vcmp.eq.s32.totalorder %v4293, 1
      %vm4342 = vcmp.eq.s32.totalorder %v4294, 1
      %vm4343 = vcmp.eq.s32.totalorder %v4295, 1
      %vm4344 = vcmp.eq.s32.totalorder %v4296, 1
      %vm4345 = vcmp.eq.s32.totalorder %v4297, 1
      %vm4346 = vcmp.eq.s32.totalorder %v4298, 1
      %vm4347 = vcmp.eq.s32.totalorder %v4299, 1
      %vm4348 = vcmp.eq.s32.totalorder %v4300, 1
      %vm4349 = vcmp.eq.s32.totalorder %v4301, 1
      %vm4350 = vcmp.eq.s32.totalorder %v4302, 1
      %vm4351 = vcmp.eq.s32.totalorder %v4303, 1
      %vm4352 = vcmp.eq.s32.totalorder %v4304, 1
      %vm4353 = vcmp.eq.s32.totalorder %v4305, 1
      %vm4354 = vcmp.eq.s32.totalorder %v4306, 1
      %vm4355 = vcmp.eq.s32.totalorder %v4307, 1
      %vm4356 = vcmp.eq.s32.totalorder %v4308, 1
      %vm4357 = vcmp.eq.s32.totalorder %v4309, 1
      %vm4358 = vcmp.eq.s32.totalorder %v4310, 1
      %vm4359 = vcmp.eq.s32.totalorder %v4311, 1
      %v4360 = vsel %vm4312, %v2487, 0.0
      %v4361 = vsel %vm4313, %v2488, 0.0
      %v4362 = vsel %vm4314, %v2489, 0.0
      %v4363 = vsel %vm4315, %v2490, 0.0
      %v4364 = vsel %vm4316, %v2491, 0.0
      %v4365 = vsel %vm4317, %v2492, 0.0
      %v4366 = vsel %vm4318, %v2493, 0.0
      %v4367 = vsel %vm4319, %v2494, 0.0
      %v4368 = vsel %vm4320, %v2495, 0.0
      %v4369 = vsel %vm4321, %v2496, 0.0
      %v4370 = vsel %vm4322, %v2497, 0.0
      %v4371 = vsel %vm4323, %v2498, 0.0
      %v4372 = vsel %vm4324, %v2499, 0.0
      %v4373 = vsel %vm4325, %v2500, 0.0
      %v4374 = vsel %vm4326, %v2501, 0.0
      %v4375 = vsel %vm4327, %v2502, 0.0
      %v4376 = vsel %vm4328, %v2503, 0.0
      %v4377 = vsel %vm4329, %v2504, 0.0
      %v4378 = vsel %vm4330, %v2505, 0.0
      %v4379 = vsel %vm4331, %v2506, 0.0
      %v4380 = vsel %vm4332, %v2507, 0.0
      %v4381 = vsel %vm4333, %v2508, 0.0
      %v4382 = vsel %vm4334, %v2509, 0.0
      %v4383 = vsel %vm4335, %v2510, 0.0
      %v4384 = vsel %vm4336, %v2511, 0.0
      %v4385 = vsel %vm4337, %v2512, 0.0
      %v4386 = vsel %vm4338, %v2513, 0.0
      %v4387 = vsel %vm4339, %v2514, 0.0
      %v4388 = vsel %vm4340, %v2515, 0.0
      %v4389 = vsel %vm4341, %v2516, 0.0
      %v4390 = vsel %vm4342, %v2517, 0.0
      %v4391 = vsel %vm4343, %v2518, 0.0
      %v4392 = vsel %vm4344, %v2519, 0.0
      %v4393 = vsel %vm4345, %v2520, 0.0
      %v4394 = vsel %vm4346, %v2521, 0.0
      %v4395 = vsel %vm4347, %v2522, 0.0
      %v4396 = vsel %vm4348, %v2523, 0.0
      %v4397 = vsel %vm4349, %v2524, 0.0
      %v4398 = vsel %vm4350, %v2525, 0.0
      %v4399 = vsel %vm4351, %v2526, 0.0
      %v4400 = vsel %vm4352, %v2527, 0.0
      %v4401 = vsel %vm4353, %v2528, 0.0
      %v4402 = vsel %vm4354, %v2529, 0.0
      %v4403 = vsel %vm4355, %v2530, 0.0
      %v4404 = vsel %vm4356, %v2531, 0.0
      %v4405 = vsel %vm4357, %v2532, 0.0
      %v4406 = vsel %vm4358, %v2533, 0.0
      %v4407 = vsel %vm4359, %v2534, 0.0
      %4408 = vst [vmem:[#allocation2] sm:$0xff] 0.0
      %4409 = vst [vmem:[#allocation2 + $0x8] sm:$0xff] 0.0
      %4410 = vst [vmem:[#allocation2 + $0x10] sm:$0xff] 0.0
      %4411 = vst [vmem:[#allocation2 + $0x18] sm:$0xff] 0.0
      %4412 = vst [vmem:[#allocation2 + $0x1a0] sm:$0xff] 0.0
      %4413 = vst [vmem:[#allocation2 + $0x1a8] sm:$0xff] 0.0
      %4414 = vst [vmem:[#allocation2 + $0x1b0] sm:$0xff] 0.0
      %4415 = vst [vmem:[#allocation2 + $0x1b8] sm:$0xff] 0.0
      %4416 = vst [vmem:[#allocation2 + $0x20] sm:$0xff] %v4360
      %4417 = vst [vmem:[#allocation2 + $0x28] sm:$0xff] %v4361
      %4418 = vst [vmem:[#allocation2 + $0x30] sm:$0xff] %v4362
      %4419 = vst [vmem:[#allocation2 + $0x38] sm:$0xff] %v4363
      %4420 = vst [vmem:[#allocation2 + $0x40] sm:$0xff] %v4364
      %4421 = vst [vmem:[#allocation2 + $0x48] sm:$0xff] %v4365
      %4422 = vst [vmem:[#allocation2 + $0x50] sm:$0xff] %v4366
      %4423 = vst [vmem:[#allocation2 + $0x58] sm:$0xff] %v4367
      %4424 = vst [vmem:[#allocation2 + $0x60] sm:$0xff] %v4368
      %4425 = vst [vmem:[#allocation2 + $0x68] sm:$0xff] %v4369
      %4426 = vst [vmem:[#allocation2 + $0x70] sm:$0xff] %v4370
      %4427 = vst [vmem:[#allocation2 + $0x78] sm:$0xff] %v4371
      %4428 = vst [vmem:[#allocation2 + $0x80] sm:$0xff] %v4372
      %4429 = vst [vmem:[#allocation2 + $0x88] sm:$0xff] %v4373
      %4430 = vst [vmem:[#allocation2 + $0x90] sm:$0xff] %v4374
      %4431 = vst [vmem:[#allocation2 + $0x98] sm:$0xff] %v4375
      %4432 = vst [vmem:[#allocation2 + $0xa0] sm:$0xff] %v4376
      %4433 = vst [vmem:[#allocation2 + $0xa8] sm:$0xff] %v4377
      %4434 = vst [vmem:[#allocation2 + $0xb0] sm:$0xff] %v4378
      %4435 = vst [vmem:[#allocation2 + $0xb8] sm:$0xff] %v4379
      %4436 = vst [vmem:[#allocation2 + $0xc0] sm:$0xff] %v4380
      %4437 = vst [vmem:[#allocation2 + $0xc8] sm:$0xff] %v4381
      %4438 = vst [vmem:[#allocation2 + $0xd0] sm:$0xff] %v4382
      %4439 = vst [vmem:[#allocation2 + $0xd8] sm:$0xff] %v4383
      %4440 = vst [vmem:[#allocation2 + $0xe0] sm:$0xff] %v4384
      %4441 = vst [vmem:[#allocation2 + $0xe8] sm:$0xff] %v4385
      %4442 = vst [vmem:[#allocation2 + $0xf0] sm:$0xff] %v4386
      %4443 = vst [vmem:[#allocation2 + $0xf8] sm:$0xff] %v4387
      %4444 = vst [vmem:[#allocation2 + $0x100] sm:$0xff] %v4388
      %4445 = vst [vmem:[#allocation2 + $0x108] sm:$0xff] %v4389
      %4446 = vst [vmem:[#allocation2 + $0x110] sm:$0xff] %v4390
      %4447 = vst [vmem:[#allocation2 + $0x118] sm:$0xff] %v4391
      %4448 = vst [vmem:[#allocation2 + $0x120] sm:$0xff] %v4392
      %4449 = vst [vmem:[#allocation2 + $0x128] sm:$0xff] %v4393
      %4450 = vst [vmem:[#allocation2 + $0x130] sm:$0xff] %v4394
      %4451 = vst [vmem:[#allocation2 + $0x138] sm:$0xff] %v4395
      %4452 = vst [vmem:[#allocation2 + $0x140] sm:$0xff] %v4396
      %4453 = vst [vmem:[#allocation2 + $0x148] sm:$0xff] %v4397
      %4454 = vst [vmem:[#allocation2 + $0x150] sm:$0xff] %v4398
      %4455 = vst [vmem:[#allocation2 + $0x158] sm:$0xff] %v4399
      %4456 = vst [vmem:[#allocation2 + $0x160] sm:$0xff] %v4400
      %4457 = vst [vmem:[#allocation2 + $0x168] sm:$0xff] %v4401
      %4458 = vst [vmem:[#allocation2 + $0x170] sm:$0xff] %v4402
      %4459 = vst [vmem:[#allocation2 + $0x178] sm:$0xff] %v4403
      %4460 = vst [vmem:[#allocation2 + $0x180] sm:$0xff] %v4404
      %4461 = vst [vmem:[#allocation2 + $0x188] sm:$0xff] %v4405
      %4462 = vst [vmem:[#allocation2 + $0x190] sm:$0xff] %v4406
      %4463 = vst [vmem:[#allocation2 + $0x198] sm:$0xff] %v4407
      %v4464 = vld [vmem:[#allocation2 + $0x7] sm:$0xff]
      %v4465 = vld [vmem:[#allocation2 + $0xf] sm:$0xff]
      %v4466 = vld [vmem:[#allocation2 + $0x17] sm:$0xff]
      %v4467 = vld [vmem:[#allocation2 + $0x1f] sm:$0xff]
      %v4468 = vld [vmem:[#allocation2 + $0x27] sm:$0xff]
      %v4469 = vld [vmem:[#allocation2 + $0x2f] sm:$0xff]
      %v4470 = vld [vmem:[#allocation2 + $0x37] sm:$0xff]
      %v4471 = vld [vmem:[#allocation2 + $0x3f] sm:$0xff]
      %v4472 = vld [vmem:[#allocation2 + $0x47] sm:$0xff]
      %v4473 = vld [vmem:[#allocation2 + $0x4f] sm:$0xff]
      %v4474 = vld [vmem:[#allocation2 + $0x57] sm:$0xff]
      %v4475 = vld [vmem:[#allocation2 + $0x5f] sm:$0xff]
      %v4476 = vld [vmem:[#allocation2 + $0x67] sm:$0xff]
      %v4477 = vld [vmem:[#allocation2 + $0x6f] sm:$0xff]
      %v4478 = vld [vmem:[#allocation2 + $0x77] sm:$0xff]
      %v4479 = vld [vmem:[#allocation2 + $0x7f] sm:$0xff]
      %v4480 = vld [vmem:[#allocation2 + $0x87] sm:$0xff]
      %v4481 = vld [vmem:[#allocation2 + $0x8f] sm:$0xff]
      %v4482 = vld [vmem:[#allocation2 + $0x97] sm:$0xff]
      %v4483 = vld [vmem:[#allocation2 + $0x9f] sm:$0xff]
      %v4484 = vld [vmem:[#allocation2 + $0xa7] sm:$0xff]
      %v4485 = vld [vmem:[#allocation2 + $0xaf] sm:$0xff]
      %v4486 = vld [vmem:[#allocation2 + $0xb7] sm:$0xff]
      %v4487 = vld [vmem:[#allocation2 + $0xbf] sm:$0xff]
      %v4488 = vld [vmem:[#allocation2 + $0xc7] sm:$0xff]
      %v4489 = vld [vmem:[#allocation2 + $0xcf] sm:$0xff]
      %v4490 = vld [vmem:[#allocation2 + $0xd7] sm:$0xff]
      %v4491 = vld [vmem:[#allocation2 + $0xdf] sm:$0xff]
      %v4492 = vld [vmem:[#allocation2 + $0xe7] sm:$0xff]
      %v4493 = vld [vmem:[#allocation2 + $0xef] sm:$0xff]
      %v4494 = vld [vmem:[#allocation2 + $0xf7] sm:$0xff]
      %v4495 = vld [vmem:[#allocation2 + $0xff] sm:$0xff]
      %v4496 = vld [vmem:[#allocation2 + $0x107] sm:$0xff]
      %v4497 = vld [vmem:[#allocation2 + $0x10f] sm:$0xff]
      %v4498 = vld [vmem:[#allocation2 + $0x117] sm:$0xff]
      %v4499 = vld [vmem:[#allocation2 + $0x11f] sm:$0xff]
      %v4500 = vld [vmem:[#allocation2 + $0x127] sm:$0xff]
      %v4501 = vld [vmem:[#allocation2 + $0x12f] sm:$0xff]
      %v4502 = vld [vmem:[#allocation2 + $0x137] sm:$0xff]
      %v4503 = vld [vmem:[#allocation2 + $0x13f] sm:$0xff]
      %v4504 = vld [vmem:[#allocation2 + $0x147] sm:$0xff]
      %v4505 = vld [vmem:[#allocation2 + $0x14f] sm:$0xff]
      %v4506 = vld [vmem:[#allocation2 + $0x157] sm:$0xff]
      %v4507 = vld [vmem:[#allocation2 + $0x15f] sm:$0xff]
      %v4508 = vld [vmem:[#allocation2 + $0x167] sm:$0xff]
      %v4509 = vld [vmem:[#allocation2 + $0x16f] sm:$0xff]
      %v4510 = vld [vmem:[#allocation2 + $0x177] sm:$0xff]
      %v4511 = vld [vmem:[#allocation2 + $0x17f] sm:$0xff]
      %v4512 = vld [vmem:[#allocation2 + $0x8] sm:$0xff]
      %v4513 = vld [vmem:[#allocation2 + $0x10] sm:$0xff]
      %v4514 = vld [vmem:[#allocation2 + $0x18] sm:$0xff]
      %v4515 = vld [vmem:[#allocation2 + $0x20] sm:$0xff]
      %v4516 = vld [vmem:[#allocation2 + $0x28] sm:$0xff]
      %v4517 = vld [vmem:[#allocation2 + $0x30] sm:$0xff]
      %v4518 = vld [vmem:[#allocation2 + $0x38] sm:$0xff]
      %v4519 = vld [vmem:[#allocation2 + $0x40] sm:$0xff]
      %v4520 = vld [vmem:[#allocation2 + $0x48] sm:$0xff]
      %v4521 = vld [vmem:[#allocation2 + $0x50] sm:$0xff]
      %v4522 = vld [vmem:[#allocation2 + $0x58] sm:$0xff]
      %v4523 = vld [vmem:[#allocation2 + $0x60] sm:$0xff]
      %v4524 = vld [vmem:[#allocation2 + $0x68] sm:$0xff]
      %v4525 = vld [vmem:[#allocation2 + $0x70] sm:$0xff]
      %v4526 = vld [vmem:[#allocation2 + $0x78] sm:$0xff]
      %v4527 = vld [vmem:[#allocation2 + $0x80] sm:$0xff]
      %v4528 = vld [vmem:[#allocation2 + $0x88] sm:$0xff]
      %v4529 = vld [vmem:[#allocation2 + $0x90] sm:$0xff]
      %v4530 = vld [vmem:[#allocation2 + $0x98] sm:$0xff]
      %v4531 = vld [vmem:[#allocation2 + $0xa0] sm:$0xff]
      %v4532 = vld [vmem:[#allocation2 + $0xa8] sm:$0xff]
      %v4533 = vld [vmem:[#allocation2 + $0xb0] sm:$0xff]
      %v4534 = vld [vmem:[#allocation2 + $0xb8] sm:$0xff]
      %v4535 = vld [vmem:[#allocation2 + $0xc0] sm:$0xff]
      %v4536 = vld [vmem:[#allocation2 + $0xc8] sm:$0xff]
      %v4537 = vld [vmem:[#allocation2 + $0xd0] sm:$0xff]
      %v4538 = vld [vmem:[#allocation2 + $0xd8] sm:$0xff]
      %v4539 = vld [vmem:[#allocation2 + $0xe0] sm:$0xff]
      %v4540 = vld [vmem:[#allocation2 + $0xe8] sm:$0xff]
      %v4541 = vld [vmem:[#allocation2 + $0xf0] sm:$0xff]
      %v4542 = vld [vmem:[#allocation2 + $0xf8] sm:$0xff]
      %v4543 = vld [vmem:[#allocation2 + $0x100] sm:$0xff]
      %v4544 = vld [vmem:[#allocation2 + $0x108] sm:$0xff]
      %v4545 = vld [vmem:[#allocation2 + $0x110] sm:$0xff]
      %v4546 = vld [vmem:[#allocation2 + $0x118] sm:$0xff]
      %v4547 = vld [vmem:[#allocation2 + $0x120] sm:$0xff]
      %v4548 = vld [vmem:[#allocation2 + $0x128] sm:$0xff]
      %v4549 = vld [vmem:[#allocation2 + $0x130] sm:$0xff]
      %v4550 = vld [vmem:[#allocation2 + $0x138] sm:$0xff]
      %v4551 = vld [vmem:[#allocation2 + $0x140] sm:$0xff]
      %v4552 = vld [vmem:[#allocation2 + $0x148] sm:$0xff]
      %v4553 = vld [vmem:[#allocation2 + $0x150] sm:$0xff]
      %v4554 = vld [vmem:[#allocation2 + $0x158] sm:$0xff]
      %v4555 = vld [vmem:[#allocation2 + $0x160] sm:$0xff]
      %v4556 = vld [vmem:[#allocation2 + $0x168] sm:$0xff]
      %v4557 = vld [vmem:[#allocation2 + $0x170] sm:$0xff]
      %v4558 = vld [vmem:[#allocation2 + $0x178] sm:$0xff]
      %v4559 = vld [vmem:[#allocation2 + $0x180] sm:$0xff]
      %v4560 = vld [vmem:[#allocation2 + $0x9] sm:$0xff]
      %v4561 = vld [vmem:[#allocation2 + $0x11] sm:$0xff]
      %v4562 = vld [vmem:[#allocation2 + $0x19] sm:$0xff]
      %v4563 = vld [vmem:[#allocation2 + $0x21] sm:$0xff]
      %v4564 = vld [vmem:[#allocation2 + $0x29] sm:$0xff]
      %v4565 = vld [vmem:[#allocation2 + $0x31] sm:$0xff]
      %v4566 = vld [vmem:[#allocation2 + $0x39] sm:$0xff]
      %v4567 = vld [vmem:[#allocation2 + $0x41] sm:$0xff]
      %v4568 = vld [vmem:[#allocation2 + $0x49] sm:$0xff]
      %v4569 = vld [vmem:[#allocation2 + $0x51] sm:$0xff]
      %v4570 = vld [vmem:[#allocation2 + $0x59] sm:$0xff]
      %v4571 = vld [vmem:[#allocation2 + $0x61] sm:$0xff]
      %v4572 = vld [vmem:[#allocation2 + $0x69] sm:$0xff]
      %v4573 = vld [vmem:[#allocation2 + $0x71] sm:$0xff]
      %v4574 = vld [vmem:[#allocation2 + $0x79] sm:$0xff]
      %v4575 = vld [vmem:[#allocation2 + $0x81] sm:$0xff]
      %v4576 = vld [vmem:[#allocation2 + $0x89] sm:$0xff]
      %v4577 = vld [vmem:[#allocation2 + $0x91] sm:$0xff]
      %v4578 = vld [vmem:[#allocation2 + $0x99] sm:$0xff]
      %v4579 = vld [vmem:[#allocation2 + $0xa1] sm:$0xff]
      %v4580 = vld [vmem:[#allocation2 + $0xa9] sm:$0xff]
      %v4581 = vld [vmem:[#allocation2 + $0xb1] sm:$0xff]
      %v4582 = vld [vmem:[#allocation2 + $0xb9] sm:$0xff]
      %v4583 = vld [vmem:[#allocation2 + $0xc1] sm:$0xff]
      %v4584 = vld [vmem:[#allocation2 + $0xc9] sm:$0xff]
      %v4585 = vld [vmem:[#allocation2 + $0xd1] sm:$0xff]
      %v4586 = vld [vmem:[#allocation2 + $0xd9] sm:$0xff]
      %v4587 = vld [vmem:[#allocation2 + $0xe1] sm:$0xff]
      %v4588 = vld [vmem:[#allocation2 + $0xe9] sm:$0xff]
      %v4589 = vld [vmem:[#allocation2 + $0xf1] sm:$0xff]
      %v4590 = vld [vmem:[#allocation2 + $0xf9] sm:$0xff]
      %v4591 = vld [vmem:[#allocation2 + $0x101] sm:$0xff]
      %v4592 = vld [vmem:[#allocation2 + $0x109] sm:$0xff]
      %v4593 = vld [vmem:[#allocation2 + $0x111] sm:$0xff]
      %v4594 = vld [vmem:[#allocation2 + $0x119] sm:$0xff]
      %v4595 = vld [vmem:[#allocation2 + $0x121] sm:$0xff]
      %v4596 = vld [vmem:[#allocation2 + $0x129] sm:$0xff]
      %v4597 = vld [vmem:[#allocation2 + $0x131] sm:$0xff]
      %v4598 = vld [vmem:[#allocation2 + $0x139] sm:$0xff]
      %v4599 = vld [vmem:[#allocation2 + $0x141] sm:$0xff]
      %v4600 = vld [vmem:[#allocation2 + $0x149] sm:$0xff]
      %v4601 = vld [vmem:[#allocation2 + $0x151] sm:$0xff]
      %v4602 = vld [vmem:[#allocation2 + $0x159] sm:$0xff]
      %v4603 = vld [vmem:[#allocation2 + $0x161] sm:$0xff]
      %v4604 = vld [vmem:[#allocation2 + $0x169] sm:$0xff]
      %v4605 = vld [vmem:[#allocation2 + $0x171] sm:$0xff]
      %v4606 = vld [vmem:[#allocation2 + $0x179] sm:$0xff]
      %v4607 = vld [vmem:[#allocation2 + $0x181] sm:$0xff]
      %v4608 = vld [vmem:[#allocation2 + $0x187] sm:$0xff]
      %v4609 = vld [vmem:[#allocation2 + $0x18f] sm:$0xff]
      %v4610 = vld [vmem:[#allocation2 + $0x197] sm:$0xff]
      %v4611 = vld [vmem:[#allocation2 + $0x188] sm:$0xff]
      %v4612 = vld [vmem:[#allocation2 + $0x190] sm:$0xff]
      %v4613 = vld [vmem:[#allocation2 + $0x198] sm:$0xff]
      %v4614 = vld [vmem:[#allocation2 + $0x189] sm:$0xff]
      %v4615 = vld [vmem:[#allocation2 + $0x191] sm:$0xff]
      %v4616 = vld [vmem:[#allocation2 + $0x199] sm:$0xff]
      %v4617 = vld [vmem:[#allocation2 + $0x19f] sm:$0xff]
      %v4618 = vld [vmem:[#allocation2 + $0x1a7] sm:$0xff]
      %v4619 = vld [vmem:[#allocation2 + $0x1af] sm:$0xff]
      %v4620 = vld [vmem:[#allocation2 + $0x1a0] sm:$0xff]
      %v4621 = vld [vmem:[#allocation2 + $0x1a8] sm:$0xff]
      %v4622 = vld [vmem:[#allocation2 + $0x1b0] sm:$0xff]
      %v4623 = vld [vmem:[#allocation2 + $0x1a1] sm:$0xff]
      %v4624 = vld [vmem:[#allocation2 + $0x1a9] sm:$0xff]
      %v4625 = vld [vmem:[#allocation2 + $0x1b1] sm:$0xff]
      %4674 = vrot.lane.b32.xlu0 %v4512, 4
      %v4675 = vpop.permute.xlu0 %4674
      %4676 = vrot.lane.b32.xlu0 %v4513, 4
      %v4677 = vpop.permute.xlu0 %4676
      %4678 = vrot.lane.b32.xlu0 %v4514, 4
      %v4679 = vpop.permute.xlu0 %4678
      %4680 = vrot.lane.b32.xlu0 %v4515, 4
      %v4681 = vpop.permute.xlu0 %4680
      %4682 = vrot.lane.b32.xlu0 %v4516, 4
      %v4683 = vpop.permute.xlu0 %4682
      %4684 = vrot.lane.b32.xlu0 %v4517, 4
      %v4685 = vpop.permute.xlu0 %4684
      %4686 = vrot.lane.b32.xlu0 %v4518, 4
      %v4687 = vpop.permute.xlu0 %4686
      %4688 = vrot.lane.b32.xlu0 %v4519, 4
      %v4689 = vpop.permute.xlu0 %4688
      %4690 = vrot.lane.b32.xlu0 %v4520, 4
      %v4691 = vpop.permute.xlu0 %4690
      %4692 = vrot.lane.b32.xlu0 %v4521, 4
      %v4693 = vpop.permute.xlu0 %4692
      %4694 = vrot.lane.b32.xlu0 %v4522, 4
      %v4695 = vpop.permute.xlu0 %4694
      %4696 = vrot.lane.b32.xlu0 %v4523, 4
      %v4697 = vpop.permute.xlu0 %4696
      %4698 = vrot.lane.b32.xlu0 %v4524, 4
      %v4699 = vpop.permute.xlu0 %4698
      %4700 = vrot.lane.b32.xlu0 %v4525, 4
      %v4701 = vpop.permute.xlu0 %4700
      %4702 = vrot.lane.b32.xlu0 %v4526, 4
      %v4703 = vpop.permute.xlu0 %4702
      %4704 = vrot.lane.b32.xlu0 %v4527, 4
      %v4705 = vpop.permute.xlu0 %4704
      %4706 = vrot.lane.b32.xlu0 %v4528, 4
      %v4707 = vpop.permute.xlu0 %4706
      %4708 = vrot.lane.b32.xlu0 %v4529, 4
      %v4709 = vpop.permute.xlu0 %4708
      %4710 = vrot.lane.b32.xlu0 %v4530, 4
      %v4711 = vpop.permute.xlu0 %4710
      %4712 = vrot.lane.b32.xlu0 %v4531, 4
      %v4713 = vpop.permute.xlu0 %4712
      %4714 = vrot.lane.b32.xlu0 %v4532, 4
      %v4715 = vpop.permute.xlu0 %4714
      %4716 = vrot.lane.b32.xlu0 %v4533, 4
      %v4717 = vpop.permute.xlu0 %4716
      %4718 = vrot.lane.b32.xlu0 %v4534, 4
      %v4719 = vpop.permute.xlu0 %4718
      %4720 = vrot.lane.b32.xlu0 %v4535, 4
      %v4721 = vpop.permute.xlu0 %4720
      %4722 = vrot.lane.b32.xlu0 %v4536, 4
      %v4723 = vpop.permute.xlu0 %4722
      %4724 = vrot.lane.b32.xlu0 %v4537, 4
      %v4725 = vpop.permute.xlu0 %4724
      %4726 = vrot.lane.b32.xlu0 %v4538, 4
      %v4727 = vpop.permute.xlu0 %4726
      %4728 = vrot.lane.b32.xlu0 %v4539, 4
      %v4729 = vpop.permute.xlu0 %4728
      %4730 = vrot.lane.b32.xlu0 %v4540, 4
      %v4731 = vpop.permute.xlu0 %4730
      %4732 = vrot.lane.b32.xlu0 %v4541, 4
      %v4733 = vpop.permute.xlu0 %4732
      %4734 = vrot.lane.b32.xlu0 %v4542, 4
      %v4735 = vpop.permute.xlu0 %4734
      %4736 = vrot.lane.b32.xlu0 %v4543, 4
      %v4737 = vpop.permute.xlu0 %4736
      %4738 = vrot.lane.b32.xlu0 %v4544, 4
      %v4739 = vpop.permute.xlu0 %4738
      %4740 = vrot.lane.b32.xlu0 %v4545, 4
      %v4741 = vpop.permute.xlu0 %4740
      %4742 = vrot.lane.b32.xlu0 %v4546, 4
      %v4743 = vpop.permute.xlu0 %4742
      %4744 = vrot.lane.b32.xlu0 %v4547, 4
      %v4745 = vpop.permute.xlu0 %4744
      %4746 = vrot.lane.b32.xlu0 %v4548, 4
      %v4747 = vpop.permute.xlu0 %4746
      %4748 = vrot.lane.b32.xlu0 %v4549, 4
      %v4749 = vpop.permute.xlu0 %4748
      %4750 = vrot.lane.b32.xlu0 %v4550, 4
      %v4751 = vpop.permute.xlu0 %4750
      %4752 = vrot.lane.b32.xlu0 %v4551, 4
      %v4753 = vpop.permute.xlu0 %4752
      %4754 = vrot.lane.b32.xlu0 %v4552, 4
      %v4755 = vpop.permute.xlu0 %4754
      %4756 = vrot.lane.b32.xlu0 %v4553, 4
      %v4757 = vpop.permute.xlu0 %4756
      %4758 = vrot.lane.b32.xlu0 %v4554, 4
      %v4759 = vpop.permute.xlu0 %4758
      %4760 = vrot.lane.b32.xlu0 %v4555, 4
      %v4761 = vpop.permute.xlu0 %4760
      %4762 = vrot.lane.b32.xlu0 %v4556, 4
      %v4763 = vpop.permute.xlu0 %4762
      %4764 = vrot.lane.b32.xlu0 %v4557, 4
      %v4765 = vpop.permute.xlu0 %4764
      %4766 = vrot.lane.b32.xlu0 %v4558, 4
      %v4767 = vpop.permute.xlu0 %4766
      %4768 = vrot.lane.b32.xlu0 %v4559, 4
      %v4769 = vpop.permute.xlu0 %4768
      %4866 = vrot.lane.b32.xlu0 %v4560, 8
      %v4867 = vpop.permute.xlu0 %4866
      %4868 = vrot.lane.b32.xlu0 %v4561, 8
      %v4869 = vpop.permute.xlu0 %4868
      %4870 = vrot.lane.b32.xlu0 %v4562, 8
      %v4871 = vpop.permute.xlu0 %4870
      %4872 = vrot.lane.b32.xlu0 %v4563, 8
      %v4873 = vpop.permute.xlu0 %4872
      %4874 = vrot.lane.b32.xlu0 %v4564, 8
      %v4875 = vpop.permute.xlu0 %4874
      %4876 = vrot.lane.b32.xlu0 %v4565, 8
      %v4877 = vpop.permute.xlu0 %4876
      %4878 = vrot.lane.b32.xlu0 %v4566, 8
      %v4879 = vpop.permute.xlu0 %4878
      %4880 = vrot.lane.b32.xlu0 %v4567, 8
      %v4881 = vpop.permute.xlu0 %4880
      %4882 = vrot.lane.b32.xlu0 %v4568, 8
      %v4883 = vpop.permute.xlu0 %4882
      %4884 = vrot.lane.b32.xlu0 %v4569, 8
      %v4885 = vpop.permute.xlu0 %4884
      %4886 = vrot.lane.b32.xlu0 %v4570, 8
      %v4887 = vpop.permute.xlu0 %4886
      %4888 = vrot.lane.b32.xlu0 %v4571, 8
      %v4889 = vpop.permute.xlu0 %4888
      %4890 = vrot.lane.b32.xlu0 %v4572, 8
      %v4891 = vpop.permute.xlu0 %4890
      %4892 = vrot.lane.b32.xlu0 %v4573, 8
      %v4893 = vpop.permute.xlu0 %4892
      %4894 = vrot.lane.b32.xlu0 %v4574, 8
      %v4895 = vpop.permute.xlu0 %4894
      %4896 = vrot.lane.b32.xlu0 %v4575, 8
      %v4897 = vpop.permute.xlu0 %4896
      %4898 = vrot.lane.b32.xlu0 %v4576, 8
      %v4899 = vpop.permute.xlu0 %4898
      %4900 = vrot.lane.b32.xlu0 %v4577, 8
      %v4901 = vpop.permute.xlu0 %4900
      %4902 = vrot.lane.b32.xlu0 %v4578, 8
      %v4903 = vpop.permute.xlu0 %4902
      %4904 = vrot.lane.b32.xlu0 %v4579, 8
      %v4905 = vpop.permute.xlu0 %4904
      %4906 = vrot.lane.b32.xlu0 %v4580, 8
      %v4907 = vpop.permute.xlu0 %4906
      %4908 = vrot.lane.b32.xlu0 %v4581, 8
      %v4909 = vpop.permute.xlu0 %4908
      %4910 = vrot.lane.b32.xlu0 %v4582, 8
      %v4911 = vpop.permute.xlu0 %4910
      %4912 = vrot.lane.b32.xlu0 %v4583, 8
      %v4913 = vpop.permute.xlu0 %4912
      %4914 = vrot.lane.b32.xlu0 %v4584, 8
      %v4915 = vpop.permute.xlu0 %4914
      %4916 = vrot.lane.b32.xlu0 %v4585, 8
      %v4917 = vpop.permute.xlu0 %4916
      %4918 = vrot.lane.b32.xlu0 %v4586, 8
      %v4919 = vpop.permute.xlu0 %4918
      %4920 = vrot.lane.b32.xlu0 %v4587, 8
      %v4921 = vpop.permute.xlu0 %4920
      %4922 = vrot.lane.b32.xlu0 %v4588, 8
      %v4923 = vpop.permute.xlu0 %4922
      %4924 = vrot.lane.b32.xlu0 %v4589, 8
      %v4925 = vpop.permute.xlu0 %4924
      %4926 = vrot.lane.b32.xlu0 %v4590, 8
      %v4927 = vpop.permute.xlu0 %4926
      %4928 = vrot.lane.b32.xlu0 %v4591, 8
      %v4929 = vpop.permute.xlu0 %4928
      %4930 = vrot.lane.b32.xlu0 %v4592, 8
      %v4931 = vpop.permute.xlu0 %4930
      %4932 = vrot.lane.b32.xlu0 %v4593, 8
      %v4933 = vpop.permute.xlu0 %4932
      %4934 = vrot.lane.b32.xlu0 %v4594, 8
      %v4935 = vpop.permute.xlu0 %4934
      %4936 = vrot.lane.b32.xlu0 %v4595, 8
      %v4937 = vpop.permute.xlu0 %4936
      %4938 = vrot.lane.b32.xlu0 %v4596, 8
      %v4939 = vpop.permute.xlu0 %4938
      %4940 = vrot.lane.b32.xlu0 %v4597, 8
      %v4941 = vpop.permute.xlu0 %4940
      %4942 = vrot.lane.b32.xlu0 %v4598, 8
      %v4943 = vpop.permute.xlu0 %4942
      %4944 = vrot.lane.b32.xlu0 %v4599, 8
      %v4945 = vpop.permute.xlu0 %4944
      %4946 = vrot.lane.b32.xlu0 %v4600, 8
      %v4947 = vpop.permute.xlu0 %4946
      %4948 = vrot.lane.b32.xlu0 %v4601, 8
      %v4949 = vpop.permute.xlu0 %4948
      %4950 = vrot.lane.b32.xlu0 %v4602, 8
      %v4951 = vpop.permute.xlu0 %4950
      %4952 = vrot.lane.b32.xlu0 %v4603, 8
      %v4953 = vpop.permute.xlu0 %4952
      %4954 = vrot.lane.b32.xlu0 %v4604, 8
      %v4955 = vpop.permute.xlu0 %4954
      %4956 = vrot.lane.b32.xlu0 %v4605, 8
      %v4957 = vpop.permute.xlu0 %4956
      %4958 = vrot.lane.b32.xlu0 %v4606, 8
      %v4959 = vpop.permute.xlu0 %4958
      %4960 = vrot.lane.b32.xlu0 %v4607, 8
      %v4961 = vpop.permute.xlu0 %4960
      %5058 = vrot.lane.b32.xlu0 %v4467, 12
      %v5059 = vpop.permute.xlu0 %5058
      %5060 = vrot.lane.b32.xlu0 %v4468, 12
      %v5061 = vpop.permute.xlu0 %5060
      %5062 = vrot.lane.b32.xlu0 %v4469, 12
      %v5063 = vpop.permute.xlu0 %5062
      %5064 = vrot.lane.b32.xlu0 %v4470, 12
      %v5065 = vpop.permute.xlu0 %5064
      %5066 = vrot.lane.b32.xlu0 %v4471, 12
      %v5067 = vpop.permute.xlu0 %5066
      %5068 = vrot.lane.b32.xlu0 %v4472, 12
      %v5069 = vpop.permute.xlu0 %5068
      %5070 = vrot.lane.b32.xlu0 %v4473, 12
      %v5071 = vpop.permute.xlu0 %5070
      %5072 = vrot.lane.b32.xlu0 %v4474, 12
      %v5073 = vpop.permute.xlu0 %5072
      %5074 = vrot.lane.b32.xlu0 %v4475, 12
      %v5075 = vpop.permute.xlu0 %5074
      %5076 = vrot.lane.b32.xlu0 %v4476, 12
      %v5077 = vpop.permute.xlu0 %5076
      %5078 = vrot.lane.b32.xlu0 %v4477, 12
      %v5079 = vpop.permute.xlu0 %5078
      %5080 = vrot.lane.b32.xlu0 %v4478, 12
      %v5081 = vpop.permute.xlu0 %5080
      %5082 = vrot.lane.b32.xlu0 %v4479, 12
      %v5083 = vpop.permute.xlu0 %5082
      %5084 = vrot.lane.b32.xlu0 %v4480, 12
      %v5085 = vpop.permute.xlu0 %5084
      %5086 = vrot.lane.b32.xlu0 %v4481, 12
      %v5087 = vpop.permute.xlu0 %5086
      %5088 = vrot.lane.b32.xlu0 %v4482, 12
      %v5089 = vpop.permute.xlu0 %5088
      %5090 = vrot.lane.b32.xlu0 %v4483, 12
      %v5091 = vpop.permute.xlu0 %5090
      %5092 = vrot.lane.b32.xlu0 %v4484, 12
      %v5093 = vpop.permute.xlu0 %5092
      %5094 = vrot.lane.b32.xlu0 %v4485, 12
      %v5095 = vpop.permute.xlu0 %5094
      %5096 = vrot.lane.b32.xlu0 %v4486, 12
      %v5097 = vpop.permute.xlu0 %5096
      %5098 = vrot.lane.b32.xlu0 %v4487, 12
      %v5099 = vpop.permute.xlu0 %5098
      %5100 = vrot.lane.b32.xlu0 %v4488, 12
      %v5101 = vpop.permute.xlu0 %5100
      %5102 = vrot.lane.b32.xlu0 %v4489, 12
      %v5103 = vpop.permute.xlu0 %5102
      %5104 = vrot.lane.b32.xlu0 %v4490, 12
      %v5105 = vpop.permute.xlu0 %5104
      %5106 = vrot.lane.b32.xlu0 %v4491, 12
      %v5107 = vpop.permute.xlu0 %5106
      %5108 = vrot.lane.b32.xlu0 %v4492, 12
      %v5109 = vpop.permute.xlu0 %5108
      %5110 = vrot.lane.b32.xlu0 %v4493, 12
      %v5111 = vpop.permute.xlu0 %5110
      %5112 = vrot.lane.b32.xlu0 %v4494, 12
      %v5113 = vpop.permute.xlu0 %5112
      %5114 = vrot.lane.b32.xlu0 %v4495, 12
      %v5115 = vpop.permute.xlu0 %5114
      %5116 = vrot.lane.b32.xlu0 %v4496, 12
      %v5117 = vpop.permute.xlu0 %5116
      %5118 = vrot.lane.b32.xlu0 %v4497, 12
      %v5119 = vpop.permute.xlu0 %5118
      %5120 = vrot.lane.b32.xlu0 %v4498, 12
      %v5121 = vpop.permute.xlu0 %5120
      %5122 = vrot.lane.b32.xlu0 %v4499, 12
      %v5123 = vpop.permute.xlu0 %5122
      %5124 = vrot.lane.b32.xlu0 %v4500, 12
      %v5125 = vpop.permute.xlu0 %5124
      %5126 = vrot.lane.b32.xlu0 %v4501, 12
      %v5127 = vpop.permute.xlu0 %5126
      %5128 = vrot.lane.b32.xlu0 %v4502, 12
      %v5129 = vpop.permute.xlu0 %5128
      %5130 = vrot.lane.b32.xlu0 %v4503, 12
      %v5131 = vpop.permute.xlu0 %5130
      %5132 = vrot.lane.b32.xlu0 %v4504, 12
      %v5133 = vpop.permute.xlu0 %5132
      %5134 = vrot.lane.b32.xlu0 %v4505, 12
      %v5135 = vpop.permute.xlu0 %5134
      %5136 = vrot.lane.b32.xlu0 %v4506, 12
      %v5137 = vpop.permute.xlu0 %5136
      %5138 = vrot.lane.b32.xlu0 %v4507, 12
      %v5139 = vpop.permute.xlu0 %5138
      %5140 = vrot.lane.b32.xlu0 %v4508, 12
      %v5141 = vpop.permute.xlu0 %5140
      %5142 = vrot.lane.b32.xlu0 %v4509, 12
      %v5143 = vpop.permute.xlu0 %5142
      %5144 = vrot.lane.b32.xlu0 %v4510, 12
      %v5145 = vpop.permute.xlu0 %5144
      %5146 = vrot.lane.b32.xlu0 %v4511, 12
      %v5147 = vpop.permute.xlu0 %5146
      %5148 = vrot.lane.b32.xlu0 %v4608, 12
      %v5149 = vpop.permute.xlu0 %5148
      %5150 = vrot.lane.b32.xlu0 %v4609, 12
      %v5151 = vpop.permute.xlu0 %5150
      %5152 = vrot.lane.b32.xlu0 %v4610, 12
      %v5153 = vpop.permute.xlu0 %5152
      %5205 = vrot.lane.b32.xlu0 %v4515, 16
      %v5206 = vpop.permute.xlu0 %5205
      %5207 = vrot.lane.b32.xlu0 %v4516, 16
      %v5208 = vpop.permute.xlu0 %5207
      %5209 = vrot.lane.b32.xlu0 %v4517, 16
      %v5210 = vpop.permute.xlu0 %5209
      %5211 = vrot.lane.b32.xlu0 %v4518, 16
      %v5212 = vpop.permute.xlu0 %5211
      %5213 = vrot.lane.b32.xlu0 %v4519, 16
      %v5214 = vpop.permute.xlu0 %5213
      %5215 = vrot.lane.b32.xlu0 %v4520, 16
      %v5216 = vpop.permute.xlu0 %5215
      %5217 = vrot.lane.b32.xlu0 %v4521, 16
      %v5218 = vpop.permute.xlu0 %5217
      %5219 = vrot.lane.b32.xlu0 %v4522, 16
      %v5220 = vpop.permute.xlu0 %5219
      %5221 = vrot.lane.b32.xlu0 %v4523, 16
      %v5222 = vpop.permute.xlu0 %5221
      %5223 = vrot.lane.b32.xlu0 %v4524, 16
      %v5224 = vpop.permute.xlu0 %5223
      %5225 = vrot.lane.b32.xlu0 %v4525, 16
      %v5226 = vpop.permute.xlu0 %5225
      %5227 = vrot.lane.b32.xlu0 %v4526, 16
      %v5228 = vpop.permute.xlu0 %5227
      %5229 = vrot.lane.b32.xlu0 %v4527, 16
      %v5230 = vpop.permute.xlu0 %5229
      %5231 = vrot.lane.b32.xlu0 %v4528, 16
      %v5232 = vpop.permute.xlu0 %5231
      %5233 = vrot.lane.b32.xlu0 %v4529, 16
      %v5234 = vpop.permute.xlu0 %5233
      %5235 = vrot.lane.b32.xlu0 %v4530, 16
      %v5236 = vpop.permute.xlu0 %5235
      %5237 = vrot.lane.b32.xlu0 %v4531, 16
      %v5238 = vpop.permute.xlu0 %5237
      %5239 = vrot.lane.b32.xlu0 %v4532, 16
      %v5240 = vpop.permute.xlu0 %5239
      %5241 = vrot.lane.b32.xlu0 %v4533, 16
      %v5242 = vpop.permute.xlu0 %5241
      %5243 = vrot.lane.b32.xlu0 %v4534, 16
      %v5244 = vpop.permute.xlu0 %5243
      %5245 = vrot.lane.b32.xlu0 %v4535, 16
      %v5246 = vpop.permute.xlu0 %5245
      %5247 = vrot.lane.b32.xlu0 %v4536, 16
      %v5248 = vpop.permute.xlu0 %5247
      %5249 = vrot.lane.b32.xlu0 %v4537, 16
      %v5250 = vpop.permute.xlu0 %5249
      %5251 = vrot.lane.b32.xlu0 %v4538, 16
      %v5252 = vpop.permute.xlu0 %5251
      %5253 = vrot.lane.b32.xlu0 %v4539, 16
      %v5254 = vpop.permute.xlu0 %5253
      %5255 = vrot.lane.b32.xlu0 %v4540, 16
      %v5256 = vpop.permute.xlu0 %5255
      %5257 = vrot.lane.b32.xlu0 %v4541, 16
      %v5258 = vpop.permute.xlu0 %5257
      %5259 = vrot.lane.b32.xlu0 %v4542, 16
      %v5260 = vpop.permute.xlu0 %5259
      %5261 = vrot.lane.b32.xlu0 %v4543, 16
      %v5262 = vpop.permute.xlu0 %5261
      %5263 = vrot.lane.b32.xlu0 %v4544, 16
      %v5264 = vpop.permute.xlu0 %5263
      %5265 = vrot.lane.b32.xlu0 %v4545, 16
      %v5266 = vpop.permute.xlu0 %5265
      %5267 = vrot.lane.b32.xlu0 %v4546, 16
      %v5268 = vpop.permute.xlu0 %5267
      %5269 = vrot.lane.b32.xlu0 %v4547, 16
      %v5270 = vpop.permute.xlu0 %5269
      %5271 = vrot.lane.b32.xlu0 %v4548, 16
      %v5272 = vpop.permute.xlu0 %5271
      %5273 = vrot.lane.b32.xlu0 %v4549, 16
      %v5274 = vpop.permute.xlu0 %5273
      %5275 = vrot.lane.b32.xlu0 %v4550, 16
      %v5276 = vpop.permute.xlu0 %5275
      %5277 = vrot.lane.b32.xlu0 %v4551, 16
      %v5278 = vpop.permute.xlu0 %5277
      %5279 = vrot.lane.b32.xlu0 %v4552, 16
      %v5280 = vpop.permute.xlu0 %5279
      %5281 = vrot.lane.b32.xlu0 %v4553, 16
      %v5282 = vpop.permute.xlu0 %5281
      %5283 = vrot.lane.b32.xlu0 %v4554, 16
      %v5284 = vpop.permute.xlu0 %5283
      %5285 = vrot.lane.b32.xlu0 %v4555, 16
      %v5286 = vpop.permute.xlu0 %5285
      %5287 = vrot.lane.b32.xlu0 %v4556, 16
      %v5288 = vpop.permute.xlu0 %5287
      %5289 = vrot.lane.b32.xlu0 %v4557, 16
      %v5290 = vpop.permute.xlu0 %5289
      %5291 = vrot.lane.b32.xlu0 %v4558, 16
      %v5292 = vpop.permute.xlu0 %5291
      %5293 = vrot.lane.b32.xlu0 %v4559, 16
      %v5294 = vpop.permute.xlu0 %5293
      %5295 = vrot.lane.b32.xlu0 %v4611, 16
      %v5296 = vpop.permute.xlu0 %5295
      %5297 = vrot.lane.b32.xlu0 %v4612, 16
      %v5298 = vpop.permute.xlu0 %5297
      %5299 = vrot.lane.b32.xlu0 %v4613, 16
      %v5300 = vpop.permute.xlu0 %5299
      %5352 = vrot.lane.b32.xlu0 %v4563, 20
      %v5353 = vpop.permute.xlu0 %5352
      %5354 = vrot.lane.b32.xlu0 %v4564, 20
      %v5355 = vpop.permute.xlu0 %5354
      %5356 = vrot.lane.b32.xlu0 %v4565, 20
      %v5357 = vpop.permute.xlu0 %5356
      %5358 = vrot.lane.b32.xlu0 %v4566, 20
      %v5359 = vpop.permute.xlu0 %5358
      %5360 = vrot.lane.b32.xlu0 %v4567, 20
      %v5361 = vpop.permute.xlu0 %5360
      %5362 = vrot.lane.b32.xlu0 %v4568, 20
      %v5363 = vpop.permute.xlu0 %5362
      %5364 = vrot.lane.b32.xlu0 %v4569, 20
      %v5365 = vpop.permute.xlu0 %5364
      %5366 = vrot.lane.b32.xlu0 %v4570, 20
      %v5367 = vpop.permute.xlu0 %5366
      %5368 = vrot.lane.b32.xlu0 %v4571, 20
      %v5369 = vpop.permute.xlu0 %5368
      %5370 = vrot.lane.b32.xlu0 %v4572, 20
      %v5371 = vpop.permute.xlu0 %5370
      %5372 = vrot.lane.b32.xlu0 %v4573, 20
      %v5373 = vpop.permute.xlu0 %5372
      %5374 = vrot.lane.b32.xlu0 %v4574, 20
      %v5375 = vpop.permute.xlu0 %5374
      %5376 = vrot.lane.b32.xlu0 %v4575, 20
      %v5377 = vpop.permute.xlu0 %5376
      %5378 = vrot.lane.b32.xlu0 %v4576, 20
      %v5379 = vpop.permute.xlu0 %5378
      %5380 = vrot.lane.b32.xlu0 %v4577, 20
      %v5381 = vpop.permute.xlu0 %5380
      %5382 = vrot.lane.b32.xlu0 %v4578, 20
      %v5383 = vpop.permute.xlu0 %5382
      %5384 = vrot.lane.b32.xlu0 %v4579, 20
      %v5385 = vpop.permute.xlu0 %5384
      %5386 = vrot.lane.b32.xlu0 %v4580, 20
      %v5387 = vpop.permute.xlu0 %5386
      %5388 = vrot.lane.b32.xlu0 %v4581, 20
      %v5389 = vpop.permute.xlu0 %5388
      %5390 = vrot.lane.b32.xlu0 %v4582, 20
      %v5391 = vpop.permute.xlu0 %5390
      %5392 = vrot.lane.b32.xlu0 %v4583, 20
      %v5393 = vpop.permute.xlu0 %5392
      %5394 = vrot.lane.b32.xlu0 %v4584, 20
      %v5395 = vpop.permute.xlu0 %5394
      %5396 = vrot.lane.b32.xlu0 %v4585, 20
      %v5397 = vpop.permute.xlu0 %5396
      %5398 = vrot.lane.b32.xlu0 %v4586, 20
      %v5399 = vpop.permute.xlu0 %5398
      %5400 = vrot.lane.b32.xlu0 %v4587, 20
      %v5401 = vpop.permute.xlu0 %5400
      %5402 = vrot.lane.b32.xlu0 %v4588, 20
      %v5403 = vpop.permute.xlu0 %5402
      %5404 = vrot.lane.b32.xlu0 %v4589, 20
      %v5405 = vpop.permute.xlu0 %5404
      %5406 = vrot.lane.b32.xlu0 %v4590, 20
      %v5407 = vpop.permute.xlu0 %5406
      %5408 = vrot.lane.b32.xlu0 %v4591, 20
      %v5409 = vpop.permute.xlu0 %5408
      %5410 = vrot.lane.b32.xlu0 %v4592, 20
      %v5411 = vpop.permute.xlu0 %5410
      %5412 = vrot.lane.b32.xlu0 %v4593, 20
      %v5413 = vpop.permute.xlu0 %5412
      %5414 = vrot.lane.b32.xlu0 %v4594, 20
      %v5415 = vpop.permute.xlu0 %5414
      %5416 = vrot.lane.b32.xlu0 %v4595, 20
      %v5417 = vpop.permute.xlu0 %5416
      %5418 = vrot.lane.b32.xlu0 %v4596, 20
      %v5419 = vpop.permute.xlu0 %5418
      %5420 = vrot.lane.b32.xlu0 %v4597, 20
      %v5421 = vpop.permute.xlu0 %5420
      %5422 = vrot.lane.b32.xlu0 %v4598, 20
      %v5423 = vpop.permute.xlu0 %5422
      %5424 = vrot.lane.b32.xlu0 %v4599, 20
      %v5425 = vpop.permute.xlu0 %5424
      %5426 = vrot.lane.b32.xlu0 %v4600, 20
      %v5427 = vpop.permute.xlu0 %5426
      %5428 = vrot.lane.b32.xlu0 %v4601, 20
      %v5429 = vpop.permute.xlu0 %5428
      %5430 = vrot.lane.b32.xlu0 %v4602, 20
      %v5431 = vpop.permute.xlu0 %5430
      %5432 = vrot.lane.b32.xlu0 %v4603, 20
      %v5433 = vpop.permute.xlu0 %5432
      %5434 = vrot.lane.b32.xlu0 %v4604, 20
      %v5435 = vpop.permute.xlu0 %5434
      %5436 = vrot.lane.b32.xlu0 %v4605, 20
      %v5437 = vpop.permute.xlu0 %5436
      %5438 = vrot.lane.b32.xlu0 %v4606, 20
      %v5439 = vpop.permute.xlu0 %5438
      %5440 = vrot.lane.b32.xlu0 %v4607, 20
      %v5441 = vpop.permute.xlu0 %5440
      %5442 = vrot.lane.b32.xlu0 %v4614, 20
      %v5443 = vpop.permute.xlu0 %5442
      %5444 = vrot.lane.b32.xlu0 %v4615, 20
      %v5445 = vpop.permute.xlu0 %5444
      %5446 = vrot.lane.b32.xlu0 %v4616, 20
      %v5447 = vpop.permute.xlu0 %5446
      %5499 = vrot.lane.b32.xlu0 %v4470, 24
      %v5500 = vpop.permute.xlu0 %5499
      %5501 = vrot.lane.b32.xlu0 %v4471, 24
      %v5502 = vpop.permute.xlu0 %5501
      %5503 = vrot.lane.b32.xlu0 %v4472, 24
      %v5504 = vpop.permute.xlu0 %5503
      %5505 = vrot.lane.b32.xlu0 %v4473, 24
      %v5506 = vpop.permute.xlu0 %5505
      %5507 = vrot.lane.b32.xlu0 %v4474, 24
      %v5508 = vpop.permute.xlu0 %5507
      %5509 = vrot.lane.b32.xlu0 %v4475, 24
      %v5510 = vpop.permute.xlu0 %5509
      %5511 = vrot.lane.b32.xlu0 %v4476, 24
      %v5512 = vpop.permute.xlu0 %5511
      %5513 = vrot.lane.b32.xlu0 %v4477, 24
      %v5514 = vpop.permute.xlu0 %5513
      %5515 = vrot.lane.b32.xlu0 %v4478, 24
      %v5516 = vpop.permute.xlu0 %5515
      %5517 = vrot.lane.b32.xlu0 %v4479, 24
      %v5518 = vpop.permute.xlu0 %5517
      %5519 = vrot.lane.b32.xlu0 %v4480, 24
      %v5520 = vpop.permute.xlu0 %5519
      %5521 = vrot.lane.b32.xlu0 %v4481, 24
      %v5522 = vpop.permute.xlu0 %5521
      %5523 = vrot.lane.b32.xlu0 %v4482, 24
      %v5524 = vpop.permute.xlu0 %5523
      %5525 = vrot.lane.b32.xlu0 %v4483, 24
      %v5526 = vpop.permute.xlu0 %5525
      %5527 = vrot.lane.b32.xlu0 %v4484, 24
      %v5528 = vpop.permute.xlu0 %5527
      %5529 = vrot.lane.b32.xlu0 %v4485, 24
      %v5530 = vpop.permute.xlu0 %5529
      %5531 = vrot.lane.b32.xlu0 %v4486, 24
      %v5532 = vpop.permute.xlu0 %5531
      %5533 = vrot.lane.b32.xlu0 %v4487, 24
      %v5534 = vpop.permute.xlu0 %5533
      %5535 = vrot.lane.b32.xlu0 %v4488, 24
      %v5536 = vpop.permute.xlu0 %5535
      %5537 = vrot.lane.b32.xlu0 %v4489, 24
      %v5538 = vpop.permute.xlu0 %5537
      %5539 = vrot.lane.b32.xlu0 %v4490, 24
      %v5540 = vpop.permute.xlu0 %5539
      %5541 = vrot.lane.b32.xlu0 %v4491, 24
      %v5542 = vpop.permute.xlu0 %5541
      %5543 = vrot.lane.b32.xlu0 %v4492, 24
      %v5544 = vpop.permute.xlu0 %5543
      %5545 = vrot.lane.b32.xlu0 %v4493, 24
      %v5546 = vpop.permute.xlu0 %5545
      %5547 = vrot.lane.b32.xlu0 %v4494, 24
      %v5548 = vpop.permute.xlu0 %5547
      %5549 = vrot.lane.b32.xlu0 %v4495, 24
      %v5550 = vpop.permute.xlu0 %5549
      %5551 = vrot.lane.b32.xlu0 %v4496, 24
      %v5552 = vpop.permute.xlu0 %5551
      %5553 = vrot.lane.b32.xlu0 %v4497, 24
      %v5554 = vpop.permute.xlu0 %5553
      %5555 = vrot.lane.b32.xlu0 %v4498, 24
      %v5556 = vpop.permute.xlu0 %5555
      %5557 = vrot.lane.b32.xlu0 %v4499, 24
      %v5558 = vpop.permute.xlu0 %5557
      %5559 = vrot.lane.b32.xlu0 %v4500, 24
      %v5560 = vpop.permute.xlu0 %5559
      %5561 = vrot.lane.b32.xlu0 %v4501, 24
      %v5562 = vpop.permute.xlu0 %5561
      %5563 = vrot.lane.b32.xlu0 %v4502, 24
      %v5564 = vpop.permute.xlu0 %5563
      %5565 = vrot.lane.b32.xlu0 %v4503, 24
      %v5566 = vpop.permute.xlu0 %5565
      %5567 = vrot.lane.b32.xlu0 %v4504, 24
      %v5568 = vpop.permute.xlu0 %5567
      %5569 = vrot.lane.b32.xlu0 %v4505, 24
      %v5570 = vpop.permute.xlu0 %5569
      %5571 = vrot.lane.b32.xlu0 %v4506, 24
      %v5572 = vpop.permute.xlu0 %5571
      %5573 = vrot.lane.b32.xlu0 %v4507, 24
      %v5574 = vpop.permute.xlu0 %5573
      %5575 = vrot.lane.b32.xlu0 %v4508, 24
      %v5576 = vpop.permute.xlu0 %5575
      %5577 = vrot.lane.b32.xlu0 %v4509, 24
      %v5578 = vpop.permute.xlu0 %5577
      %5579 = vrot.lane.b32.xlu0 %v4510, 24
      %v5580 = vpop.permute.xlu0 %5579
      %5581 = vrot.lane.b32.xlu0 %v4511, 24
      %v5582 = vpop.permute.xlu0 %5581
      %5583 = vrot.lane.b32.xlu0 %v4608, 24
      %v5584 = vpop.permute.xlu0 %5583
      %5585 = vrot.lane.b32.xlu0 %v4609, 24
      %v5586 = vpop.permute.xlu0 %5585
      %5587 = vrot.lane.b32.xlu0 %v4610, 24
      %v5588 = vpop.permute.xlu0 %5587
      %5589 = vrot.lane.b32.xlu0 %v4617, 24
      %v5590 = vpop.permute.xlu0 %5589
      %5591 = vrot.lane.b32.xlu0 %v4618, 24
      %v5592 = vpop.permute.xlu0 %5591
      %5593 = vrot.lane.b32.xlu0 %v4619, 24
      %v5594 = vpop.permute.xlu0 %5593
      %5646 = vrot.lane.b32.xlu0 %v4518, 28
      %v5647 = vpop.permute.xlu0 %5646
      %5648 = vrot.lane.b32.xlu0 %v4519, 28
      %v5649 = vpop.permute.xlu0 %5648
      %5650 = vrot.lane.b32.xlu0 %v4520, 28
      %v5651 = vpop.permute.xlu0 %5650
      %5652 = vrot.lane.b32.xlu0 %v4521, 28
      %v5653 = vpop.permute.xlu0 %5652
      %5654 = vrot.lane.b32.xlu0 %v4522, 28
      %v5655 = vpop.permute.xlu0 %5654
      %5656 = vrot.lane.b32.xlu0 %v4523, 28
      %v5657 = vpop.permute.xlu0 %5656
      %5658 = vrot.lane.b32.xlu0 %v4524, 28
      %v5659 = vpop.permute.xlu0 %5658
      %5660 = vrot.lane.b32.xlu0 %v4525, 28
      %v5661 = vpop.permute.xlu0 %5660
      %5662 = vrot.lane.b32.xlu0 %v4526, 28
      %v5663 = vpop.permute.xlu0 %5662
      %5664 = vrot.lane.b32.xlu0 %v4527, 28
      %v5665 = vpop.permute.xlu0 %5664
      %5666 = vrot.lane.b32.xlu0 %v4528, 28
      %v5667 = vpop.permute.xlu0 %5666
      %5668 = vrot.lane.b32.xlu0 %v4529, 28
      %v5669 = vpop.permute.xlu0 %5668
      %5670 = vrot.lane.b32.xlu0 %v4530, 28
      %v5671 = vpop.permute.xlu0 %5670
      %5672 = vrot.lane.b32.xlu0 %v4531, 28
      %v5673 = vpop.permute.xlu0 %5672
      %5674 = vrot.lane.b32.xlu0 %v4532, 28
      %v5675 = vpop.permute.xlu0 %5674
      %5676 = vrot.lane.b32.xlu0 %v4533, 28
      %v5677 = vpop.permute.xlu0 %5676
      %5678 = vrot.lane.b32.xlu0 %v4534, 28
      %v5679 = vpop.permute.xlu0 %5678
      %5680 = vrot.lane.b32.xlu0 %v4535, 28
      %v5681 = vpop.permute.xlu0 %5680
      %5682 = vrot.lane.b32.xlu0 %v4536, 28
      %v5683 = vpop.permute.xlu0 %5682
      %5684 = vrot.lane.b32.xlu0 %v4537, 28
      %v5685 = vpop.permute.xlu0 %5684
      %5686 = vrot.lane.b32.xlu0 %v4538, 28
      %v5687 = vpop.permute.xlu0 %5686
      %5688 = vrot.lane.b32.xlu0 %v4539, 28
      %v5689 = vpop.permute.xlu0 %5688
      %5690 = vrot.lane.b32.xlu0 %v4540, 28
      %v5691 = vpop.permute.xlu0 %5690
      %5692 = vrot.lane.b32.xlu0 %v4541, 28
      %v5693 = vpop.permute.xlu0 %5692
      %5694 = vrot.lane.b32.xlu0 %v4542, 28
      %v5695 = vpop.permute.xlu0 %5694
      %5696 = vrot.lane.b32.xlu0 %v4543, 28
      %v5697 = vpop.permute.xlu0 %5696
      %5698 = vrot.lane.b32.xlu0 %v4544, 28
      %v5699 = vpop.permute.xlu0 %5698
      %5700 = vrot.lane.b32.xlu0 %v4545, 28
      %v5701 = vpop.permute.xlu0 %5700
      %5702 = vrot.lane.b32.xlu0 %v4546, 28
      %v5703 = vpop.permute.xlu0 %5702
      %5704 = vrot.lane.b32.xlu0 %v4547, 28
      %v5705 = vpop.permute.xlu0 %5704
      %5706 = vrot.lane.b32.xlu0 %v4548, 28
      %v5707 = vpop.permute.xlu0 %5706
      %5708 = vrot.lane.b32.xlu0 %v4549, 28
      %v5709 = vpop.permute.xlu0 %5708
      %5710 = vrot.lane.b32.xlu0 %v4550, 28
      %v5711 = vpop.permute.xlu0 %5710
      %5712 = vrot.lane.b32.xlu0 %v4551, 28
      %v5713 = vpop.permute.xlu0 %5712
      %5714 = vrot.lane.b32.xlu0 %v4552, 28
      %v5715 = vpop.permute.xlu0 %5714
      %5716 = vrot.lane.b32.xlu0 %v4553, 28
      %v5717 = vpop.permute.xlu0 %5716
      %5718 = vrot.lane.b32.xlu0 %v4554, 28
      %v5719 = vpop.permute.xlu0 %5718
      %5720 = vrot.lane.b32.xlu0 %v4555, 28
      %v5721 = vpop.permute.xlu0 %5720
      %5722 = vrot.lane.b32.xlu0 %v4556, 28
      %v5723 = vpop.permute.xlu0 %5722
      %5724 = vrot.lane.b32.xlu0 %v4557, 28
      %v5725 = vpop.permute.xlu0 %5724
      %5726 = vrot.lane.b32.xlu0 %v4558, 28
      %v5727 = vpop.permute.xlu0 %5726
      %5728 = vrot.lane.b32.xlu0 %v4559, 28
      %v5729 = vpop.permute.xlu0 %5728
      %5730 = vrot.lane.b32.xlu0 %v4611, 28
      %v5731 = vpop.permute.xlu0 %5730
      %5732 = vrot.lane.b32.xlu0 %v4612, 28
      %v5733 = vpop.permute.xlu0 %5732
      %5734 = vrot.lane.b32.xlu0 %v4613, 28
      %v5735 = vpop.permute.xlu0 %5734
      %5736 = vrot.lane.b32.xlu0 %v4620, 28
      %v5737 = vpop.permute.xlu0 %5736
      %5738 = vrot.lane.b32.xlu0 %v4621, 28
      %v5739 = vpop.permute.xlu0 %5738
      %5740 = vrot.lane.b32.xlu0 %v4622, 28
      %v5741 = vpop.permute.xlu0 %5740
      %5793 = vrot.lane.b32.xlu0 %v4566, 32
      %v5794 = vpop.permute.xlu0 %5793
      %5795 = vrot.lane.b32.xlu0 %v4567, 32
      %v5796 = vpop.permute.xlu0 %5795
      %5797 = vrot.lane.b32.xlu0 %v4568, 32
      %v5798 = vpop.permute.xlu0 %5797
      %5799 = vrot.lane.b32.xlu0 %v4569, 32
      %v5800 = vpop.permute.xlu0 %5799
      %5801 = vrot.lane.b32.xlu0 %v4570, 32
      %v5802 = vpop.permute.xlu0 %5801
      %5803 = vrot.lane.b32.xlu0 %v4571, 32
      %v5804 = vpop.permute.xlu0 %5803
      %5805 = vrot.lane.b32.xlu0 %v4572, 32
      %v5806 = vpop.permute.xlu0 %5805
      %5807 = vrot.lane.b32.xlu0 %v4573, 32
      %v5808 = vpop.permute.xlu0 %5807
      %5809 = vrot.lane.b32.xlu0 %v4574, 32
      %v5810 = vpop.permute.xlu0 %5809
      %5811 = vrot.lane.b32.xlu0 %v4575, 32
      %v5812 = vpop.permute.xlu0 %5811
      %5813 = vrot.lane.b32.xlu0 %v4576, 32
      %v5814 = vpop.permute.xlu0 %5813
      %5815 = vrot.lane.b32.xlu0 %v4577, 32
      %v5816 = vpop.permute.xlu0 %5815
      %5817 = vrot.lane.b32.xlu0 %v4578, 32
      %v5818 = vpop.permute.xlu0 %5817
      %5819 = vrot.lane.b32.xlu0 %v4579, 32
      %v5820 = vpop.permute.xlu0 %5819
      %5821 = vrot.lane.b32.xlu0 %v4580, 32
      %v5822 = vpop.permute.xlu0 %5821
      %5823 = vrot.lane.b32.xlu0 %v4581, 32
      %v5824 = vpop.permute.xlu0 %5823
      %5825 = vrot.lane.b32.xlu0 %v4582, 32
      %v5826 = vpop.permute.xlu0 %5825
      %5827 = vrot.lane.b32.xlu0 %v4583, 32
      %v5828 = vpop.permute.xlu0 %5827
      %5829 = vrot.lane.b32.xlu0 %v4584, 32
      %v5830 = vpop.permute.xlu0 %5829
      %5831 = vrot.lane.b32.xlu0 %v4585, 32
      %v5832 = vpop.permute.xlu0 %5831
      %5833 = vrot.lane.b32.xlu0 %v4586, 32
      %v5834 = vpop.permute.xlu0 %5833
      %5835 = vrot.lane.b32.xlu0 %v4587, 32
      %v5836 = vpop.permute.xlu0 %5835
      %5837 = vrot.lane.b32.xlu0 %v4588, 32
      %v5838 = vpop.permute.xlu0 %5837
      %5839 = vrot.lane.b32.xlu0 %v4589, 32
      %v5840 = vpop.permute.xlu0 %5839
      %5841 = vrot.lane.b32.xlu0 %v4590, 32
      %v5842 = vpop.permute.xlu0 %5841
      %5843 = vrot.lane.b32.xlu0 %v4591, 32
      %v5844 = vpop.permute.xlu0 %5843
      %5845 = vrot.lane.b32.xlu0 %v4592, 32
      %v5846 = vpop.permute.xlu0 %5845
      %5847 = vrot.lane.b32.xlu0 %v4593, 32
      %v5848 = vpop.permute.xlu0 %5847
      %5849 = vrot.lane.b32.xlu0 %v4594, 32
      %v5850 = vpop.permute.xlu0 %5849
      %5851 = vrot.lane.b32.xlu0 %v4595, 32
      %v5852 = vpop.permute.xlu0 %5851
      %5853 = vrot.lane.b32.xlu0 %v4596, 32
      %v5854 = vpop.permute.xlu0 %5853
      %5855 = vrot.lane.b32.xlu0 %v4597, 32
      %v5856 = vpop.permute.xlu0 %5855
      %5857 = vrot.lane.b32.xlu0 %v4598, 32
      %v5858 = vpop.permute.xlu0 %5857
      %5859 = vrot.lane.b32.xlu0 %v4599, 32
      %v5860 = vpop.permute.xlu0 %5859
      %5861 = vrot.lane.b32.xlu0 %v4600, 32
      %v5862 = vpop.permute.xlu0 %5861
      %5863 = vrot.lane.b32.xlu0 %v4601, 32
      %v5864 = vpop.permute.xlu0 %5863
      %5865 = vrot.lane.b32.xlu0 %v4602, 32
      %v5866 = vpop.permute.xlu0 %5865
      %5867 = vrot.lane.b32.xlu0 %v4603, 32
      %v5868 = vpop.permute.xlu0 %5867
      %5869 = vrot.lane.b32.xlu0 %v4604, 32
      %v5870 = vpop.permute.xlu0 %5869
      %5871 = vrot.lane.b32.xlu0 %v4605, 32
      %v5872 = vpop.permute.xlu0 %5871
      %5873 = vrot.lane.b32.xlu0 %v4606, 32
      %v5874 = vpop.permute.xlu0 %5873
      %5875 = vrot.lane.b32.xlu0 %v4607, 32
      %v5876 = vpop.permute.xlu0 %5875
      %5877 = vrot.lane.b32.xlu0 %v4614, 32
      %v5878 = vpop.permute.xlu0 %5877
      %5879 = vrot.lane.b32.xlu0 %v4615, 32
      %v5880 = vpop.permute.xlu0 %5879
      %5881 = vrot.lane.b32.xlu0 %v4616, 32
      %v5882 = vpop.permute.xlu0 %5881
      %5883 = vrot.lane.b32.xlu0 %v4623, 32
      %v5884 = vpop.permute.xlu0 %5883
      %5885 = vrot.lane.b32.xlu0 %v4624, 32
      %v5886 = vpop.permute.xlu0 %5885
      %5887 = vrot.lane.b32.xlu0 %v4625, 32
      %v5888 = vpop.permute.xlu0 %5887
      %v5937 = vsel %vm1725, %v4464, %v4675
      %v5938 = vsel %vm1725, %v4465, %v4677
      %v5939 = vsel %vm1725, %v4466, %v4679
      %v5940 = vsel %vm1725, %v4467, %v4681
      %v5941 = vsel %vm1725, %v4468, %v4683
      %v5942 = vsel %vm1725, %v4469, %v4685
      %v5943 = vsel %vm1725, %v4470, %v4687
      %v5944 = vsel %vm1725, %v4471, %v4689
      %v5945 = vsel %vm1725, %v4472, %v4691
      %v5946 = vsel %vm1725, %v4473, %v4693
      %v5947 = vsel %vm1725, %v4474, %v4695
      %v5948 = vsel %vm1725, %v4475, %v4697
      %v5949 = vsel %vm1725, %v4476, %v4699
      %v5950 = vsel %vm1725, %v4477, %v4701
      %v5951 = vsel %vm1725, %v4478, %v4703
      %v5952 = vsel %vm1725, %v4479, %v4705
      %v5953 = vsel %vm1725, %v4480, %v4707
      %v5954 = vsel %vm1725, %v4481, %v4709
      %v5955 = vsel %vm1725, %v4482, %v4711
      %v5956 = vsel %vm1725, %v4483, %v4713
      %v5957 = vsel %vm1725, %v4484, %v4715
      %v5958 = vsel %vm1725, %v4485, %v4717
      %v5959 = vsel %vm1725, %v4486, %v4719
      %v5960 = vsel %vm1725, %v4487, %v4721
      %v5961 = vsel %vm1725, %v4488, %v4723
      %v5962 = vsel %vm1725, %v4489, %v4725
      %v5963 = vsel %vm1725, %v4490, %v4727
      %v5964 = vsel %vm1725, %v4491, %v4729
      %v5965 = vsel %vm1725, %v4492, %v4731
      %v5966 = vsel %vm1725, %v4493, %v4733
      %v5967 = vsel %vm1725, %v4494, %v4735
      %v5968 = vsel %vm1725, %v4495, %v4737
      %v5969 = vsel %vm1725, %v4496, %v4739
      %v5970 = vsel %vm1725, %v4497, %v4741
      %v5971 = vsel %vm1725, %v4498, %v4743
      %v5972 = vsel %vm1725, %v4499, %v4745
      %v5973 = vsel %vm1725, %v4500, %v4747
      %v5974 = vsel %vm1725, %v4501, %v4749
      %v5975 = vsel %vm1725, %v4502, %v4751
      %v5976 = vsel %vm1725, %v4503, %v4753
      %v5977 = vsel %vm1725, %v4504, %v4755
      %v5978 = vsel %vm1725, %v4505, %v4757
      %v5979 = vsel %vm1725, %v4506, %v4759
      %v5980 = vsel %vm1725, %v4507, %v4761
      %v5981 = vsel %vm1725, %v4508, %v4763
      %v5982 = vsel %vm1725, %v4509, %v4765
      %v5983 = vsel %vm1725, %v4510, %v4767
      %v5984 = vsel %vm1725, %v4511, %v4769
      %v5985 = vsel %vm1774, %v5937, %v4867
      %v5986 = vsel %vm1774, %v5938, %v4869
      %v5987 = vsel %vm1774, %v5939, %v4871
      %v5988 = vsel %vm1774, %v5940, %v4873
      %v5989 = vsel %vm1774, %v5941, %v4875
      %v5990 = vsel %vm1774, %v5942, %v4877
      %v5991 = vsel %vm1774, %v5943, %v4879
      %v5992 = vsel %vm1774, %v5944, %v4881
      %v5993 = vsel %vm1774, %v5945, %v4883
      %v5994 = vsel %vm1774, %v5946, %v4885
      %v5995 = vsel %vm1774, %v5947, %v4887
      %v5996 = vsel %vm1774, %v5948, %v4889
      %v5997 = vsel %vm1774, %v5949, %v4891
      %v5998 = vsel %vm1774, %v5950, %v4893
      %v5999 = vsel %vm1774, %v5951, %v4895
      %v6000 = vsel %vm1774, %v5952, %v4897
      %v6001 = vsel %vm1774, %v5953, %v4899
      %v6002 = vsel %vm1774, %v5954, %v4901
      %v6003 = vsel %vm1774, %v5955, %v4903
      %v6004 = vsel %vm1774, %v5956, %v4905
      %v6005 = vsel %vm1774, %v5957, %v4907
      %v6006 = vsel %vm1774, %v5958, %v4909
      %v6007 = vsel %vm1774, %v5959, %v4911
      %v6008 = vsel %vm1774, %v5960, %v4913
      %v6009 = vsel %vm1774, %v5961, %v4915
      %v6010 = vsel %vm1774, %v5962, %v4917
      %v6011 = vsel %vm1774, %v5963, %v4919
      %v6012 = vsel %vm1774, %v5964, %v4921
      %v6013 = vsel %vm1774, %v5965, %v4923
      %v6014 = vsel %vm1774, %v5966, %v4925
      %v6015 = vsel %vm1774, %v5967, %v4927
      %v6016 = vsel %vm1774, %v5968, %v4929
      %v6017 = vsel %vm1774, %v5969, %v4931
      %v6018 = vsel %vm1774, %v5970, %v4933
      %v6019 = vsel %vm1774, %v5971, %v4935
      %v6020 = vsel %vm1774, %v5972, %v4937
      %v6021 = vsel %vm1774, %v5973, %v4939
      %v6022 = vsel %vm1774, %v5974, %v4941
      %v6023 = vsel %vm1774, %v5975, %v4943
      %v6024 = vsel %vm1774, %v5976, %v4945
      %v6025 = vsel %vm1774, %v5977, %v4947
      %v6026 = vsel %vm1774, %v5978, %v4949
      %v6027 = vsel %vm1774, %v5979, %v4951
      %v6028 = vsel %vm1774, %v5980, %v4953
      %v6029 = vsel %vm1774, %v5981, %v4955
      %v6030 = vsel %vm1774, %v5982, %v4957
      %v6031 = vsel %vm1774, %v5983, %v4959
      %v6032 = vsel %vm1774, %v5984, %v4961
      %v6033 = vsel %vm1823, %v5985, %v5059
      %v6034 = vsel %vm1823, %v5986, %v5061
      %v6035 = vsel %vm1823, %v5987, %v5063
      %v6036 = vsel %vm1823, %v5988, %v5065
      %v6037 = vsel %vm1823, %v5989, %v5067
      %v6038 = vsel %vm1823, %v5990, %v5069
      %v6039 = vsel %vm1823, %v5991, %v5071
      %v6040 = vsel %vm1823, %v5992, %v5073
      %v6041 = vsel %vm1823, %v5993, %v5075
      %v6042 = vsel %vm1823, %v5994, %v5077
      %v6043 = vsel %vm1823, %v5995, %v5079
      %v6044 = vsel %vm1823, %v5996, %v5081
      %v6045 = vsel %vm1823, %v5997, %v5083
      %v6046 = vsel %vm1823, %v5998, %v5085
      %v6047 = vsel %vm1823, %v5999, %v5087
      %v6048 = vsel %vm1823, %v6000, %v5089
      %v6049 = vsel %vm1823, %v6001, %v5091
      %v6050 = vsel %vm1823, %v6002, %v5093
      %v6051 = vsel %vm1823, %v6003, %v5095
      %v6052 = vsel %vm1823, %v6004, %v5097
      %v6053 = vsel %vm1823, %v6005, %v5099
      %v6054 = vsel %vm1823, %v6006, %v5101
      %v6055 = vsel %vm1823, %v6007, %v5103
      %v6056 = vsel %vm1823, %v6008, %v5105
      %v6057 = vsel %vm1823, %v6009, %v5107
      %v6058 = vsel %vm1823, %v6010, %v5109
      %v6059 = vsel %vm1823, %v6011, %v5111
      %v6060 = vsel %vm1823, %v6012, %v5113
      %v6061 = vsel %vm1823, %v6013, %v5115
      %v6062 = vsel %vm1823, %v6014, %v5117
      %v6063 = vsel %vm1823, %v6015, %v5119
      %v6064 = vsel %vm1823, %v6016, %v5121
      %v6065 = vsel %vm1823, %v6017, %v5123
      %v6066 = vsel %vm1823, %v6018, %v5125
      %v6067 = vsel %vm1823, %v6019, %v5127
      %v6068 = vsel %vm1823, %v6020, %v5129
      %v6069 = vsel %vm1823, %v6021, %v5131
      %v6070 = vsel %vm1823, %v6022, %v5133
      %v6071 = vsel %vm1823, %v6023, %v5135
      %v6072 = vsel %vm1823, %v6024, %v5137
      %v6073 = vsel %vm1823, %v6025, %v5139
      %v6074 = vsel %vm1823, %v6026, %v5141
      %v6075 = vsel %vm1823, %v6027, %v5143
      %v6076 = vsel %vm1823, %v6028, %v5145
      %v6077 = vsel %vm1823, %v6029, %v5147
      %v6078 = vsel %vm1823, %v6030, %v5149
      %v6079 = vsel %vm1823, %v6031, %v5151
      %v6080 = vsel %vm1823, %v6032, %v5153
      %v6081 = vsel %vm1872, %v6033, %v5206
      %v6082 = vsel %vm1872, %v6034, %v5208
      %v6083 = vsel %vm1872, %v6035, %v5210
      %v6084 = vsel %vm1872, %v6036, %v5212
      %v6085 = vsel %vm1872, %v6037, %v5214
      %v6086 = vsel %vm1872, %v6038, %v5216
      %v6087 = vsel %vm1872, %v6039, %v5218
      %v6088 = vsel %vm1872, %v6040, %v5220
      %v6089 = vsel %vm1872, %v6041, %v5222
      %v6090 = vsel %vm1872, %v6042, %v5224
      %v6091 = vsel %vm1872, %v6043, %v5226
      %v6092 = vsel %vm1872, %v6044, %v5228
      %v6093 = vsel %vm1872, %v6045, %v5230
      %v6094 = vsel %vm1872, %v6046, %v5232
      %v6095 = vsel %vm1872, %v6047, %v5234
      %v6096 = vsel %vm1872, %v6048, %v5236
      %v6097 = vsel %vm1872, %v6049, %v5238
      %v6098 = vsel %vm1872, %v6050, %v5240
      %v6099 = vsel %vm1872, %v6051, %v5242
      %v6100 = vsel %vm1872, %v6052, %v5244
      %v6101 = vsel %vm1872, %v6053, %v5246
      %v6102 = vsel %vm1872, %v6054, %v5248
      %v6103 = vsel %vm1872, %v6055, %v5250
      %v6104 = vsel %vm1872, %v6056, %v5252
      %v6105 = vsel %vm1872, %v6057, %v5254
      %v6106 = vsel %vm1872, %v6058, %v5256
      %v6107 = vsel %vm1872, %v6059, %v5258
      %v6108 = vsel %vm1872, %v6060, %v5260
      %v6109 = vsel %vm1872, %v6061, %v5262
      %v6110 = vsel %vm1872, %v6062, %v5264
      %v6111 = vsel %vm1872, %v6063, %v5266
      %v6112 = vsel %vm1872, %v6064, %v5268
      %v6113 = vsel %vm1872, %v6065, %v5270
      %v6114 = vsel %vm1872, %v6066, %v5272
      %v6115 = vsel %vm1872, %v6067, %v5274
      %v6116 = vsel %vm1872, %v6068, %v5276
      %v6117 = vsel %vm1872, %v6069, %v5278
      %v6118 = vsel %vm1872, %v6070, %v5280
      %v6119 = vsel %vm1872, %v6071, %v5282
      %v6120 = vsel %vm1872, %v6072, %v5284
      %v6121 = vsel %vm1872, %v6073, %v5286
      %v6122 = vsel %vm1872, %v6074, %v5288
      %v6123 = vsel %vm1872, %v6075, %v5290
      %v6124 = vsel %vm1872, %v6076, %v5292
      %v6125 = vsel %vm1872, %v6077, %v5294
      %v6126 = vsel %vm1872, %v6078, %v5296
      %v6127 = vsel %vm1872, %v6079, %v5298
      %v6128 = vsel %vm1872, %v6080, %v5300
      %v6129 = vsel %vm1921, %v6081, %v5353
      %v6130 = vsel %vm1921, %v6082, %v5355
      %v6131 = vsel %vm1921, %v6083, %v5357
      %v6132 = vsel %vm1921, %v6084, %v5359
      %v6133 = vsel %vm1921, %v6085, %v5361
      %v6134 = vsel %vm1921, %v6086, %v5363
      %v6135 = vsel %vm1921, %v6087, %v5365
      %v6136 = vsel %vm1921, %v6088, %v5367
      %v6137 = vsel %vm1921, %v6089, %v5369
      %v6138 = vsel %vm1921, %v6090, %v5371
      %v6139 = vsel %vm1921, %v6091, %v5373
      %v6140 = vsel %vm1921, %v6092, %v5375
      %v6141 = vsel %vm1921, %v6093, %v5377
      %v6142 = vsel %vm1921, %v6094, %v5379
      %v6143 = vsel %vm1921, %v6095, %v5381
      %v6144 = vsel %vm1921, %v6096, %v5383
      %v6145 = vsel %vm1921, %v6097, %v5385
      %v6146 = vsel %vm1921, %v6098, %v5387
      %v6147 = vsel %vm1921, %v6099, %v5389
      %v6148 = vsel %vm1921, %v6100, %v5391
      %v6149 = vsel %vm1921, %v6101, %v5393
      %v6150 = vsel %vm1921, %v6102, %v5395
      %v6151 = vsel %vm1921, %v6103, %v5397
      %v6152 = vsel %vm1921, %v6104, %v5399
      %v6153 = vsel %vm1921, %v6105, %v5401
      %v6154 = vsel %vm1921, %v6106, %v5403
      %v6155 = vsel %vm1921, %v6107, %v5405
      %v6156 = vsel %vm1921, %v6108, %v5407
      %v6157 = vsel %vm1921, %v6109, %v5409
      %v6158 = vsel %vm1921, %v6110, %v5411
      %v6159 = vsel %vm1921, %v6111, %v5413
      %v6160 = vsel %vm1921, %v6112, %v5415
      %v6161 = vsel %vm1921, %v6113, %v5417
      %v6162 = vsel %vm1921, %v6114, %v5419
      %v6163 = vsel %vm1921, %v6115, %v5421
      %v6164 = vsel %vm1921, %v6116, %v5423
      %v6165 = vsel %vm1921, %v6117, %v5425
      %v6166 = vsel %vm1921, %v6118, %v5427
      %v6167 = vsel %vm1921, %v6119, %v5429
      %v6168 = vsel %vm1921, %v6120, %v5431
      %v6169 = vsel %vm1921, %v6121, %v5433
      %v6170 = vsel %vm1921, %v6122, %v5435
      %v6171 = vsel %vm1921, %v6123, %v5437
      %v6172 = vsel %vm1921, %v6124, %v5439
      %v6173 = vsel %vm1921, %v6125, %v5441
      %v6174 = vsel %vm1921, %v6126, %v5443
      %v6175 = vsel %vm1921, %v6127, %v5445
      %v6176 = vsel %vm1921, %v6128, %v5447
      %v6177 = vsel %vm1970, %v6129, %v5500
      %v6178 = vsel %vm1970, %v6130, %v5502
      %v6179 = vsel %vm1970, %v6131, %v5504
      %v6180 = vsel %vm1970, %v6132, %v5506
      %v6181 = vsel %vm1970, %v6133, %v5508
      %v6182 = vsel %vm1970, %v6134, %v5510
      %v6183 = vsel %vm1970, %v6135, %v5512
      %v6184 = vsel %vm1970, %v6136, %v5514
      %v6185 = vsel %vm1970, %v6137, %v5516
      %v6186 = vsel %vm1970, %v6138, %v5518
      %v6187 = vsel %vm1970, %v6139, %v5520
      %v6188 = vsel %vm1970, %v6140, %v5522
      %v6189 = vsel %vm1970, %v6141, %v5524
      %v6190 = vsel %vm1970, %v6142, %v5526
      %v6191 = vsel %vm1970, %v6143, %v5528
      %v6192 = vsel %vm1970, %v6144, %v5530
      %v6193 = vsel %vm1970, %v6145, %v5532
      %v6194 = vsel %vm1970, %v6146, %v5534
      %v6195 = vsel %vm1970, %v6147, %v5536
      %v6196 = vsel %vm1970, %v6148, %v5538
      %v6197 = vsel %vm1970, %v6149, %v5540
      %v6198 = vsel %vm1970, %v6150, %v5542
      %v6199 = vsel %vm1970, %v6151, %v5544
      %v6200 = vsel %vm1970, %v6152, %v5546
      %v6201 = vsel %vm1970, %v6153, %v5548
      %v6202 = vsel %vm1970, %v6154, %v5550
      %v6203 = vsel %vm1970, %v6155, %v5552
      %v6204 = vsel %vm1970, %v6156, %v5554
      %v6205 = vsel %vm1970, %v6157, %v5556
      %v6206 = vsel %vm1970, %v6158, %v5558
      %v6207 = vsel %vm1970, %v6159, %v5560
      %v6208 = vsel %vm1970, %v6160, %v5562
      %v6209 = vsel %vm1970, %v6161, %v5564
      %v6210 = vsel %vm1970, %v6162, %v5566
      %v6211 = vsel %vm1970, %v6163, %v5568
      %v6212 = vsel %vm1970, %v6164, %v5570
      %v6213 = vsel %vm1970, %v6165, %v5572
      %v6214 = vsel %vm1970, %v6166, %v5574
      %v6215 = vsel %vm1970, %v6167, %v5576
      %v6216 = vsel %vm1970, %v6168, %v5578
      %v6217 = vsel %vm1970, %v6169, %v5580
      %v6218 = vsel %vm1970, %v6170, %v5582
      %v6219 = vsel %vm1970, %v6171, %v5584
      %v6220 = vsel %vm1970, %v6172, %v5586
      %v6221 = vsel %vm1970, %v6173, %v5588
      %v6222 = vsel %vm1970, %v6174, %v5590
      %v6223 = vsel %vm1970, %v6175, %v5592
      %v6224 = vsel %vm1970, %v6176, %v5594
      %v6225 = vsel %vm2019, %v6177, %v5647
      %v6226 = vsel %vm2019, %v6178, %v5649
      %v6227 = vsel %vm2019, %v6179, %v5651
      %v6228 = vsel %vm2019, %v6180, %v5653
      %v6229 = vsel %vm2019, %v6181, %v5655
      %v6230 = vsel %vm2019, %v6182, %v5657
      %v6231 = vsel %vm2019, %v6183, %v5659
      %v6232 = vsel %vm2019, %v6184, %v5661
      %v6233 = vsel %vm2019, %v6185, %v5663
      %v6234 = vsel %vm2019, %v6186, %v5665
      %v6235 = vsel %vm2019, %v6187, %v5667
      %v6236 = vsel %vm2019, %v6188, %v5669
      %v6237 = vsel %vm2019, %v6189, %v5671
      %v6238 = vsel %vm2019, %v6190, %v5673
      %v6239 = vsel %vm2019, %v6191, %v5675
      %v6240 = vsel %vm2019, %v6192, %v5677
      %v6241 = vsel %vm2019, %v6193, %v5679
      %v6242 = vsel %vm2019, %v6194, %v5681
      %v6243 = vsel %vm2019, %v6195, %v5683
      %v6244 = vsel %vm2019, %v6196, %v5685
      %v6245 = vsel %vm2019, %v6197, %v5687
      %v6246 = vsel %vm2019, %v6198, %v5689
      %v6247 = vsel %vm2019, %v6199, %v5691
      %v6248 = vsel %vm2019, %v6200, %v5693
      %v6249 = vsel %vm2019, %v6201, %v5695
      %v6250 = vsel %vm2019, %v6202, %v5697
      %v6251 = vsel %vm2019, %v6203, %v5699
      %v6252 = vsel %vm2019, %v6204, %v5701
      %v6253 = vsel %vm2019, %v6205, %v5703
      %v6254 = vsel %vm2019, %v6206, %v5705
      %v6255 = vsel %vm2019, %v6207, %v5707
      %v6256 = vsel %vm2019, %v6208, %v5709
      %v6257 = vsel %vm2019, %v6209, %v5711
      %v6258 = vsel %vm2019, %v6210, %v5713
      %v6259 = vsel %vm2019, %v6211, %v5715
      %v6260 = vsel %vm2019, %v6212, %v5717
      %v6261 = vsel %vm2019, %v6213, %v5719
      %v6262 = vsel %vm2019, %v6214, %v5721
      %v6263 = vsel %vm2019, %v6215, %v5723
      %v6264 = vsel %vm2019, %v6216, %v5725
      %v6265 = vsel %vm2019, %v6217, %v5727
      %v6266 = vsel %vm2019, %v6218, %v5729
      %v6267 = vsel %vm2019, %v6219, %v5731
      %v6268 = vsel %vm2019, %v6220, %v5733
      %v6269 = vsel %vm2019, %v6221, %v5735
      %v6270 = vsel %vm2019, %v6222, %v5737
      %v6271 = vsel %vm2019, %v6223, %v5739
      %v6272 = vsel %vm2019, %v6224, %v5741
      %v6273 = vsel %vm2068, %v6225, %v5794
      %v6274 = vsel %vm2068, %v6226, %v5796
      %v6275 = vsel %vm2068, %v6227, %v5798
      %v6276 = vsel %vm2068, %v6228, %v5800
      %v6277 = vsel %vm2068, %v6229, %v5802
      %v6278 = vsel %vm2068, %v6230, %v5804
      %v6279 = vsel %vm2068, %v6231, %v5806
      %v6280 = vsel %vm2068, %v6232, %v5808
      %v6281 = vsel %vm2068, %v6233, %v5810
      %v6282 = vsel %vm2068, %v6234, %v5812
      %v6283 = vsel %vm2068, %v6235, %v5814
      %v6284 = vsel %vm2068, %v6236, %v5816
      %v6285 = vsel %vm2068, %v6237, %v5818
      %v6286 = vsel %vm2068, %v6238, %v5820
      %v6287 = vsel %vm2068, %v6239, %v5822
      %v6288 = vsel %vm2068, %v6240, %v5824
      %v6289 = vsel %vm2068, %v6241, %v5826
      %v6290 = vsel %vm2068, %v6242, %v5828
      %v6291 = vsel %vm2068, %v6243, %v5830
      %v6292 = vsel %vm2068, %v6244, %v5832
      %v6293 = vsel %vm2068, %v6245, %v5834
      %v6294 = vsel %vm2068, %v6246, %v5836
      %v6295 = vsel %vm2068, %v6247, %v5838
      %v6296 = vsel %vm2068, %v6248, %v5840
      %v6297 = vsel %vm2068, %v6249, %v5842
      %v6298 = vsel %vm2068, %v6250, %v5844
      %v6299 = vsel %vm2068, %v6251, %v5846
      %v6300 = vsel %vm2068, %v6252, %v5848
      %v6301 = vsel %vm2068, %v6253, %v5850
      %v6302 = vsel %vm2068, %v6254, %v5852
      %v6303 = vsel %vm2068, %v6255, %v5854
      %v6304 = vsel %vm2068, %v6256, %v5856
      %v6305 = vsel %vm2068, %v6257, %v5858
      %v6306 = vsel %vm2068, %v6258, %v5860
      %v6307 = vsel %vm2068, %v6259, %v5862
      %v6308 = vsel %vm2068, %v6260, %v5864
      %v6309 = vsel %vm2068, %v6261, %v5866
      %v6310 = vsel %vm2068, %v6262, %v5868
      %v6311 = vsel %vm2068, %v6263, %v5870
      %v6312 = vsel %vm2068, %v6264, %v5872
      %v6313 = vsel %vm2068, %v6265, %v5874
      %v6314 = vsel %vm2068, %v6266, %v5876
      %v6315 = vsel %vm2068, %v6267, %v5878
      %v6316 = vsel %vm2068, %v6268, %v5880
      %v6317 = vsel %vm2068, %v6269, %v5882
      %v6318 = vsel %vm2068, %v6270, %v5884
      %v6319 = vsel %vm2068, %v6271, %v5886
      %v6320 = vsel %vm2068, %v6272, %v5888
      %v6321 = vsel %vm2117, %v6273, 0.0
      %v6322 = vsel %vm2117, %v6274, 0.0
      %v6323 = vsel %vm2117, %v6275, 0.0
      %v6324 = vsel %vm2117, %v6276, 0.0
      %v6325 = vsel %vm2117, %v6277, 0.0
      %v6326 = vsel %vm2117, %v6278, 0.0
      %v6327 = vsel %vm2117, %v6279, 0.0
      %v6328 = vsel %vm2117, %v6280, 0.0
      %v6329 = vsel %vm2117, %v6281, 0.0
      %v6330 = vsel %vm2117, %v6282, 0.0
      %v6331 = vsel %vm2117, %v6283, 0.0
      %v6332 = vsel %vm2117, %v6284, 0.0
      %v6333 = vsel %vm2117, %v6285, 0.0
      %v6334 = vsel %vm2117, %v6286, 0.0
      %v6335 = vsel %vm2117, %v6287, 0.0
      %v6336 = vsel %vm2117, %v6288, 0.0
      %v6337 = vsel %vm2117, %v6289, 0.0
      %v6338 = vsel %vm2117, %v6290, 0.0
      %v6339 = vsel %vm2117, %v6291, 0.0
      %v6340 = vsel %vm2117, %v6292, 0.0
      %v6341 = vsel %vm2117, %v6293, 0.0
      %v6342 = vsel %vm2117, %v6294, 0.0
      %v6343 = vsel %vm2117, %v6295, 0.0
      %v6344 = vsel %vm2117, %v6296, 0.0
      %v6345 = vsel %vm2117, %v6297, 0.0
      %v6346 = vsel %vm2117, %v6298, 0.0
      %v6347 = vsel %vm2117, %v6299, 0.0
      %v6348 = vsel %vm2117, %v6300, 0.0
      %v6349 = vsel %vm2117, %v6301, 0.0
      %v6350 = vsel %vm2117, %v6302, 0.0
      %v6351 = vsel %vm2117, %v6303, 0.0
      %v6352 = vsel %vm2117, %v6304, 0.0
      %v6353 = vsel %vm2117, %v6305, 0.0
      %v6354 = vsel %vm2117, %v6306, 0.0
      %v6355 = vsel %vm2117, %v6307, 0.0
      %v6356 = vsel %vm2117, %v6308, 0.0
      %v6357 = vsel %vm2117, %v6309, 0.0
      %v6358 = vsel %vm2117, %v6310, 0.0
      %v6359 = vsel %vm2117, %v6311, 0.0
      %v6360 = vsel %vm2117, %v6312, 0.0
      %v6361 = vsel %vm2117, %v6313, 0.0
      %v6362 = vsel %vm2117, %v6314, 0.0
      %v6363 = vsel %vm2117, %v6315, 0.0
      %v6364 = vsel %vm2117, %v6316, 0.0
      %v6365 = vsel %vm2117, %v6317, 0.0
      %v6366 = vsel %vm2117, %v6318, 0.0
      %v6367 = vsel %vm2117, %v6319, 0.0
      %v6368 = vsel %vm2117, %v6320, 0.0
      %v6369 = vpack.c.bf16 %v6322, %v6321
      %v6370 = vpack.c.bf16 %v6324, %v6323
      %v6371 = vpack.c.bf16 %v6326, %v6325
      %v6372 = vpack.c.bf16 %v6328, %v6327
      %v6373 = vpack.c.bf16 %v6330, %v6329
      %v6374 = vpack.c.bf16 %v6332, %v6331
      %v6375 = vpack.c.bf16 %v6334, %v6333
      %v6376 = vpack.c.bf16 %v6336, %v6335
      %v6377 = vpack.c.bf16 %v6338, %v6337
      %v6378 = vpack.c.bf16 %v6340, %v6339
      %v6379 = vpack.c.bf16 %v6342, %v6341
      %v6380 = vpack.c.bf16 %v6344, %v6343
      %v6381 = vpack.c.bf16 %v6346, %v6345
      %v6382 = vpack.c.bf16 %v6348, %v6347
      %v6383 = vpack.c.bf16 %v6350, %v6349
      %v6384 = vpack.c.bf16 %v6352, %v6351
      %v6385 = vpack.c.bf16 %v6354, %v6353
      %v6386 = vpack.c.bf16 %v6356, %v6355
      %v6387 = vpack.c.bf16 %v6358, %v6357
      %v6388 = vpack.c.bf16 %v6360, %v6359
      %v6389 = vpack.c.bf16 %v6362, %v6361
      %v6390 = vpack.c.bf16 %v6364, %v6363
      %v6391 = vpack.c.bf16 %v6366, %v6365
      %v6392 = vpack.c.bf16 %v6368, %v6367
      %v6393 = vld [vmem:[%s4] sm:$0xf]
      %v6394 = vld [vmem:[%s4 + $0x4] sm:$0xf]
      %v6395 = vld [vmem:[%s4 + $0x8] sm:$0xf]
      %v6396 = vld [vmem:[%s4 + $0xc] sm:$0xf]
      %v6397 = vld [vmem:[%s4 + $0x10] sm:$0xf]
      %v6398 = vld [vmem:[%s4 + $0x14] sm:$0xf]
      %v6399 = vld [vmem:[%s4 + $0x18] sm:$0xf]
      %v6400 = vld [vmem:[%s4 + $0x1c] sm:$0xf]
      %v6401 = vld [vmem:[%s4 + $0x20] sm:$0xf]
      %v6402 = vld [vmem:[%s4 + $0x24] sm:$0xf]
      %v6403 = vld [vmem:[%s4 + $0x28] sm:$0xf]
      %v6404 = vld [vmem:[%s4 + $0x2c] sm:$0xf]
      %v6405 = vld [vmem:[%s4 + $0x30] sm:$0xf]
      %v6406 = vld [vmem:[%s4 + $0x34] sm:$0xf]
      %v6407 = vld [vmem:[%s4 + $0x38] sm:$0xf]
      %v6408 = vld [vmem:[%s4 + $0x3c] sm:$0xf]
      %v6409 = vld [vmem:[%s5] sm:$0x1]
      %v6411 = vperm.slane %v6409, 0
      %v6429 = vunpack.c.l.b16 %v6393
      %v6430 = vunpack.c.l.b16 %v6394
      %v6431 = vunpack.c.l.b16 %v6395
      %v6432 = vunpack.c.l.b16 %v6396
      %v6433 = vunpack.c.l.b16 %v6397
      %v6434 = vunpack.c.l.b16 %v6398
      %v6435 = vunpack.c.l.b16 %v6399
      %v6436 = vunpack.c.l.b16 %v6400
      %v6437 = vunpack.c.l.b16 %v6401
      %v6438 = vunpack.c.l.b16 %v6402
      %v6439 = vunpack.c.l.b16 %v6403
      %v6440 = vunpack.c.l.b16 %v6404
      %v6441 = vunpack.c.l.b16 %v6405
      %v6442 = vunpack.c.l.b16 %v6406
      %v6443 = vunpack.c.l.b16 %v6407
      %v6444 = vunpack.c.l.b16 %v6408
      %v6445 = vpack.c.b16 %v6430, %v6429
      %v6446 = vpack.c.b16 %v6432, %v6431
      %v6447 = vpack.c.b16 %v6434, %v6433
      %v6448 = vpack.c.b16 %v6436, %v6435
      %v6449 = vpack.c.b16 %v6438, %v6437
      %v6450 = vpack.c.b16 %v6440, %v6439
      %v6451 = vpack.c.b16 %v6442, %v6441
      %v6452 = vpack.c.b16 %v6444, %v6443
      %6461 = vmatpush.bf16.msra.mxu0 %v6452
      %6462 = vmatpush.bf16.msra.mxu0 %v6451
      %6463 = vmatpush.bf16.msra.mxu0 %v6450
      %6464 = vmatpush.bf16.msra.mxu0 %v6449
      %6465 = vmatpush.bf16.msra.mxu0 %v6448
      %6466 = vmatpush.bf16.msra.mxu0 %v6447
      %6467 = vmatpush.bf16.msra.mxu0 %v6446
      %6468 = vmatpush.bf16.msra.mxu0 %v6445
      %6469 = vmatmul.bf16.gmra.mxu0 %v6369
      %v6470 = vpop.f32.mrf.mxu0
      %v6471 = vadd.f32 %v6411, %v6470
      %v6472 = vpop.f32.mrf.mxu0
      %v6473 = vadd.f32 %v6411, %v6472
      %6474 = vmatmul.bf16.gmra.mxu0 %v6370
      %v6475 = vpop.f32.mrf.mxu0
      %v6476 = vadd.f32 %v6411, %v6475
      %v6477 = vpop.f32.mrf.mxu0
      %v6478 = vadd.f32 %v6411, %v6477
      %6479 = vmatmul.bf16.gmra.mxu0 %v6371
      %v6480 = vpop.f32.mrf.mxu0
      %v6481 = vadd.f32 %v6411, %v6480
      %v6482 = vpop.f32.mrf.mxu0
      %v6483 = vadd.f32 %v6411, %v6482
      %6484 = vmatmul.bf16.gmra.mxu0 %v6372
      %v6485 = vpop.f32.mrf.mxu0
      %v6486 = vadd.f32 %v6411, %v6485
      %v6487 = vpop.f32.mrf.mxu0
      %v6488 = vadd.f32 %v6411, %v6487
      %6489 = vmatmul.bf16.gmra.mxu0 %v6373
      %v6490 = vpop.f32.mrf.mxu0
      %v6491 = vadd.f32 %v6411, %v6490
      %v6492 = vpop.f32.mrf.mxu0
      %v6493 = vadd.f32 %v6411, %v6492
      %6494 = vmatmul.bf16.gmra.mxu0 %v6374
      %v6495 = vpop.f32.mrf.mxu0
      %v6496 = vadd.f32 %v6411, %v6495
      %v6497 = vpop.f32.mrf.mxu0
      %v6498 = vadd.f32 %v6411, %v6497
      %6499 = vmatmul.bf16.gmra.mxu0 %v6375
      %v6500 = vpop.f32.mrf.mxu0
      %v6501 = vadd.f32 %v6411, %v6500
      %v6502 = vpop.f32.mrf.mxu0
      %v6503 = vadd.f32 %v6411, %v6502
      %6504 = vmatmul.bf16.gmra.mxu0 %v6376
      %v6505 = vpop.f32.mrf.mxu0
      %v6506 = vadd.f32 %v6411, %v6505
      %v6507 = vpop.f32.mrf.mxu0
      %v6508 = vadd.f32 %v6411, %v6507
      %6509 = vmatmul.bf16.gmra.mxu0 %v6377
      %v6510 = vpop.f32.mrf.mxu0
      %v6511 = vadd.f32 %v6411, %v6510
      %v6512 = vpop.f32.mrf.mxu0
      %v6513 = vadd.f32 %v6411, %v6512
      %6514 = vmatmul.bf16.gmra.mxu0 %v6378
      %v6515 = vpop.f32.mrf.mxu0
      %v6516 = vadd.f32 %v6411, %v6515
      %v6517 = vpop.f32.mrf.mxu0
      %v6518 = vadd.f32 %v6411, %v6517
      %6519 = vmatmul.bf16.gmra.mxu0 %v6379
      %v6520 = vpop.f32.mrf.mxu0
      %v6521 = vadd.f32 %v6411, %v6520
      %v6522 = vpop.f32.mrf.mxu0
      %v6523 = vadd.f32 %v6411, %v6522
      %6524 = vmatmul.bf16.gmra.mxu0 %v6380
      %v6525 = vpop.f32.mrf.mxu0
      %v6526 = vadd.f32 %v6411, %v6525
      %v6527 = vpop.f32.mrf.mxu0
      %v6528 = vadd.f32 %v6411, %v6527
      %6529 = vmatmul.bf16.gmra.mxu0 %v6381
      %v6530 = vpop.f32.mrf.mxu0
      %v6531 = vadd.f32 %v6411, %v6530
      %v6532 = vpop.f32.mrf.mxu0
      %v6533 = vadd.f32 %v6411, %v6532
      %6534 = vmatmul.bf16.gmra.mxu0 %v6382
      %v6535 = vpop.f32.mrf.mxu0
      %v6536 = vadd.f32 %v6411, %v6535
      %v6537 = vpop.f32.mrf.mxu0
      %v6538 = vadd.f32 %v6411, %v6537
      %6539 = vmatmul.bf16.gmra.mxu0 %v6383
      %v6540 = vpop.f32.mrf.mxu0
      %v6541 = vadd.f32 %v6411, %v6540
      %v6542 = vpop.f32.mrf.mxu0
      %v6543 = vadd.f32 %v6411, %v6542
      %6544 = vmatmul.bf16.gmra.mxu0 %v6384
      %v6545 = vpop.f32.mrf.mxu0
      %v6546 = vadd.f32 %v6411, %v6545
      %v6547 = vpop.f32.mrf.mxu0
      %v6548 = vadd.f32 %v6411, %v6547
      %6549 = vmatmul.bf16.gmra.mxu0 %v6385
      %v6550 = vpop.f32.mrf.mxu0
      %v6551 = vadd.f32 %v6411, %v6550
      %v6552 = vpop.f32.mrf.mxu0
      %v6553 = vadd.f32 %v6411, %v6552
      %6554 = vmatmul.bf16.gmra.mxu0 %v6386
      %v6555 = vpop.f32.mrf.mxu0
      %v6556 = vadd.f32 %v6411, %v6555
      %v6557 = vpop.f32.mrf.mxu0
      %v6558 = vadd.f32 %v6411, %v6557
      %6559 = vmatmul.bf16.gmra.mxu0 %v6387
      %v6560 = vpop.f32.mrf.mxu0
      %v6561 = vadd.f32 %v6411, %v6560
      %v6562 = vpop.f32.mrf.mxu0
      %v6563 = vadd.f32 %v6411, %v6562
      %6564 = vmatmul.bf16.gmra.mxu0 %v6388
      %v6565 = vpop.f32.mrf.mxu0
      %v6566 = vadd.f32 %v6411, %v6565
      %v6567 = vpop.f32.mrf.mxu0
      %v6568 = vadd.f32 %v6411, %v6567
      %6569 = vmatmul.bf16.gmra.mxu0 %v6389
      %v6570 = vpop.f32.mrf.mxu0
      %v6571 = vadd.f32 %v6411, %v6570
      %v6572 = vpop.f32.mrf.mxu0
      %v6573 = vadd.f32 %v6411, %v6572
      %6574 = vmatmul.bf16.gmra.mxu0 %v6390
      %v6575 = vpop.f32.mrf.mxu0
      %v6576 = vadd.f32 %v6411, %v6575
      %v6577 = vpop.f32.mrf.mxu0
      %v6578 = vadd.f32 %v6411, %v6577
      %6579 = vmatmul.bf16.gmra.mxu0 %v6391
      %v6580 = vpop.f32.mrf.mxu0
      %v6581 = vadd.f32 %v6411, %v6580
      %v6582 = vpop.f32.mrf.mxu0
      %v6583 = vadd.f32 %v6411, %v6582
      %6584 = vmatmul.bf16.gmra.mxu0 %v6392
      %v6585 = vpop.f32.mrf.mxu0
      %v6586 = vadd.f32 %v6411, %v6585
      %v6587 = vpop.f32.mrf.mxu0
      %v6588 = vadd.f32 %v6411, %v6587
      %6589 = vdwg.mxu0
      %v6590 = vld [vmem:[%s246 + $0x20] sm:$0xff]
      %v6591 = vld [vmem:[%s246 + $0x28] sm:$0xff]
      %v6592 = vld [vmem:[%s246 + $0x30] sm:$0xff]
      %v6593 = vld [vmem:[%s246 + $0x38] sm:$0xff]
      %v6594 = vld [vmem:[%s246 + $0x40] sm:$0xff]
      %v6595 = vld [vmem:[%s246 + $0x48] sm:$0xff]
      %v6596 = vld [vmem:[%s246 + $0x50] sm:$0xff]
      %v6597 = vld [vmem:[%s246 + $0x58] sm:$0xff]
      %v6598 = vld [vmem:[%s246 + $0x60] sm:$0xff]
      %v6599 = vld [vmem:[%s246 + $0x68] sm:$0xff]
      %v6600 = vld [vmem:[%s246 + $0x70] sm:$0xff]
      %v6601 = vld [vmem:[%s246 + $0x78] sm:$0xff]
      %v6602 = vld [vmem:[%s246 + $0x80] sm:$0xff]
      %v6603 = vld [vmem:[%s246 + $0x88] sm:$0xff]
      %v6604 = vld [vmem:[%s246 + $0x90] sm:$0xff]
      %v6605 = vld [vmem:[%s246 + $0x98] sm:$0xff]
      %v6606 = vld [vmem:[%s246 + $0xa0] sm:$0xff]
      %v6607 = vld [vmem:[%s246 + $0xa8] sm:$0xff]
      %v6608 = vld [vmem:[%s246 + $0xb0] sm:$0xff]
      %v6609 = vld [vmem:[%s246 + $0xb8] sm:$0xff]
      %v6610 = vld [vmem:[%s246 + $0xc0] sm:$0xff]
      %v6611 = vld [vmem:[%s246 + $0xc8] sm:$0xff]
      %v6612 = vld [vmem:[%s246 + $0xd0] sm:$0xff]
      %v6613 = vld [vmem:[%s246 + $0xd8] sm:$0xff]
      %v6614 = vld [vmem:[%s246 + $0xe0] sm:$0xff]
      %v6615 = vld [vmem:[%s246 + $0xe8] sm:$0xff]
      %v6616 = vld [vmem:[%s246 + $0xf0] sm:$0xff]
      %v6617 = vld [vmem:[%s246 + $0xf8] sm:$0xff]
      %v6618 = vld [vmem:[%s246 + $0x100] sm:$0xff]
      %v6619 = vld [vmem:[%s246 + $0x108] sm:$0xff]
      %v6620 = vld [vmem:[%s246 + $0x110] sm:$0xff]
      %v6621 = vld [vmem:[%s246 + $0x118] sm:$0xff]
      %v6622 = vld [vmem:[%s246 + $0x120] sm:$0xff]
      %v6623 = vld [vmem:[%s246 + $0x128] sm:$0xff]
      %v6624 = vld [vmem:[%s246 + $0x130] sm:$0xff]
      %v6625 = vld [vmem:[%s246 + $0x138] sm:$0xff]
      %v6626 = vld [vmem:[%s246 + $0x140] sm:$0xff]
      %v6627 = vld [vmem:[%s246 + $0x148] sm:$0xff]
      %v6628 = vld [vmem:[%s246 + $0x150] sm:$0xff]
      %v6629 = vld [vmem:[%s246 + $0x158] sm:$0xff]
      %v6630 = vld [vmem:[%s246 + $0x160] sm:$0xff]
      %v6631 = vld [vmem:[%s246 + $0x168] sm:$0xff]
      %v6632 = vld [vmem:[%s246 + $0x170] sm:$0xff]
      %v6633 = vld [vmem:[%s246 + $0x178] sm:$0xff]
      %v6634 = vld [vmem:[%s246 + $0x180] sm:$0xff]
      %v6635 = vld [vmem:[%s246 + $0x188] sm:$0xff]
      %v6636 = vld [vmem:[%s246 + $0x190] sm:$0xff]
      %v6637 = vld [vmem:[%s246 + $0x198] sm:$0xff]
      %v6638 = vadd.f32 %v6471, %v6590
      %v6639 = vadd.f32 %v6473, %v6591
      %v6640 = vadd.f32 %v6476, %v6592
      %v6641 = vadd.f32 %v6478, %v6593
      %v6642 = vadd.f32 %v6481, %v6594
      %v6643 = vadd.f32 %v6483, %v6595
      %v6644 = vadd.f32 %v6486, %v6596
      %v6645 = vadd.f32 %v6488, %v6597
      %v6646 = vadd.f32 %v6491, %v6598
      %v6647 = vadd.f32 %v6493, %v6599
      %v6648 = vadd.f32 %v6496, %v6600
      %v6649 = vadd.f32 %v6498, %v6601
      %v6650 = vadd.f32 %v6501, %v6602
      %v6651 = vadd.f32 %v6503, %v6603
      %v6652 = vadd.f32 %v6506, %v6604
      %v6653 = vadd.f32 %v6508, %v6605
      %v6654 = vadd.f32 %v6511, %v6606
      %v6655 = vadd.f32 %v6513, %v6607
      %v6656 = vadd.f32 %v6516, %v6608
      %v6657 = vadd.f32 %v6518, %v6609
      %v6658 = vadd.f32 %v6521, %v6610
      %v6659 = vadd.f32 %v6523, %v6611
      %v6660 = vadd.f32 %v6526, %v6612
      %v6661 = vadd.f32 %v6528, %v6613
      %v6662 = vadd.f32 %v6531, %v6614
      %v6663 = vadd.f32 %v6533, %v6615
      %v6664 = vadd.f32 %v6536, %v6616
      %v6665 = vadd.f32 %v6538, %v6617
      %v6666 = vadd.f32 %v6541, %v6618
      %v6667 = vadd.f32 %v6543, %v6619
      %v6668 = vadd.f32 %v6546, %v6620
      %v6669 = vadd.f32 %v6548, %v6621
      %v6670 = vadd.f32 %v6551, %v6622
      %v6671 = vadd.f32 %v6553, %v6623
      %v6672 = vadd.f32 %v6556, %v6624
      %v6673 = vadd.f32 %v6558, %v6625
      %v6674 = vadd.f32 %v6561, %v6626
      %v6675 = vadd.f32 %v6563, %v6627
      %v6676 = vadd.f32 %v6566, %v6628
      %v6677 = vadd.f32 %v6568, %v6629
      %v6678 = vadd.f32 %v6571, %v6630
      %v6679 = vadd.f32 %v6573, %v6631
      %v6680 = vadd.f32 %v6576, %v6632
      %v6681 = vadd.f32 %v6578, %v6633
      %v6682 = vadd.f32 %v6581, %v6634
      %v6683 = vadd.f32 %v6583, %v6635
      %v6684 = vadd.f32 %v6586, %v6636
      %v6685 = vadd.f32 %v6588, %v6637
      %6686 = vst [vmem:[%s251] sm:$0xff] %v6638
      %6687 = vst [vmem:[%s251 + $0x8] sm:$0xff] %v6639
      %6688 = vst [vmem:[%s251 + $0x10] sm:$0xff] %v6640
      %6689 = vst [vmem:[%s251 + $0x18] sm:$0xff] %v6641
      %6690 = vst [vmem:[%s251 + $0x20] sm:$0xff] %v6642
      %6691 = vst [vmem:[%s251 + $0x28] sm:$0xff] %v6643
      %6692 = vst [vmem:[%s251 + $0x30] sm:$0xff] %v6644
      %6693 = vst [vmem:[%s251 + $0x38] sm:$0xff] %v6645
      %6694 = vst [vmem:[%s251 + $0x40] sm:$0xff] %v6646
      %6695 = vst [vmem:[%s251 + $0x48] sm:$0xff] %v6647
      %6696 = vst [vmem:[%s251 + $0x50] sm:$0xff] %v6648
      %6697 = vst [vmem:[%s251 + $0x58] sm:$0xff] %v6649
      %6698 = vst [vmem:[%s251 + $0x60] sm:$0xff] %v6650
      %6699 = vst [vmem:[%s251 + $0x68] sm:$0xff] %v6651
      %6700 = vst [vmem:[%s251 + $0x70] sm:$0xff] %v6652
      %6701 = vst [vmem:[%s251 + $0x78] sm:$0xff] %v6653
      %6702 = vst [vmem:[%s251 + $0x80] sm:$0xff] %v6654
      %6703 = vst [vmem:[%s251 + $0x88] sm:$0xff] %v6655
      %6704 = vst [vmem:[%s251 + $0x90] sm:$0xff] %v6656
      %6705 = vst [vmem:[%s251 + $0x98] sm:$0xff] %v6657
      %6706 = vst [vmem:[%s251 + $0xa0] sm:$0xff] %v6658
      %6707 = vst [vmem:[%s251 + $0xa8] sm:$0xff] %v6659
      %6708 = vst [vmem:[%s251 + $0xb0] sm:$0xff] %v6660
      %6709 = vst [vmem:[%s251 + $0xb8] sm:$0xff] %v6661
      %6710 = vst [vmem:[%s251 + $0xc0] sm:$0xff] %v6662
      %6711 = vst [vmem:[%s251 + $0xc8] sm:$0xff] %v6663
      %6712 = vst [vmem:[%s251 + $0xd0] sm:$0xff] %v6664
      %6713 = vst [vmem:[%s251 + $0xd8] sm:$0xff] %v6665
      %6714 = vst [vmem:[%s251 + $0xe0] sm:$0xff] %v6666
      %6715 = vst [vmem:[%s251 + $0xe8] sm:$0xff] %v6667
      %6716 = vst [vmem:[%s251 + $0xf0] sm:$0xff] %v6668
      %6717 = vst [vmem:[%s251 + $0xf8] sm:$0xff] %v6669
      %6718 = vst [vmem:[%s251 + $0x100] sm:$0xff] %v6670
      %6719 = vst [vmem:[%s251 + $0x108] sm:$0xff] %v6671
      %6720 = vst [vmem:[%s251 + $0x110] sm:$0xff] %v6672
      %6721 = vst [vmem:[%s251 + $0x118] sm:$0xff] %v6673
      %6722 = vst [vmem:[%s251 + $0x120] sm:$0xff] %v6674
      %6723 = vst [vmem:[%s251 + $0x128] sm:$0xff] %v6675
      %6724 = vst [vmem:[%s251 + $0x130] sm:$0xff] %v6676
      %6725 = vst [vmem:[%s251 + $0x138] sm:$0xff] %v6677
      %6726 = vst [vmem:[%s251 + $0x140] sm:$0xff] %v6678
      %6727 = vst [vmem:[%s251 + $0x148] sm:$0xff] %v6679
      %6728 = vst [vmem:[%s251 + $0x150] sm:$0xff] %v6680
      %6729 = vst [vmem:[%s251 + $0x158] sm:$0xff] %v6681
      %6730 = vst [vmem:[%s251 + $0x160] sm:$0xff] %v6682
      %6731 = vst [vmem:[%s251 + $0x168] sm:$0xff] %v6683
      %6732 = vst [vmem:[%s251 + $0x170] sm:$0xff] %v6684
      %6733 = vst [vmem:[%s251 + $0x178] sm:$0xff] %v6685
      %p6734 = scmp.lt.s32.totalorder %s17, 1
      %s6735 = scalar_select %p6734, %s17, 1
      %s6736 = smul.addr %s6735, 48
      %s6737 = smul.addr %s6736, 8
      %s6738 = scalar_lea.vmem %s6, %s6737
      // Predicated region
      $region45: #{residual_block.1} parent=43 // pred_check
        %p6739 = pneg %p166
      $region46: #{residual_block.1} parent=43 // pred_check_branch
        %6741 = sbr.rel (%p6739) target = $region48
      $region47: #{residual_block.1} parent=43 // pred_region
        _
      $region48: #{residual_block.1} parent=43 // pred_fallthru
        _
    $region44: #{residual_block.1} parent=5 // pred_fallthru
      _
    %p6742 = scmp.le.s32.totalorder 2, %s12
    // Predicated region
    $region49: #{residual_block.1} parent=5 // pred_check
      %p6743 = pneg %p6742
    $region50: #{residual_block.1} parent=5 // pred_check_branch
      %6745 = sbr.rel (%p6743) target = $region52
    $region51: #{residual_block.1} parent=5 // pred_region
      %s6746 = ssub.s32 %s12, 2
      // Predicated region
      $region53: #{residual_block.1} parent=51 // pred_check
        %p6747 = pneg %p172
      $region54: #{residual_block.1} parent=51 // pred_check_branch
        %6749 = sbr.rel (%p6747) target = $region56
      $region55: #{residual_block.1} parent=51 // pred_region
        %p6750 = scmp.lt.s32.totalorder %s18, 1
        %s6751 = scalar_select %p6750, %s18, 1
        %s6752 = smul.addr %s6751, 48
        %s6753 = smul.addr %s6752, 8
        %s6754 = scalar_lea.vmem %s6, %s6753
      $region56: #{residual_block.1} parent=51 // pred_fallthru
        _
    $region52: #{residual_block.1} parent=5 // pred_fallthru
      _
  $region6: #{residual_block.1} parent=0 // loop_footer
    %s16 = sadd.s32 1, %s12
  $region7: #{residual_block.1} parent=0 // loop_footer_branch
    %11 = sbr.rel target = $region3
  $region8: #{residual_block.1} parent=0 // loop_exit
    _

</llo_original>
